<compile_context>
chip_gen: v7x
topology: tpu7x:2x2x1
jax: 0.10.0
libtpu: 0.0.40
codegen_flags: <defaults>
</compile_context>

<pallas_src>
import functools
import numpy as np
import jax
import jax.numpy as jnp
from jax.experimental import pallas as pl
from jax.experimental.pallas import tpu as pltpu

EPS = 1e-6        # norm_layer = partial(nn.LayerNorm, eps=1e-6)
LANE = 128        # TPU lane width: pad C (and each QKV section) to this
SUBLANE = 8       # sublane granularity: pad L to a multiple of this


# ----------------------------- in-kernel math ------------------------------

def _fast_recip(x):
    # EUP approximate reciprocal (its own bundle slot) + one Newton step to
    # recover full f32 accuracy (keeps the 1e-4 reference tolerance).
    r = pl.reciprocal(x, approx=True)
    return r * (2.0 - x * r)


def _erf(x):
    # Abramowitz & Stegun 7.1.26 polynomial erf, |abs err| <= 1.5e-7.
    # torch.nn.GELU default is the exact (erf) form; tanh approx would miss 1e-4.
    a1, a2, a3, a4, a5 = 0.254829592, -0.284496736, 1.421413741, -1.453152027, 1.061405429
    p = 0.3275911
    sgn = jnp.where(x >= 0.0, 1.0, -1.0)
    ax = jnp.abs(x)
    t = _fast_recip(1.0 + p * ax)
    poly = ((((a5 * t + a4) * t + a3) * t + a2) * t + a1) * t
    return sgn * (1.0 - poly * jnp.exp(-ax * ax))


def _gelu_exact(x):
    return 0.5 * x * (1.0 + _erf(x * (1.0 / np.sqrt(2.0))))


# ------------------------------ fused Pallas kernel ------------------------

def _fusionnet_kernel(x_ref,
                      g1_ref, b1_ref, wqkv_ref, bqkv_ref, wp_ref, bp_ref,
                      g3_ref, b3_ref, w1_ref, bb1_ref, w2_ref, bb2_ref,
                      og_ref, ob_ref, o_ref, x_scr,
                      *, num_heads, head_dim, c_real, l_real):
    """One transformer Block per grid step (grid = (B, depth)); x carried in VMEM."""
    d = pl.program_id(1)

    @pl.when(d == 0)
    def _():
        x_scr[...] = x_ref[0].astype(jnp.float32)

    x = x_scr[...]
    Lp, Cp = x.shape
    hd = head_dim

    # Channel mask (real lanes) for the exact two-pass LayerNorm variance, and
    # key mask removing padded key positions from every softmax.
    ch = jax.lax.broadcasted_iota(jnp.int32, (1, Cp), 1)
    ch_mask = (ch < c_real).astype(jnp.float32)
    key_pos = jax.lax.broadcasted_iota(jnp.int32, (Lp, Lp), 1)
    key_mask = jnp.where(key_pos < l_real, 0.0, -1e30).astype(jnp.float32)

    def ln(v, g, b):
        # Padded lanes of `v` are exactly zero, so sum/C gives the true mean;
        # diff is masked to the real lanes so the variance is the exact two-pass
        # form; padded g/b are zero so padded output lanes stay exactly zero.
        inv_c = 1.0 / c_real
        mu = jnp.sum(v, axis=-1, keepdims=True) * inv_c
        diff = (v - mu) * ch_mask
        var = jnp.sum(diff * diff, axis=-1, keepdims=True) * inv_c
        return diff * jax.lax.rsqrt(var + EPS) * g + b

    # ---- attention branch: x = x + proj(MHSA(norm1(x))) ----
    h = ln(x, g1_ref[...], b1_ref[...])
    # wqkv is (Cp, 3*LANE): Q / K / V sections are each one 128-lane tile with
    # heads packed densely (head i at lanes i*hd).  Scale already folded into Q.
    qkv = jnp.dot(h, wqkv_ref[...], preferred_element_type=jnp.float32) + bqkv_ref[...]

    heads = []
    for i in range(num_heads):
        lo = i * hd
        qh = qkv[:, lo:lo + hd]
        kh = qkv[:, LANE + lo:LANE + lo + hd]
        vh = qkv[:, 2 * LANE + lo:2 * LANE + lo + hd]
        s = jax.lax.dot_general(qh, kh, (((1,), (1,)), ((), ())),
                                preferred_element_type=jnp.float32)
        s = s + key_mask                      # mask padded key positions (required!)
        s = s - jnp.max(s, axis=-1, keepdims=True)
        p = jnp.exp(s)
        p = p * _fast_recip(jnp.sum(p, axis=-1, keepdims=True))
        heads.append(jnp.dot(p, vh, preferred_element_type=jnp.float32))
    o_heads = jnp.concatenate(heads, axis=1)  # [Lp, num_heads*hd] = [Lp, 96]
    x = x + jnp.dot(o_heads, wp_ref[...], preferred_element_type=jnp.float32) + bp_ref[...]

    # ---- MLP branch: x = x + fc2(gelu(fc1(norm3(x)))) ----
    h3 = ln(x, g3_ref[...], b3_ref[...])
    m = jnp.dot(h3, w1_ref[...], preferred_element_type=jnp.float32) + bb1_ref[...]
    m = _gelu_exact(m)
    x = x + jnp.dot(m, w2_ref[...], preferred_element_type=jnp.float32) + bb2_ref[...]

    x_scr[...] = x

    # ---- out_norm on the last block ----
    @pl.when(d == pl.num_programs(1) - 1)
    def _():
        o_ref[0] = ln(x, og_ref[...], ob_ref[...]).astype(o_ref.dtype)


def fusionnet_forward(x, stacked_params, out_g, out_b, *, num_heads, head_dim,
                      c_real, l_real):
    """x: [B, Lp, Cp] padded tokens. grid=(B, depth); weights streamed per depth."""
    B, Lp, Cp = x.shape
    depth = int(stacked_params[0].shape[0])
    H = int(stacked_params[8].shape[-1])

    kernel = functools.partial(
        _fusionnet_kernel, num_heads=num_heads, head_dim=head_dim,
        c_real=c_real, l_real=l_real)

    def depth_spec(p):
        nd = p.ndim
        # Stream one depth slice per inner grid step; leading depth dim squeezed.
        return pl.BlockSpec((None,) + tuple(p.shape[1:]),
                            lambda b, d, nd=nd: (d,) + (0,) * (nd - 1))

    def const_spec(p):
        nd = p.ndim
        return pl.BlockSpec(tuple(p.shape), lambda b, d, nd=nd: (0,) * nd)

    in_specs = ([pl.BlockSpec((1, Lp, Cp), lambda b, d: (b, 0, 0))]
                + [depth_spec(p) for p in stacked_params]
                + [const_spec(out_g), const_spec(out_b)])

    # Advisory cost estimate so XLA schedules the surrounding glue sensibly.
    w_bytes_per_block = sum(int(np.prod(p.shape[1:])) * int(p.dtype.itemsize)
                            for p in stacked_params)
    flops_per_block = (2 * Lp * Cp * 3 * LANE                       # qkv
                       + num_heads * 2 * (2 * Lp * Lp * head_dim)   # scores + PV
                       + 2 * Lp * (num_heads * head_dim) * Cp       # proj
                       + 2 * Lp * Cp * H + 2 * Lp * H * Cp)         # mlp
    cost = pl.CostEstimate(
        flops=int(B * depth * flops_per_block),
        transcendentals=int(B * depth * (num_heads * Lp * Lp + 2 * Lp * H) + B * Lp * Cp),
        bytes_accessed=int(B * depth * w_bytes_per_block + 2 * B * Lp * Cp * 4))

    return pl.pallas_call(
        kernel,
        out_shape=jax.ShapeDtypeStruct((B, Lp, Cp), x.dtype),
        grid=(B, depth),
        in_specs=in_specs,
        out_specs=pl.BlockSpec((1, Lp, Cp), lambda b, d: (b, 0, 0)),
        scratch_shapes=[pltpu.VMEM((Lp, Cp), jnp.float32)],
        compiler_params=pltpu.CompilerParams(
            # batch -> parallel (one element per v7x TensorCore), depth -> arbitrary
            # (the residual-stream carry lives in the VMEM scratch across it).
            dimension_semantics=("parallel", "arbitrary"),
            # ~0.65 MiB of weights double-buffered + tiny activations; 16 MiB is
            # comfortable on every generation (v7x scoped default is 32 MiB).
            vmem_limit_bytes=16 * 1024 * 1024,
        ),
        cost_estimate=cost,
    )(x, *stacked_params, out_g, out_b)


# ------------------------------ weight re-layout (host side) ---------------

def _pad_row(a, cp):
    a = np.asarray(a, np.float32)
    out = np.zeros((a.shape[0], cp), np.float32)
    out[:, :a.shape[1]] = a
    return out


def pad_block_params(p, C, Cp, H, num_heads, head_dim, scale):
    """Re-lay a block's params for the compact head-packed, lane-dense layout."""
    g1, b1, wqkv, bqkv, wp, bp, g3, b3, w1, bb1, w2, bb2 = [np.asarray(t, np.float32) for t in p]
    NH, hd = num_heads, head_dim
    hw = NH * hd                              # real head width (== C)

    # qkv weight (C, 3C), column layout (which, head, dim) -> (Cp, 3*LANE):
    # each of Q/K/V is one 128-lane section with heads packed (head i at lanes
    # i*hd .. i*hd+hd).  attn scale folded into the Q section (weights + bias).
    w3 = wqkv.reshape(C, 3, hw)
    wqkv_p = np.zeros((Cp, 3, LANE), np.float32)
    wqkv_p[:C, :, :hw] = w3
    wqkv_p[:, 0, :] *= scale
    wqkv_p = wqkv_p.reshape(Cp, 3 * LANE)

    b3_ = bqkv.reshape(3, hw)
    bqkv_p = np.zeros((3, LANE), np.float32)
    bqkv_p[:, :hw] = b3_
    bqkv_p[0, :] *= scale
    bqkv_p = bqkv_p.reshape(1, 3 * LANE)

    # proj weight (C, C): rows already in (head, dim) order matching o_heads.
    wp_p = np.zeros((hw, Cp), np.float32)
    wp_p[:, :C] = wp

    w1_p = np.zeros((Cp, H), np.float32); w1_p[:C] = w1
    w2_p = np.zeros((H, Cp), np.float32); w2_p[:, :C] = w2

    return (_pad_row(g1, Cp), _pad_row(b1, Cp), wqkv_p, bqkv_p, wp_p, _pad_row(bp, Cp),
            _pad_row(g3, Cp), _pad_row(b3, Cp), w1_p, bb1, w2_p, _pad_row(bb2, Cp))


# ------------------------------ JAX glue (ConcatUnshuffle) -----------------

def build_3d_sincos_position_embedding(grid_size, embed_dim, num_tokens=1,
                                        temperature=10000.0):
    h = w = d = grid_size
    gh = jnp.arange(h, dtype=jnp.float32)
    gw = jnp.arange(w, dtype=jnp.float32)
    gd = jnp.arange(d, dtype=jnp.float32)
    gh, gw, gd = jnp.meshgrid(gh, gw, gd, indexing="ij")   # torch.meshgrid is 'ij'
    assert embed_dim % 6 == 0
    pos_dim = embed_dim // 6
    omega = jnp.arange(pos_dim, dtype=jnp.float32) / pos_dim
    omega = 1.0 / (temperature ** omega)
    out_h = gh.reshape(-1)[:, None] * omega[None, :]
    out_w = gw.reshape(-1)[:, None] * omega[None, :]
    out_d = gd.reshape(-1)[:, None] * omega[None, :]
    pos = jnp.concatenate([jnp.sin(out_h), jnp.cos(out_h),
                           jnp.sin(out_w), jnp.cos(out_w),
                           jnp.sin(out_d), jnp.cos(out_d)], axis=1)[None]
    if num_tokens == 1:
        pos = jnp.concatenate([jnp.zeros((1, 1, embed_dim), jnp.float32), pos], axis=1)
    return pos


def concat_unshuffle(x_list, policy_list, layer_tokens, pos_embed):
    # TODO(synk): data-dependent unshuffle gather stays in plain JAX (torch.nonzero/gather).
    parts = [x + layer_tokens[i] for i, x in enumerate(x_list)]
    x = jnp.concatenate(parts, axis=1)                       # [B, L, C]
    B, L, C = x.shape
    idx_parts = []
    for policy in policy_list:
        Lv = int(np.asarray(policy)[0].sum())
        vis_idx = jnp.argsort(1 - policy, axis=1, stable=True)[:, :Lv]
        idx_parts.append(vis_idx)
    shuffled_idx = jnp.concatenate(idx_parts, axis=1)
    assert shuffled_idx.shape[1] == L, "unmatched length of x and policy"
    unshuffle_idx = jnp.argsort(shuffled_idx, axis=1)
    x = jnp.take_along_axis(x, unshuffle_idx[:, :, None], axis=1)
    return x + pos_embed


# ------------------------------ pure-JAX reference -------------------------

def _ln_ref(v, g, b):
    mu = jnp.mean(v, axis=-1, keepdims=True)
    var = jnp.mean((v - mu) ** 2, axis=-1, keepdims=True)
    return (v - mu) * jax.lax.rsqrt(var + EPS) * g + b


def ref_block(x, params, num_heads):
    g1, b1, wqkv, bqkv, wp, bp, g3, b3, w1, bb1, w2, bb2 = params
    B, L, C = x.shape
    hd = C // num_heads
    h = _ln_ref(x, g1, b1)
    qkv = h @ wqkv + bqkv
    qkv = qkv.reshape(B, L, 3, num_heads, hd).transpose(2, 0, 3, 1, 4)
    q, k, v = qkv[0], qkv[1], qkv[2]
    attn = jnp.einsum('bhqd,bhkd->bhqk', q, k) * (hd ** -0.5)
    attn = jax.nn.softmax(attn, axis=-1)
    o = jnp.einsum('bhqk,bhkd->bhqd', attn, v).transpose(0, 2, 1, 3).reshape(B, L, C)
    o = o @ wp + bp
    x1 = x + o
    m = _ln_ref(x1, g3, b3) @ w1 + bb1
    m = jax.nn.gelu(m, approximate=False)
    m = m @ w2 + bb2
    return x1 + m


# ----------------------------------- main -----------------------------------

if __name__ == "__main__":
    B = 2
    grid_size = 2                   # 2x2x2 = 8 spatial tokens
    embed_dim = 96                  # divisible by 6 (pos-embed) and num_heads
    num_heads = 6                   # head_dim = 16
    depth = 2
    num_layers = 2
    mlp_hidden = 4 * embed_dim      # 384, already a multiple of 128
    L = grid_size ** 3 + 1          # 9 tokens (incl. extra pos-embed token, dropped at end)
    lv = [5, 4]                     # per-layer visible-token counts (sum == L)

    head_dim = embed_dim // num_heads
    scale = head_dim ** -0.5                                  # 0.25, exact
    Cp = ((embed_dim + LANE - 1) // LANE) * LANE              # 128 (lane-dense)
    Lp = ((L + SUBLANE - 1) // SUBLANE) * SUBLANE             # 16  (sublane-aligned)

    key = jax.random.PRNGKey(0)
    keys = iter(jax.random.split(key, 64))

    # ---- inputs: x_list + binary policies (same count per batch row) ----
    rng = np.random.RandomState(0)
    perm = np.stack([rng.permutation(L) for _ in range(B)], axis=0)
    policy_list, start = [], 0
    for g in lv:
        p = np.zeros((B, L), dtype=np.int32)
        for b in range(B):
            p[b, perm[b, start:start + g]] = 1
        policy_list.append(jnp.asarray(p))
        start += g
    x_list = [jax.random.normal(next(keys), (B, g, embed_dim), jnp.float32) for g in lv]

    # ---- deterministic parameters (shapes from the module's __init__) ----
    layer_tokens = [0.02 * jax.random.normal(next(keys), (1, 1, embed_dim), jnp.float32)
                    for _ in range(num_layers)]
    pos_embed = build_3d_sincos_position_embedding(grid_size, embed_dim, num_tokens=1)

    def init_block_params():
        C, H = embed_dim, mlp_hidden
        return (
            jnp.ones((1, C), jnp.float32),                                   # norm1.weight
            jnp.zeros((1, C), jnp.float32),                                  # norm1.bias
            0.02 * jax.random.normal(next(keys), (C, 3 * C), jnp.float32),   # qkv weight (x @ W)
            0.02 * jax.random.normal(next(keys), (1, 3 * C), jnp.float32),   # qkv bias
            0.02 * jax.random.normal(next(keys), (C, C), jnp.float32),       # proj weight
            0.02 * jax.random.normal(next(keys), (1, C), jnp.float32),       # proj bias
            jnp.ones((1, C), jnp.float32),                                   # norm3.weight
            jnp.zeros((1, C), jnp.float32),                                  # norm3.bias
            0.02 * jax.random.normal(next(keys), (C, H), jnp.float32),       # mlp.fc1 weight
            0.02 * jax.random.normal(next(keys), (1, H), jnp.float32),       # mlp.fc1 bias
            0.02 * jax.random.normal(next(keys), (H, C), jnp.float32),       # mlp.fc2 weight
            0.02 * jax.random.normal(next(keys), (1, C), jnp.float32),       # mlp.fc2 bias
        )

    block_params = [init_block_params() for _ in range(depth)]
    out_g = jnp.ones((1, embed_dim), jnp.float32)
    out_b = jnp.zeros((1, embed_dim), jnp.float32)

    # ---- pad + stack params for the fused kernel (done once, host side) ----
    padded = [pad_block_params(p, embed_dim, Cp, mlp_hidden, num_heads, head_dim, scale)
              for p in block_params]
    stacked = [jnp.asarray(np.stack([pb[k] for pb in padded], axis=0))
               for k in range(len(padded[0]))]
    og_p = jnp.asarray(_pad_row(np.asarray(out_g), Cp))
    ob_p = jnp.asarray(_pad_row(np.asarray(out_b), Cp))

    # ---- FusionNetV2.forward ----
    x0 = concat_unshuffle(x_list, policy_list, layer_tokens, pos_embed)      # [B, L, C]
    x0_p = np.zeros((B, Lp, Cp), np.float32)
    x0_p[:, :L, :embed_dim] = np.asarray(x0)
    x0_p = jnp.asarray(x0_p)

    y_full = fusionnet_forward(x0_p, stacked, og_p, ob_p,
                               num_heads=num_heads, head_dim=head_dim,
                               c_real=embed_dim, l_real=L)
    y_full = jax.block_until_ready(y_full)
    y = y_full[:, 1:L, :embed_dim]                                           # drop token 0, unpad

    # ---- pure-JAX reference check ----
    yr = x0
    for p in block_params:
        yr = ref_block(yr, p, num_heads)
    yr = _ln_ref(yr, out_g, out_b)[:, 1:]

    assert y.shape == (B, L - 1, embed_dim)
    err = float(jnp.max(jnp.abs(y - yr)))
    assert jnp.allclose(y, yr, atol=1e-4, rtol=1e-4), f"max abs diff {err}"

    print("KERNEL_OK")
</pallas_src>

<mosaic_0001>
module attributes {stable_mosaic.version = 11 : i64} {
  func.func @_fusionnet_kernel(%arg0: i32, %arg1: i32, %arg2: memref<1x16x128xf32, #tpu.memory_space<vmem>>, %arg3: memref<1x1x128xf32, #tpu.memory_space<vmem>>, %arg4: memref<1x1x128xf32, #tpu.memory_space<vmem>>, %arg5: memref<1x128x384xf32, #tpu.memory_space<vmem>>, %arg6: memref<1x1x384xf32, #tpu.memory_space<vmem>>, %arg7: memref<1x96x128xf32, #tpu.memory_space<vmem>>, %arg8: memref<1x1x128xf32, #tpu.memory_space<vmem>>, %arg9: memref<1x1x128xf32, #tpu.memory_space<vmem>>, %arg10: memref<1x1x128xf32, #tpu.memory_space<vmem>>, %arg11: memref<1x128x384xf32, #tpu.memory_space<vmem>>, %arg12: memref<1x1x384xf32, #tpu.memory_space<vmem>>, %arg13: memref<1x384x128xf32, #tpu.memory_space<vmem>>, %arg14: memref<1x1x128xf32, #tpu.memory_space<vmem>>, %arg15: memref<1x128xf32, #tpu.memory_space<vmem>>, %arg16: memref<1x128xf32, #tpu.memory_space<vmem>>, %arg17: memref<1x16x128xf32, #tpu.memory_space<vmem>>, %arg18: memref<16x128xf32, #tpu.memory_space<vmem>>) attributes {dimension_semantics = [#tpu.dimension_semantics<parallel>, #tpu.dimension_semantics<arbitrary>], iteration_bounds = array<i64: 2, 2>, scalar_prefetch = 0 : i64, scratch_operands = 1 : i64, tpu.core_type = #tpu.core_type<tc>, window_params = [{transform_indices = @transform_0, window_bounds = array<i64: 1, 16, 128>}, {transform_indices = @transform_1, window_bounds = array<i64: 1, 1, 128>}, {transform_indices = @transform_2, window_bounds = array<i64: 1, 1, 128>}, {transform_indices = @transform_3, window_bounds = array<i64: 1, 128, 384>}, {transform_indices = @transform_4, window_bounds = array<i64: 1, 1, 384>}, {transform_indices = @transform_5, window_bounds = array<i64: 1, 96, 128>}, {transform_indices = @transform_6, window_bounds = array<i64: 1, 1, 128>}, {transform_indices = @transform_7, window_bounds = array<i64: 1, 1, 128>}, {transform_indices = @transform_8, window_bounds = array<i64: 1, 1, 128>}, {transform_indices = @transform_9, window_bounds = array<i64: 1, 128, 384>}, {transform_indices = @transform_10, window_bounds = array<i64: 1, 1, 384>}, {transform_indices = @transform_11, window_bounds = array<i64: 1, 384, 128>}, {transform_indices = @transform_12, window_bounds = array<i64: 1, 1, 128>}, {pipeline_mode = #tpu.pipeline_mode<synchronous>, transform_indices = @transform_13, window_bounds = array<i64: 1, 128>}, {pipeline_mode = #tpu.pipeline_mode<synchronous>, transform_indices = @transform_14, window_bounds = array<i64: 1, 128>}, {transform_indices = @transform_15, window_bounds = array<i64: 1, 16, 128>}]} {
    %c0_i32 = arith.constant 0 : i32
    %0 = arith.cmpi eq, %arg1, %c0_i32 : i32
    %1 = arith.extui %0 : i1 to i32
    %c0_i32_0 = arith.constant 0 : i32
    %2 = arith.cmpi ne, %1, %c0_i32_0 : i32
    scf.if %2 {
      %c0_102 = arith.constant 0 : index
      %c0_103 = arith.constant 0 : index
      %c0_104 = arith.constant 0 : index
      %266 = vector.load %arg2[%c0_102, %c0_103, %c0_104] : memref<1x16x128xf32, #tpu.memory_space<vmem>>, vector<1x16x128xf32>
      %267 = vector.shape_cast %266 : vector<1x16x128xf32> to vector<16x128xf32>
      %c0_105 = arith.constant 0 : index
      %c0_106 = arith.constant 0 : index
      %268 = vector.load %arg18[%c0_105, %c0_106] : memref<16x128xf32, #tpu.memory_space<vmem>>, vector<16x128xf32>
      tpu.vector_store %arg18[%c0_105, %c0_106], %267 {strides = array<i32>} : memref<16x128xf32, #tpu.memory_space<vmem>>, vector<16x128xf32>,
    } else {
    }
    %c0 = arith.constant 0 : index
    %c0_1 = arith.constant 0 : index
    %3 = vector.load %arg18[%c0, %c0_1] : memref<16x128xf32, #tpu.memory_space<vmem>>, vector<16x128xf32>
    %4 = tpu.iota {dimensions = array<i32: 1>} : vector<1x128xi32>
    %c96_i32 = arith.constant 96 : i32
    %5 = vector.broadcast %c96_i32 : i32 to vector<1x128xi32>
    %6 = arith.cmpi slt, %4, %5 : vector<1x128xi32>
    %7 = arith.extui %6 : vector<1x128xi1> to vector<1x128xi32>
    %8 = arith.sitofp %7 : vector<1x128xi32> to vector<1x128xf32>
    %9 = tpu.iota {dimensions = array<i32: 1>} : vector<16x16xi32>
    %c9_i32 = arith.constant 9 : i32
    %10 = vector.broadcast %c9_i32 : i32 to vector<16x16xi32>
    %11 = arith.cmpi slt, %9, %10 : vector<16x16xi32>
    %cst = arith.constant 0.000000e+00 : f32
    %cst_2 = arith.constant -1.000000e+30 : f32
    %12 = vector.broadcast %cst : f32 to vector<16x16xf32>
    %13 = vector.broadcast %cst_2 : f32 to vector<16x16xf32>
    %14 = arith.select %11, %12, %13 : vector<16x16xi1>, vector<16x16xf32>
    %c0_3 = arith.constant 0 : index
    %c0_4 = arith.constant 0 : index
    %c0_5 = arith.constant 0 : index
    %15 = vector.load %arg3[%c0_3, %c0_4, %c0_5] : memref<1x1x128xf32, #tpu.memory_space<vmem>>, vector<1x1x128xf32>
    %16 = vector.shape_cast %15 : vector<1x1x128xf32> to vector<1x128xf32>
    %c0_6 = arith.constant 0 : index
    %c0_7 = arith.constant 0 : index
    %c0_8 = arith.constant 0 : index
    %17 = vector.load %arg4[%c0_6, %c0_7, %c0_8] : memref<1x1x128xf32, #tpu.memory_space<vmem>>, vector<1x1x128xf32>
    %18 = vector.shape_cast %17 : vector<1x1x128xf32> to vector<1x128xf32>
    %cst_9 = arith.constant dense<0.000000e+00> : vector<16xf32>
    %19 = vector.multi_reduction <add>, %3, %cst_9 [1] : vector<16x128xf32> to vector<16xf32>
    %20 = vector.shape_cast %19 : vector<16xf32> to vector<16x1xf32>
    %cst_10 = arith.constant 0.010416667 : f32
    %21 = vector.broadcast %cst_10 : f32 to vector<16x1xf32>
    %22 = arith.mulf %20, %21 : vector<16x1xf32>
    %23 = vector.broadcast %22 : vector<16x1xf32> to vector<16x128xf32>
    %24 = arith.subf %3, %23 : vector<16x128xf32>
    %25 = vector.broadcast %8 : vector<1x128xf32> to vector<16x128xf32>
    %26 = arith.mulf %24, %25 : vector<16x128xf32>
    %27 = arith.mulf %26, %26 : vector<16x128xf32>
    %cst_11 = arith.constant dense<0.000000e+00> : vector<16xf32>
    %28 = vector.multi_reduction <add>, %27, %cst_11 [1] : vector<16x128xf32> to vector<16xf32>
    %29 = vector.shape_cast %28 : vector<16xf32> to vector<16x1xf32>
    %cst_12 = arith.constant 0.010416667 : f32
    %30 = vector.broadcast %cst_12 : f32 to vector<16x1xf32>
    %31 = arith.mulf %29, %30 : vector<16x1xf32>
    %cst_13 = arith.constant 9.99999997E-7 : f32
    %32 = vector.broadcast %cst_13 : f32 to vector<16x1xf32>
    %33 = arith.addf %31, %32 : vector<16x1xf32>
    %34 = math.rsqrt %33 : vector<16x1xf32>
    %35 = vector.broadcast %34 : vector<16x1xf32> to vector<16x128xf32>
    %36 = arith.mulf %26, %35 : vector<16x128xf32>
    %37 = vector.broadcast %16 : vector<1x128xf32> to vector<16x128xf32>
    %38 = arith.mulf %36, %37 : vector<16x128xf32>
    %39 = vector.broadcast %18 : vector<1x128xf32> to vector<16x128xf32>
    %40 = arith.addf %38, %39 : vector<16x128xf32>
    %c0_14 = arith.constant 0 : index
    %c0_15 = arith.constant 0 : index
    %c0_16 = arith.constant 0 : index
    %41 = vector.load %arg5[%c0_14, %c0_15, %c0_16] : memref<1x128x384xf32, #tpu.memory_space<vmem>>, vector<1x128x384xf32>
    %42 = vector.shape_cast %41 : vector<1x128x384xf32> to vector<128x384xf32>
    %cst_17 = arith.constant dense<0.000000e+00> : vector<16x384xf32>
    %43 = tpu.matmul %40, %42, %cst_17 {dimension_numbers = #tpu.dot_dimension_numbers<[1], [0], [0], [1], [0, 0, 1, 1], [], []>} : vector<16x128xf32>, vector<128x384xf32>, vector<16x384xf32> -> vector<16x384xf32>
    %c0_18 = arith.constant 0 : index
    %c0_19 = arith.constant 0 : index
    %c0_20 = arith.constant 0 : index
    %44 = vector.load %arg6[%c0_18, %c0_19, %c0_20] : memref<1x1x384xf32, #tpu.memory_space<vmem>>, vector<1x1x384xf32>
    %45 = vector.shape_cast %44 : vector<1x1x384xf32> to vector<1x384xf32>
    %46 = vector.broadcast %45 : vector<1x384xf32> to vector<16x384xf32>
    %47 = arith.addf %43, %46 : vector<16x384xf32>
    %48 = vector.extract_strided_slice %47 {offsets = [0, 0], sizes = [16, 16], strides = [1, 1]} : vector<16x384xf32> to vector<16x16xf32>
    %49 = vector.extract_strided_slice %47 {offsets = [0, 128], sizes = [16, 16], strides = [1, 1]} : vector<16x384xf32> to vector<16x16xf32>
    %50 = vector.extract_strided_slice %47 {offsets = [0, 256], sizes = [16, 16], strides = [1, 1]} : vector<16x384xf32> to vector<16x16xf32>
    %cst_21 = arith.constant dense<0.000000e+00> : vector<16x16xf32>
    %51 = tpu.matmul %48, %49, %cst_21 {dimension_numbers = #tpu.dot_dimension_numbers<[1], [1], [0], [0], [0, 0, 1, 0], [], []>} : vector<16x16xf32>, vector<16x16xf32>, vector<16x16xf32> -> vector<16x16xf32>
    %52 = arith.addf %51, %14 : vector<16x16xf32>
    %cst_22 = arith.constant dense<0xFF800000> : vector<16xf32>
    %53 = vector.multi_reduction <maximumf>, %52, %cst_22 [1] : vector<16x16xf32> to vector<16xf32>
    %54 = vector.shape_cast %53 : vector<16xf32> to vector<16x1xf32>
    %55 = vector.broadcast %54 : vector<16x1xf32> to vector<16x16xf32>
    %56 = arith.subf %52, %55 : vector<16x16xf32>
    %57 = math.exp %56 : vector<16x16xf32>
    %cst_23 = arith.constant dense<0.000000e+00> : vector<16xf32>
    %58 = vector.multi_reduction <add>, %57, %cst_23 [1] : vector<16x16xf32> to vector<16xf32>
    %59 = vector.shape_cast %58 : vector<16xf32> to vector<16x1xf32>
    %60 = tpu.reciprocal %59 {approx = true} : vector<16x1xf32> -> vector<16x1xf32>
    %61 = arith.mulf %59, %60 : vector<16x1xf32>
    %cst_24 = arith.constant 2.000000e+00 : f32
    %62 = vector.broadcast %cst_24 : f32 to vector<16x1xf32>
    %63 = arith.subf %62, %61 : vector<16x1xf32>
    %64 = arith.mulf %60, %63 : vector<16x1xf32>
    %65 = vector.broadcast %64 : vector<16x1xf32> to vector<16x16xf32>
    %66 = arith.mulf %57, %65 : vector<16x16xf32>
    %cst_25 = arith.constant dense<0.000000e+00> : vector<16x16xf32>
    %67 = tpu.matmul %66, %50, %cst_25 {dimension_numbers = #tpu.dot_dimension_numbers<[1], [0], [0], [1], [0, 0, 1, 1], [], []>} : vector<16x16xf32>, vector<16x16xf32>, vector<16x16xf32> -> vector<16x16xf32>
    %68 = vector.extract_strided_slice %47 {offsets = [0, 16], sizes = [16, 16], strides = [1, 1]} : vector<16x384xf32> to vector<16x16xf32>
    %69 = vector.extract_strided_slice %47 {offsets = [0, 144], sizes = [16, 16], strides = [1, 1]} : vector<16x384xf32> to vector<16x16xf32>
    %70 = vector.extract_strided_slice %47 {offsets = [0, 272], sizes = [16, 16], strides = [1, 1]} : vector<16x384xf32> to vector<16x16xf32>
    %cst_26 = arith.constant dense<0.000000e+00> : vector<16x16xf32>
    %71 = tpu.matmul %68, %69, %cst_26 {dimension_numbers = #tpu.dot_dimension_numbers<[1], [1], [0], [0], [0, 0, 1, 0], [], []>} : vector<16x16xf32>, vector<16x16xf32>, vector<16x16xf32> -> vector<16x16xf32>
    %72 = arith.addf %71, %14 : vector<16x16xf32>
    %cst_27 = arith.constant dense<0xFF800000> : vector<16xf32>
    %73 = vector.multi_reduction <maximumf>, %72, %cst_27 [1] : vector<16x16xf32> to vector<16xf32>
    %74 = vector.shape_cast %73 : vector<16xf32> to vector<16x1xf32>
    %75 = vector.broadcast %74 : vector<16x1xf32> to vector<16x16xf32>
    %76 = arith.subf %72, %75 : vector<16x16xf32>
    %77 = math.exp %76 : vector<16x16xf32>
    %cst_28 = arith.constant dense<0.000000e+00> : vector<16xf32>
    %78 = vector.multi_reduction <add>, %77, %cst_28 [1] : vector<16x16xf32> to vector<16xf32>
    %79 = vector.shape_cast %78 : vector<16xf32> to vector<16x1xf32>
    %80 = tpu.reciprocal %79 {approx = true} : vector<16x1xf32> -> vector<16x1xf32>
    %81 = arith.mulf %79, %80 : vector<16x1xf32>
    %cst_29 = arith.constant 2.000000e+00 : f32
    %82 = vector.broadcast %cst_29 : f32 to vector<16x1xf32>
    %83 = arith.subf %82, %81 : vector<16x1xf32>
    %84 = arith.mulf %80, %83 : vector<16x1xf32>
    %85 = vector.broadcast %84 : vector<16x1xf32> to vector<16x16xf32>
    %86 = arith.mulf %77, %85 : vector<16x16xf32>
    %cst_30 = arith.constant dense<0.000000e+00> : vector<16x16xf32>
    %87 = tpu.matmul %86, %70, %cst_30 {dimension_numbers = #tpu.dot_dimension_numbers<[1], [0], [0], [1], [0, 0, 1, 1], [], []>} : vector<16x16xf32>, vector<16x16xf32>, vector<16x16xf32> -> vector<16x16xf32>
    %88 = vector.extract_strided_slice %47 {offsets = [0, 32], sizes = [16, 16], strides = [1, 1]} : vector<16x384xf32> to vector<16x16xf32>
    %89 = vector.extract_strided_slice %47 {offsets = [0, 160], sizes = [16, 16], strides = [1, 1]} : vector<16x384xf32> to vector<16x16xf32>
    %90 = vector.extract_strided_slice %47 {offsets = [0, 288], sizes = [16, 16], strides = [1, 1]} : vector<16x384xf32> to vector<16x16xf32>
    %cst_31 = arith.constant dense<0.000000e+00> : vector<16x16xf32>
    %91 = tpu.matmul %88, %89, %cst_31 {dimension_numbers = #tpu.dot_dimension_numbers<[1], [1], [0], [0], [0, 0, 1, 0], [], []>} : vector<16x16xf32>, vector<16x16xf32>, vector<16x16xf32> -> vector<16x16xf32>
    %92 = arith.addf %91, %14 : vector<16x16xf32>
    %cst_32 = arith.constant dense<0xFF800000> : vector<16xf32>
    %93 = vector.multi_reduction <maximumf>, %92, %cst_32 [1] : vector<16x16xf32> to vector<16xf32>
    %94 = vector.shape_cast %93 : vector<16xf32> to vector<16x1xf32>
    %95 = vector.broadcast %94 : vector<16x1xf32> to vector<16x16xf32>
    %96 = arith.subf %92, %95 : vector<16x16xf32>
    %97 = math.exp %96 : vector<16x16xf32>
    %cst_33 = arith.constant dense<0.000000e+00> : vector<16xf32>
    %98 = vector.multi_reduction <add>, %97, %cst_33 [1] : vector<16x16xf32> to vector<16xf32>
    %99 = vector.shape_cast %98 : vector<16xf32> to vector<16x1xf32>
    %100 = tpu.reciprocal %99 {approx = true} : vector<16x1xf32> -> vector<16x1xf32>
    %101 = arith.mulf %99, %100 : vector<16x1xf32>
    %cst_34 = arith.constant 2.000000e+00 : f32
    %102 = vector.broadcast %cst_34 : f32 to vector<16x1xf32>
    %103 = arith.subf %102, %101 : vector<16x1xf32>
    %104 = arith.mulf %100, %103 : vector<16x1xf32>
    %105 = vector.broadcast %104 : vector<16x1xf32> to vector<16x16xf32>
    %106 = arith.mulf %97, %105 : vector<16x16xf32>
    %cst_35 = arith.constant dense<0.000000e+00> : vector<16x16xf32>
    %107 = tpu.matmul %106, %90, %cst_35 {dimension_numbers = #tpu.dot_dimension_numbers<[1], [0], [0], [1], [0, 0, 1, 1], [], []>} : vector<16x16xf32>, vector<16x16xf32>, vector<16x16xf32> -> vector<16x16xf32>
    %108 = vector.extract_strided_slice %47 {offsets = [0, 48], sizes = [16, 16], strides = [1, 1]} : vector<16x384xf32> to vector<16x16xf32>
    %109 = vector.extract_strided_slice %47 {offsets = [0, 176], sizes = [16, 16], strides = [1, 1]} : vector<16x384xf32> to vector<16x16xf32>
    %110 = vector.extract_strided_slice %47 {offsets = [0, 304], sizes = [16, 16], strides = [1, 1]} : vector<16x384xf32> to vector<16x16xf32>
    %cst_36 = arith.constant dense<0.000000e+00> : vector<16x16xf32>
    %111 = tpu.matmul %108, %109, %cst_36 {dimension_numbers = #tpu.dot_dimension_numbers<[1], [1], [0], [0], [0, 0, 1, 0], [], []>} : vector<16x16xf32>, vector<16x16xf32>, vector<16x16xf32> -> vector<16x16xf32>
    %112 = arith.addf %111, %14 : vector<16x16xf32>
    %cst_37 = arith.constant dense<0xFF800000> : vector<16xf32>
    %113 = vector.multi_reduction <maximumf>, %112, %cst_37 [1] : vector<16x16xf32> to vector<16xf32>
    %114 = vector.shape_cast %113 : vector<16xf32> to vector<16x1xf32>
    %115 = vector.broadcast %114 : vector<16x1xf32> to vector<16x16xf32>
    %116 = arith.subf %112, %115 : vector<16x16xf32>
    %117 = math.exp %116 : vector<16x16xf32>
    %cst_38 = arith.constant dense<0.000000e+00> : vector<16xf32>
    %118 = vector.multi_reduction <add>, %117, %cst_38 [1] : vector<16x16xf32> to vector<16xf32>
    %119 = vector.shape_cast %118 : vector<16xf32> to vector<16x1xf32>
    %120 = tpu.reciprocal %119 {approx = true} : vector<16x1xf32> -> vector<16x1xf32>
    %121 = arith.mulf %119, %120 : vector<16x1xf32>
    %cst_39 = arith.constant 2.000000e+00 : f32
    %122 = vector.broadcast %cst_39 : f32 to vector<16x1xf32>
    %123 = arith.subf %122, %121 : vector<16x1xf32>
    %124 = arith.mulf %120, %123 : vector<16x1xf32>
    %125 = vector.broadcast %124 : vector<16x1xf32> to vector<16x16xf32>
    %126 = arith.mulf %117, %125 : vector<16x16xf32>
    %cst_40 = arith.constant dense<0.000000e+00> : vector<16x16xf32>
    %127 = tpu.matmul %126, %110, %cst_40 {dimension_numbers = #tpu.dot_dimension_numbers<[1], [0], [0], [1], [0, 0, 1, 1], [], []>} : vector<16x16xf32>, vector<16x16xf32>, vector<16x16xf32> -> vector<16x16xf32>
    %128 = vector.extract_strided_slice %47 {offsets = [0, 64], sizes = [16, 16], strides = [1, 1]} : vector<16x384xf32> to vector<16x16xf32>
    %129 = vector.extract_strided_slice %47 {offsets = [0, 192], sizes = [16, 16], strides = [1, 1]} : vector<16x384xf32> to vector<16x16xf32>
    %130 = vector.extract_strided_slice %47 {offsets = [0, 320], sizes = [16, 16], strides = [1, 1]} : vector<16x384xf32> to vector<16x16xf32>
    %cst_41 = arith.constant dense<0.000000e+00> : vector<16x16xf32>
    %131 = tpu.matmul %128, %129, %cst_41 {dimension_numbers = #tpu.dot_dimension_numbers<[1], [1], [0], [0], [0, 0, 1, 0], [], []>} : vector<16x16xf32>, vector<16x16xf32>, vector<16x16xf32> -> vector<16x16xf32>
    %132 = arith.addf %131, %14 : vector<16x16xf32>
    %cst_42 = arith.constant dense<0xFF800000> : vector<16xf32>
    %133 = vector.multi_reduction <maximumf>, %132, %cst_42 [1] : vector<16x16xf32> to vector<16xf32>
    %134 = vector.shape_cast %133 : vector<16xf32> to vector<16x1xf32>
    %135 = vector.broadcast %134 : vector<16x1xf32> to vector<16x16xf32>
    %136 = arith.subf %132, %135 : vector<16x16xf32>
    %137 = math.exp %136 : vector<16x16xf32>
    %cst_43 = arith.constant dense<0.000000e+00> : vector<16xf32>
    %138 = vector.multi_reduction <add>, %137, %cst_43 [1] : vector<16x16xf32> to vector<16xf32>
    %139 = vector.shape_cast %138 : vector<16xf32> to vector<16x1xf32>
    %140 = tpu.reciprocal %139 {approx = true} : vector<16x1xf32> -> vector<16x1xf32>
    %141 = arith.mulf %139, %140 : vector<16x1xf32>
    %cst_44 = arith.constant 2.000000e+00 : f32
    %142 = vector.broadcast %cst_44 : f32 to vector<16x1xf32>
    %143 = arith.subf %142, %141 : vector<16x1xf32>
    %144 = arith.mulf %140, %143 : vector<16x1xf32>
    %145 = vector.broadcast %144 : vector<16x1xf32> to vector<16x16xf32>
    %146 = arith.mulf %137, %145 : vector<16x16xf32>
    %cst_45 = arith.constant dense<0.000000e+00> : vector<16x16xf32>
    %147 = tpu.matmul %146, %130, %cst_45 {dimension_numbers = #tpu.dot_dimension_numbers<[1], [0], [0], [1], [0, 0, 1, 1], [], []>} : vector<16x16xf32>, vector<16x16xf32>, vector<16x16xf32> -> vector<16x16xf32>
    %148 = vector.extract_strided_slice %47 {offsets = [0, 80], sizes = [16, 16], strides = [1, 1]} : vector<16x384xf32> to vector<16x16xf32>
    %149 = vector.extract_strided_slice %47 {offsets = [0, 208], sizes = [16, 16], strides = [1, 1]} : vector<16x384xf32> to vector<16x16xf32>
    %150 = vector.extract_strided_slice %47 {offsets = [0, 336], sizes = [16, 16], strides = [1, 1]} : vector<16x384xf32> to vector<16x16xf32>
    %cst_46 = arith.constant dense<0.000000e+00> : vector<16x16xf32>
    %151 = tpu.matmul %148, %149, %cst_46 {dimension_numbers = #tpu.dot_dimension_numbers<[1], [1], [0], [0], [0, 0, 1, 0], [], []>} : vector<16x16xf32>, vector<16x16xf32>, vector<16x16xf32> -> vector<16x16xf32>
    %152 = arith.addf %151, %14 : vector<16x16xf32>
    %cst_47 = arith.constant dense<0xFF800000> : vector<16xf32>
    %153 = vector.multi_reduction <maximumf>, %152, %cst_47 [1] : vector<16x16xf32> to vector<16xf32>
    %154 = vector.shape_cast %153 : vector<16xf32> to vector<16x1xf32>
    %155 = vector.broadcast %154 : vector<16x1xf32> to vector<16x16xf32>
    %156 = arith.subf %152, %155 : vector<16x16xf32>
    %157 = math.exp %156 : vector<16x16xf32>
    %cst_48 = arith.constant dense<0.000000e+00> : vector<16xf32>
    %158 = vector.multi_reduction <add>, %157, %cst_48 [1] : vector<16x16xf32> to vector<16xf32>
    %159 = vector.shape_cast %158 : vector<16xf32> to vector<16x1xf32>
    %160 = tpu.reciprocal %159 {approx = true} : vector<16x1xf32> -> vector<16x1xf32>
    %161 = arith.mulf %159, %160 : vector<16x1xf32>
    %cst_49 = arith.constant 2.000000e+00 : f32
    %162 = vector.broadcast %cst_49 : f32 to vector<16x1xf32>
    %163 = arith.subf %162, %161 : vector<16x1xf32>
    %164 = arith.mulf %160, %163 : vector<16x1xf32>
    %165 = vector.broadcast %164 : vector<16x1xf32> to vector<16x16xf32>
    %166 = arith.mulf %157, %165 : vector<16x16xf32>
    %cst_50 = arith.constant dense<0.000000e+00> : vector<16x16xf32>
    %167 = tpu.matmul %166, %150, %cst_50 {dimension_numbers = #tpu.dot_dimension_numbers<[1], [0], [0], [1], [0, 0, 1, 1], [], []>} : vector<16x16xf32>, vector<16x16xf32>, vector<16x16xf32> -> vector<16x16xf32>
    %168 = tpu.concatenate %67, %87, %107, %127, %147, %167 in 1 : vector<16x16xf32>, vector<16x16xf32>, vector<16x16xf32>, vector<16x16xf32>, vector<16x16xf32>, vector<16x16xf32> -> vector<16x96xf32>
    %c0_51 = arith.constant 0 : index
    %c0_52 = arith.constant 0 : index
    %c0_53 = arith.constant 0 : index
    %169 = vector.load %arg7[%c0_51, %c0_52, %c0_53] : memref<1x96x128xf32, #tpu.memory_space<vmem>>, vector<1x96x128xf32>
    %170 = vector.shape_cast %169 : vector<1x96x128xf32> to vector<96x128xf32>
    %cst_54 = arith.constant dense<0.000000e+00> : vector<16x128xf32>
    %171 = tpu.matmul %168, %170, %cst_54 {dimension_numbers = #tpu.dot_dimension_numbers<[1], [0], [0], [1], [0, 0, 1, 1], [], []>} : vector<16x96xf32>, vector<96x128xf32>, vector<16x128xf32> -> vector<16x128xf32>
    %172 = arith.addf %3, %171 : vector<16x128xf32>
    %c0_55 = arith.constant 0 : index
    %c0_56 = arith.constant 0 : index
    %c0_57 = arith.constant 0 : index
    %173 = vector.load %arg8[%c0_55, %c0_56, %c0_57] : memref<1x1x128xf32, #tpu.memory_space<vmem>>, vector<1x1x128xf32>
    %174 = vector.shape_cast %173 : vector<1x1x128xf32> to vector<1x128xf32>
    %175 = vector.broadcast %174 : vector<1x128xf32> to vector<16x128xf32>
    %176 = arith.addf %172, %175 : vector<16x128xf32>
    %c0_58 = arith.constant 0 : index
    %c0_59 = arith.constant 0 : index
    %c0_60 = arith.constant 0 : index
    %177 = vector.load %arg9[%c0_58, %c0_59, %c0_60] : memref<1x1x128xf32, #tpu.memory_space<vmem>>, vector<1x1x128xf32>
    %178 = vector.shape_cast %177 : vector<1x1x128xf32> to vector<1x128xf32>
    %c0_61 = arith.constant 0 : index
    %c0_62 = arith.constant 0 : index
    %c0_63 = arith.constant 0 : index
    %179 = vector.load %arg10[%c0_61, %c0_62, %c0_63] : memref<1x1x128xf32, #tpu.memory_space<vmem>>, vector<1x1x128xf32>
    %180 = vector.shape_cast %179 : vector<1x1x128xf32> to vector<1x128xf32>
    %cst_64 = arith.constant dense<0.000000e+00> : vector<16xf32>
    %181 = vector.multi_reduction <add>, %176, %cst_64 [1] : vector<16x128xf32> to vector<16xf32>
    %182 = vector.shape_cast %181 : vector<16xf32> to vector<16x1xf32>
    %cst_65 = arith.constant 0.010416667 : f32
    %183 = vector.broadcast %cst_65 : f32 to vector<16x1xf32>
    %184 = arith.mulf %182, %183 : vector<16x1xf32>
    %185 = vector.broadcast %184 : vector<16x1xf32> to vector<16x128xf32>
    %186 = arith.subf %176, %185 : vector<16x128xf32>
    %187 = vector.broadcast %8 : vector<1x128xf32> to vector<16x128xf32>
    %188 = arith.mulf %186, %187 : vector<16x128xf32>
    %189 = arith.mulf %188, %188 : vector<16x128xf32>
    %cst_66 = arith.constant dense<0.000000e+00> : vector<16xf32>
    %190 = vector.multi_reduction <add>, %189, %cst_66 [1] : vector<16x128xf32> to vector<16xf32>
    %191 = vector.shape_cast %190 : vector<16xf32> to vector<16x1xf32>
    %cst_67 = arith.constant 0.010416667 : f32
    %192 = vector.broadcast %cst_67 : f32 to vector<16x1xf32>
    %193 = arith.mulf %191, %192 : vector<16x1xf32>
    %cst_68 = arith.constant 9.99999997E-7 : f32
    %194 = vector.broadcast %cst_68 : f32 to vector<16x1xf32>
    %195 = arith.addf %193, %194 : vector<16x1xf32>
    %196 = math.rsqrt %195 : vector<16x1xf32>
    %197 = vector.broadcast %196 : vector<16x1xf32> to vector<16x128xf32>
    %198 = arith.mulf %188, %197 : vector<16x128xf32>
    %199 = vector.broadcast %178 : vector<1x128xf32> to vector<16x128xf32>
    %200 = arith.mulf %198, %199 : vector<16x128xf32>
    %201 = vector.broadcast %180 : vector<1x128xf32> to vector<16x128xf32>
    %202 = arith.addf %200, %201 : vector<16x128xf32>
    %c0_69 = arith.constant 0 : index
    %c0_70 = arith.constant 0 : index
    %c0_71 = arith.constant 0 : index
    %203 = vector.load %arg11[%c0_69, %c0_70, %c0_71] : memref<1x128x384xf32, #tpu.memory_space<vmem>>, vector<1x128x384xf32>
    %204 = vector.shape_cast %203 : vector<1x128x384xf32> to vector<128x384xf32>
    %cst_72 = arith.constant dense<0.000000e+00> : vector<16x384xf32>
    %205 = tpu.matmul %202, %204, %cst_72 {dimension_numbers = #tpu.dot_dimension_numbers<[1], [0], [0], [1], [0, 0, 1, 1], [], []>} : vector<16x128xf32>, vector<128x384xf32>, vector<16x384xf32> -> vector<16x384xf32>
    %c0_73 = arith.constant 0 : index
    %c0_74 = arith.constant 0 : index
    %c0_75 = arith.constant 0 : index
    %206 = vector.load %arg12[%c0_73, %c0_74, %c0_75] : memref<1x1x384xf32, #tpu.memory_space<vmem>>, vector<1x1x384xf32>
    %207 = vector.shape_cast %206 : vector<1x1x384xf32> to vector<1x384xf32>
    %208 = vector.broadcast %207 : vector<1x384xf32> to vector<16x384xf32>
    %209 = arith.addf %205, %208 : vector<16x384xf32>
    %cst_76 = arith.constant 5.000000e-01 : f32
    %210 = vector.broadcast %cst_76 : f32 to vector<16x384xf32>
    %211 = arith.mulf %210, %209 : vector<16x384xf32>
    %cst_77 = arith.constant 0.707106769 : f32
    %212 = vector.broadcast %cst_77 : f32 to vector<16x384xf32>
    %213 = arith.mulf %209, %212 : vector<16x384xf32>
    %cst_78 = arith.constant 0.000000e+00 : f32
    %214 = vector.broadcast %cst_78 : f32 to vector<16x384xf32>
    %215 = arith.cmpf oge, %213, %214 : vector<16x384xf32>
    %cst_79 = arith.constant 1.000000e+00 : f32
    %cst_80 = arith.constant -1.000000e+00 : f32
    %216 = vector.broadcast %cst_79 : f32 to vector<16x384xf32>
    %217 = vector.broadcast %cst_80 : f32 to vector<16x384xf32>
    %218 = arith.select %215, %216, %217 : vector<16x384xi1>, vector<16x384xf32>
    %219 = math.absf %213 : vector<16x384xf32>
    %cst_81 = arith.constant 0.327591091 : f32
    %220 = vector.broadcast %cst_81 : f32 to vector<16x384xf32>
    %221 = arith.mulf %220, %219 : vector<16x384xf32>
    %cst_82 = arith.constant 1.000000e+00 : f32
    %222 = vector.broadcast %cst_82 : f32 to vector<16x384xf32>
    %223 = arith.addf %222, %221 : vector<16x384xf32>
    %224 = tpu.reciprocal %223 {approx = true} : vector<16x384xf32> -> vector<16x384xf32>
    %225 = arith.mulf %223, %224 : vector<16x384xf32>
    %cst_83 = arith.constant 2.000000e+00 : f32
    %226 = vector.broadcast %cst_83 : f32 to vector<16x384xf32>
    %227 = arith.subf %226, %225 : vector<16x384xf32>
    %228 = arith.mulf %224, %227 : vector<16x384xf32>
    %cst_84 = arith.constant 1.06140542 : f32
    %229 = vector.broadcast %cst_84 : f32 to vector<16x384xf32>
    %230 = arith.mulf %229, %228 : vector<16x384xf32>
    %cst_85 = arith.constant -1.45315206 : f32
    %231 = vector.broadcast %cst_85 : f32 to vector<16x384xf32>
    %232 = arith.addf %230, %231 : vector<16x384xf32>
    %233 = arith.mulf %232, %228 : vector<16x384xf32>
    %cst_86 = arith.constant 1.42141378 : f32
    %234 = vector.broadcast %cst_86 : f32 to vector<16x384xf32>
    %235 = arith.addf %233, %234 : vector<16x384xf32>
    %236 = arith.mulf %235, %228 : vector<16x384xf32>
    %cst_87 = arith.constant -0.284496725 : f32
    %237 = vector.broadcast %cst_87 : f32 to vector<16x384xf32>
    %238 = arith.addf %236, %237 : vector<16x384xf32>
    %239 = arith.mulf %238, %228 : vector<16x384xf32>
    %cst_88 = arith.constant 0.254829586 : f32
    %240 = vector.broadcast %cst_88 : f32 to vector<16x384xf32>
    %241 = arith.addf %239, %240 : vector<16x384xf32>
    %242 = arith.mulf %241, %228 : vector<16x384xf32>
    %cst_89 = arith.constant 0.000000e+00 : f32
    %243 = vector.broadcast %cst_89 : f32 to vector<16x384xf32>
    %244 = arith.subf %243, %219 : vector<16x384xf32>
    %245 = arith.mulf %244, %219 : vector<16x384xf32>
    %246 = math.exp %245 : vector<16x384xf32>
    %247 = arith.mulf %242, %246 : vector<16x384xf32>
    %cst_90 = arith.constant 1.000000e+00 : f32
    %248 = vector.broadcast %cst_90 : f32 to vector<16x384xf32>
    %249 = arith.subf %248, %247 : vector<16x384xf32>
    %250 = arith.mulf %218, %249 : vector<16x384xf32>
    %cst_91 = arith.constant 1.000000e+00 : f32
    %251 = vector.broadcast %cst_91 : f32 to vector<16x384xf32>
    %252 = arith.addf %251, %250 : vector<16x384xf32>
    %253 = arith.mulf %211, %252 : vector<16x384xf32>
    %c0_92 = arith.constant 0 : index
    %c0_93 = arith.constant 0 : index
    %c0_94 = arith.constant 0 : index
    %254 = vector.load %arg13[%c0_92, %c0_93, %c0_94] : memref<1x384x128xf32, #tpu.memory_space<vmem>>, vector<1x384x128xf32>
    %255 = vector.shape_cast %254 : vector<1x384x128xf32> to vector<384x128xf32>
    %cst_95 = arith.constant dense<0.000000e+00> : vector<16x128xf32>
    %256 = tpu.matmul %253, %255, %cst_95 {dimension_numbers = #tpu.dot_dimension_numbers<[1], [0], [0], [1], [0, 0, 1, 1], [], []>} : vector<16x384xf32>, vector<384x128xf32>, vector<16x128xf32> -> vector<16x128xf32>
    %257 = arith.addf %176, %256 : vector<16x128xf32>
    %c0_96 = arith.constant 0 : index
    %c0_97 = arith.constant 0 : index
    %c0_98 = arith.constant 0 : index
    %258 = vector.load %arg14[%c0_96, %c0_97, %c0_98] : memref<1x1x128xf32, #tpu.memory_space<vmem>>, vector<1x1x128xf32>
    %259 = vector.shape_cast %258 : vector<1x1x128xf32> to vector<1x128xf32>
    %260 = vector.broadcast %259 : vector<1x128xf32> to vector<16x128xf32>
    %261 = arith.addf %257, %260 : vector<16x128xf32>
    %c0_99 = arith.constant 0 : index
    %c0_100 = arith.constant 0 : index
    %262 = vector.load %arg18[%c0_99, %c0_100] : memref<16x128xf32, #tpu.memory_space<vmem>>, vector<16x128xf32>
    tpu.vector_store %arg18[%c0_99, %c0_100], %261 {strides = array<i32>} : memref<16x128xf32, #tpu.memory_space<vmem>>, vector<16x128xf32>,
    %c1_i32 = arith.constant 1 : i32
    %263 = arith.cmpi eq, %arg1, %c1_i32 : i32
    %264 = arith.extui %263 : i1 to i32
    %c0_i32_101 = arith.constant 0 : i32
    %265 = arith.cmpi ne, %264, %c0_i32_101 : i32
    scf.if %265 {
      %c0_102 = arith.constant 0 : index
      %c0_103 = arith.constant 0 : index
      %266 = vector.load %arg15[%c0_102, %c0_103] : memref<1x128xf32, #tpu.memory_space<vmem>>, vector<1x128xf32>
      %c0_104 = arith.constant 0 : index
      %c0_105 = arith.constant 0 : index
      %267 = vector.load %arg16[%c0_104, %c0_105] : memref<1x128xf32, #tpu.memory_space<vmem>>, vector<1x128xf32>
      %cst_106 = arith.constant dense<0.000000e+00> : vector<16xf32>
      %268 = vector.multi_reduction <add>, %261, %cst_106 [1] : vector<16x128xf32> to vector<16xf32>
      %269 = vector.shape_cast %268 : vector<16xf32> to vector<16x1xf32>
      %cst_107 = arith.constant 0.010416667 : f32
      %270 = vector.broadcast %cst_107 : f32 to vector<16x1xf32>
      %271 = arith.mulf %269, %270 : vector<16x1xf32>
      %272 = vector.broadcast %271 : vector<16x1xf32> to vector<16x128xf32>
      %273 = arith.subf %261, %272 : vector<16x128xf32>
      %274 = vector.broadcast %8 : vector<1x128xf32> to vector<16x128xf32>
      %275 = arith.mulf %273, %274 : vector<16x128xf32>
      %276 = arith.mulf %275, %275 : vector<16x128xf32>
      %cst_108 = arith.constant dense<0.000000e+00> : vector<16xf32>
      %277 = vector.multi_reduction <add>, %276, %cst_108 [1] : vector<16x128xf32> to vector<16xf32>
      %278 = vector.shape_cast %277 : vector<16xf32> to vector<16x1xf32>
      %cst_109 = arith.constant 0.010416667 : f32
      %279 = vector.broadcast %cst_109 : f32 to vector<16x1xf32>
      %280 = arith.mulf %278, %279 : vector<16x1xf32>
      %cst_110 = arith.constant 9.99999997E-7 : f32
      %281 = vector.broadcast %cst_110 : f32 to vector<16x1xf32>
      %282 = arith.addf %280, %281 : vector<16x1xf32>
      %283 = math.rsqrt %282 : vector<16x1xf32>
      %284 = vector.broadcast %283 : vector<16x1xf32> to vector<16x128xf32>
      %285 = arith.mulf %275, %284 : vector<16x128xf32>
      %286 = vector.broadcast %266 : vector<1x128xf32> to vector<16x128xf32>
      %287 = arith.mulf %285, %286 : vector<16x128xf32>
      %288 = vector.broadcast %267 : vector<1x128xf32> to vector<16x128xf32>
      %289 = arith.addf %287, %288 : vector<16x128xf32>
      %c0_111 = arith.constant 0 : index
      %c0_112 = arith.constant 0 : index
      %c0_113 = arith.constant 0 : index
      %290 = vector.load %arg17[%c0_111, %c0_112, %c0_113] : memref<1x16x128xf32, #tpu.memory_space<vmem>>, vector<1x16x128xf32>
      %291 = vector.shape_cast %290 : vector<1x16x128xf32> to vector<16x128xf32>
      %292 = vector.shape_cast %289 : vector<16x128xf32> to vector<1x16x128xf32>
      tpu.vector_store %arg17[%c0_111, %c0_112, %c0_113], %292 {strides = array<i32>} : memref<1x16x128xf32, #tpu.memory_space<vmem>>, vector<1x16x128xf32>,
    } else {
    }
    return
  }
  func.func @transform_0(%arg0: i32, %arg1: i32) -> (i32, i32, i32) {
    %c0_i32 = arith.constant 0 : i32
    %c0_i32_0 = arith.constant 0 : i32
    %c0_i32_1 = arith.constant 0 : i32
    return %arg0, %c0_i32, %c0_i32_0 : i32, i32, i32
  }
  func.func @transform_1(%arg0: i32, %arg1: i32) -> (i32, i32, i32) {
    %c0_i32 = arith.constant 0 : i32
    %c0_i32_0 = arith.constant 0 : i32
    %c0_i32_1 = arith.constant 0 : i32
    return %arg1, %c0_i32, %c0_i32_0 : i32, i32, i32
  }
  func.func @transform_2(%arg0: i32, %arg1: i32) -> (i32, i32, i32) {
    %c0_i32 = arith.constant 0 : i32
    %c0_i32_0 = arith.constant 0 : i32
    %c0_i32_1 = arith.constant 0 : i32
    return %arg1, %c0_i32, %c0_i32_0 : i32, i32, i32
  }
  func.func @transform_3(%arg0: i32, %arg1: i32) -> (i32, i32, i32) {
    %c0_i32 = arith.constant 0 : i32
    %c0_i32_0 = arith.constant 0 : i32
    %c0_i32_1 = arith.constant 0 : i32
    return %arg1, %c0_i32, %c0_i32_0 : i32, i32, i32
  }
  func.func @transform_4(%arg0: i32, %arg1: i32) -> (i32, i32, i32) {
    %c0_i32 = arith.constant 0 : i32
    %c0_i32_0 = arith.constant 0 : i32
    %c0_i32_1 = arith.constant 0 : i32
    return %arg1, %c0_i32, %c0_i32_0 : i32, i32, i32
  }
  func.func @transform_5(%arg0: i32, %arg1: i32) -> (i32, i32, i32) {
    %c0_i32 = arith.constant 0 : i32
    %c0_i32_0 = arith.constant 0 : i32
    %c0_i32_1 = arith.constant 0 : i32
    return %arg1, %c0_i32, %c0_i32_0 : i32, i32, i32
  }
  func.func @transform_6(%arg0: i32, %arg1: i32) -> (i32, i32, i32) {
    %c0_i32 = arith.constant 0 : i32
    %c0_i32_0 = arith.constant 0 : i32
    %c0_i32_1 = arith.constant 0 : i32
    return %arg1, %c0_i32, %c0_i32_0 : i32, i32, i32
  }
  func.func @transform_7(%arg0: i32, %arg1: i32) -> (i32, i32, i32) {
    %c0_i32 = arith.constant 0 : i32
    %c0_i32_0 = arith.constant 0 : i32
    %c0_i32_1 = arith.constant 0 : i32
    return %arg1, %c0_i32, %c0_i32_0 : i32, i32, i32
  }
  func.func @transform_8(%arg0: i32, %arg1: i32) -> (i32, i32, i32) {
    %c0_i32 = arith.constant 0 : i32
    %c0_i32_0 = arith.constant 0 : i32
    %c0_i32_1 = arith.constant 0 : i32
    return %arg1, %c0_i32, %c0_i32_0 : i32, i32, i32
  }
  func.func @transform_9(%arg0: i32, %arg1: i32) -> (i32, i32, i32) {
    %c0_i32 = arith.constant 0 : i32
    %c0_i32_0 = arith.constant 0 : i32
    %c0_i32_1 = arith.constant 0 : i32
    return %arg1, %c0_i32, %c0_i32_0 : i32, i32, i32
  }
  func.func @transform_10(%arg0: i32, %arg1: i32) -> (i32, i32, i32) {
    %c0_i32 = arith.constant 0 : i32
    %c0_i32_0 = arith.constant 0 : i32
    %c0_i32_1 = arith.constant 0 : i32
    return %arg1, %c0_i32, %c0_i32_0 : i32, i32, i32
  }
  func.func @transform_11(%arg0: i32, %arg1: i32) -> (i32, i32, i32) {
    %c0_i32 = arith.constant 0 : i32
    %c0_i32_0 = arith.constant 0 : i32
    %c0_i32_1 = arith.constant 0 : i32
    return %arg1, %c0_i32, %c0_i32_0 : i32, i32, i32
  }
  func.func @transform_12(%arg0: i32, %arg1: i32) -> (i32, i32, i32) {
    %c0_i32 = arith.constant 0 : i32
    %c0_i32_0 = arith.constant 0 : i32
    %c0_i32_1 = arith.constant 0 : i32
    return %arg1, %c0_i32, %c0_i32_0 : i32, i32, i32
  }
  func.func @transform_13(%arg0: i32, %arg1: i32) -> (i32, i32) {
    %c0_i32 = arith.constant 0 : i32
    %c0_i32_0 = arith.constant 0 : i32
    %c0_i32_1 = arith.constant 0 : i32
    return %c0_i32, %c0_i32_0 : i32, i32
  }
  func.func @transform_14(%arg0: i32, %arg1: i32) -> (i32, i32) {
    %c0_i32 = arith.constant 0 : i32
    %c0_i32_0 = arith.constant 0 : i32
    %c0_i32_1 = arith.constant 0 : i32
    return %c0_i32, %c0_i32_0 : i32, i32
  }
  func.func @transform_15(%arg0: i32, %arg1: i32) -> (i32, i32, i32) {
    %c0_i32 = arith.constant 0 : i32
    %c0_i32_0 = arith.constant 0 : i32
    %c0_i32_1 = arith.constant 0 : i32
    return %arg0, %c0_i32, %c0_i32_0 : i32, i32, i32
  }
}

</mosaic_0001>

<llo_original>
// kernel: tpu_custom_call.1
$region0: #{tpu_custom_call.1}
  #allocation0 [shape = 'u32[]', space=smem, size = 0x4, offset = 0x4, fixed_abs, tag = 'smem constant byte address 0x4 - core index']
  #allocation1 [shape = 'u32[144,128]{1,0:T(1,128)}', space=vmem, size = 0x12000, scoped, tag = 'internal scratch']
  #allocation2 [shape = 'f32[16,128]{1,0:T(8,128)}', space=vmem, size = 0x2000, scoped, tag = 'scratch operand']
  %s0 = inlined_call_operand.hbm [shape: f32[2,16,128], index: 0, kind: input, shape index: {}]
  %s1 = inlined_call_operand.vmem [shape: f32[2,1,128], index: 1, kind: input, shape index: {}]
  %s2 = inlined_call_operand.hbm [shape: f32[2,1,128], index: 2, kind: input, shape index: {}]
  %s3 = inlined_call_operand.hbm [shape: f32[2,128,384], index: 3, kind: input, shape index: {}]
  %s4 = inlined_call_operand.vmem [shape: f32[2,1,384], index: 4, kind: input, shape index: {}]
  %s5 = inlined_call_operand.hbm [shape: f32[2,96,128], index: 5, kind: input, shape index: {}]
  %s6 = inlined_call_operand.vmem [shape: f32[2,1,128], index: 6, kind: input, shape index: {}]
  %s7 = inlined_call_operand.vmem [shape: f32[2,1,128], index: 7, kind: input, shape index: {}]
  %s8 = inlined_call_operand.vmem [shape: f32[2,1,128], index: 8, kind: input, shape index: {}]
  %s9 = inlined_call_operand.hbm [shape: f32[2,128,384], index: 9, kind: input, shape index: {}]
  %s10 = inlined_call_operand.vmem [shape: f32[2,1,384], index: 10, kind: input, shape index: {}]
  %s11 = inlined_call_operand.hbm [shape: f32[2,384,128], index: 11, kind: input, shape index: {}]
  %s12 = inlined_call_operand.vmem [shape: f32[2,1,128], index: 12, kind: input, shape index: {}]
  %s13 = inlined_call_operand.vmem [shape: f32[1,128], index: 13, kind: input, shape index: {}]
  %s14 = inlined_call_operand.vmem [shape: f32[1,128], index: 14, kind: input, shape index: {}]
  %s15 = inlined_call_operand.hbm [shape: f32[2,16,128], index: 15, kind: output, shape index: {}]
  %s16 = sld [smem:[#allocation0]]
  $region125: #{tpu_custom_call.1} parent=0
    _
  %s18 = ssub.s32 1, %s16
  %s19 = scalar_select 0, %s18, %s16
  $region1: #{tpu_custom_call.1} parent=0
    #allocation3 [shape = 'u8[16384]{0}', space=vmem, size = 0x4000, scoped, tag = 'input window, operand 0']
    #allocation4 [shape = 's32[2]{0}', space=sflag, size = 0x8, scoped, tag = 'scoped memory for tpu_custom_call.1']
    #allocation5 [shape = 's32[2]{0}', space=sflag, size = 0x8, scoped, tag = 'scoped memory for tpu_custom_call.1']
    #allocation6 [shape = 'u8[1024]{0}', space=vmem, size = 0x400, scoped, tag = 'input window, operand 2']
    #allocation7 [shape = 's32[2]{0}', space=sflag, size = 0x8, scoped, tag = 'scoped memory for tpu_custom_call.1']
    #allocation8 [shape = 'u8[393216]{0}', space=vmem, size = 0x60000, scoped, tag = 'input window, operand 3']
    #allocation9 [shape = 'u8[98304]{0}', space=vmem, size = 0x18000, scoped, tag = 'input window, operand 5']
    #allocation10 [shape = 's32[2]{0}', space=sflag, size = 0x8, scoped, tag = 'scoped memory for tpu_custom_call.1']
    #allocation11 [shape = 'u8[393216]{0}', space=vmem, size = 0x60000, scoped, tag = 'input window, operand 9']
    #allocation12 [shape = 'u8[393216]{0}', space=vmem, size = 0x60000, scoped, tag = 'input window, operand 11']
    #allocation13 [shape = 's32[2]{0}', space=sflag, size = 0x8, scoped, tag = 'scoped memory for tpu_custom_call.1']
    #allocation14 [shape = 'u8[16384]{0}', space=vmem, size = 0x4000, scoped, tag = 'output window, operand 0']
    %20 = vsyncpa [#allocation4], 0
    %s21 = scalar_lea.sflag [#allocation4], 1
    %22 = vsyncpa %s21, 0
    %23 = vsyncpa [#allocation7], 0
    %s24 = scalar_lea.sflag [#allocation7], 1
    %25 = vsyncpa %s24, 0
    %26 = vsyncpa [#allocation10], 0
    %s27 = scalar_lea.sflag [#allocation10], 1
    %28 = vsyncpa %s27, 0
    %29 = vsyncpa [#allocation13], 0
    %s30 = scalar_lea.sflag [#allocation13], 1
    %31 = vsyncpa %s30, 0
    %32 = vsyncpa [#allocation5], 0
    %s33 = scalar_lea.sflag [#allocation5], 1
    %34 = vsyncpa %s33, 0
    loop: start=0, step=1, limit=6
    $region2: #{tpu_custom_call.1} parent=1 // loop_pre_header
      _
    $region3: #{tpu_custom_call.1} parent=1 // loop_header
      %s36 = sphi 0, %s40
      %p37 = scmp.ge.s32.totalorder %s36, 6
      %s43 = sphi 0, %s55
      %s44 = sphi 0, %s51
      %s45 = sphi 0, %s43
      %s46 = sphi 0, %s44
      %s47 = sphi 0, %s45
      %s48 = sphi 0, %s46
      %s58 = sphi 0, %s60
      %s61 = sphi 0, %s58
      %s62 = sphi 0, %s61
      %s78 = sphi 0, %s62
      %s84 = sphi 0, %s86
      %s87 = sphi 0, %s84
      %s88 = sphi 0, %s87
      %s104 = sphi 0, %s88
      %s110 = sphi 0, %s112
      %s113 = sphi 0, %s110
      %s114 = sphi 0, %s113
      %s130 = sphi 0, %s114
      %s136 = sphi 0, %s138
      %s139 = sphi 0, %s136
      %s140 = sphi 0, %s139
      %s156 = sphi 0, %s140
      %s162 = sphi 0, %s164
      %s165 = sphi 0, %s162
      %s166 = sphi 0, %s165
      %s182 = sphi 0, %s166
      %s188 = sphi 0, %s190
      %s191 = sphi 0, %s188
      %s192 = sphi 0, %s191
      %s208 = sphi 0, %s192
      %s214 = sphi 0, %s216
      %s217 = sphi 0, %s214
      %s218 = sphi 0, %s217
      %s234 = sphi 0, %s218
      %s240 = sphi 0, %s242
      %s243 = sphi 0, %s240
      %s244 = sphi 0, %s243
      %s260 = sphi 0, %s244
      %s266 = sphi 0, %s268
      %s269 = sphi 0, %s266
      %s270 = sphi 0, %s269
      %s286 = sphi 0, %s270
      %s292 = sphi 0, %s294
      %s295 = sphi 0, %s292
      %s296 = sphi 0, %s295
      %s312 = sphi 0, %s296
      %s318 = sphi 0, %s320
      %s321 = sphi 0, %s318
      %s322 = sphi 0, %s321
      %s338 = sphi 0, %s322
      %s344 = sphi 0, %s346
      %s347 = sphi 0, %s344
      %s348 = sphi 0, %s347
      %s364 = sphi 0, %s348
      %s370 = sphi 0, %s372
      %s373 = sphi 0, %s370
      %s374 = sphi 0, %s373
      %s390 = sphi 0, %s374
      %s394 = sphi 0, %s394
      %s396 = sphi 0, %s394
      %s397 = sphi 0, %s396
      %s411 = sphi 0, %s397
      %s415 = sphi 0, %s415
      %s417 = sphi 0, %s415
      %s418 = sphi 0, %s417
      %s432 = sphi 0, %s418
      %s438 = sphi 0, %s440
      %s441 = sphi 0, %s438
      %s442 = sphi 0, %s441
      %s458 = sphi 0, %s442
    $region4: #{tpu_custom_call.1} parent=1 // loop_header_branch
      %39 = sbr.rel (%p37) target = $region8
    $region5: #{tpu_custom_call.1} parent=1 // loop_body
      %s41 = ssub.s32 %s36, 1
      %s42 = ssub.s32 %s36, 2
      %s49 = sadd.s32 1, %s44
      %p50 = scmp.ge.s32.totalorder %s49, 2
      %s51 = scalar_select %p50, 0, %s49
      %s52 = sadd.s32 1, %s43
      %s53 = scalar_select %p50, %s52, %s43
      %p54 = scmp.ge.s32.totalorder %s53, 2
      %s55 = scalar_select %p54, 0, %s53
      %s56 = ssub.s32 %s43, %s55
      %p57 = scmp.eq.s32.totalorder %s56, 0
      %s59 = sadd.s32 %s58, 1
      %s60 = scalar_select %p57, %s58, %s59
      %p63 = pneg %p57
      %p64 = scmp.eq.s32.totalorder %s36, 3
      %p65 = por %p63, %p64
      %p66 = scmp.ne.s32.totalorder %s58, %s61
      %p67 = scmp.eq.s32.totalorder %s36, 0
      %p68 = por %p66, %p67
      %p69 = scmp.ne.s32.totalorder %s58, %s61
      %p70 = scmp.eq.s32.totalorder %s41, 3
      %p71 = por %p69, %p70
      %p72 = scmp.ne.s32.totalorder %s61, %s62
      %p73 = scmp.eq.s32.totalorder %s41, 0
      %p74 = por %p72, %p73
      %p75 = scmp.ne.s32.totalorder %s61, %s62
      %p76 = scmp.eq.s32.totalorder %s42, 3
      %p77 = por %p75, %p76
      %p79 = scmp.ne.s32.totalorder %s62, %s78
      %p80 = scmp.eq.s32.totalorder %s42, 0
      %p81 = por %p79, %p80
      %s82 = ssub.s32 %s44, %s51
      %p83 = scmp.eq.s32.totalorder %s82, 0
      %s85 = sadd.s32 %s84, 1
      %s86 = scalar_select %p83, %s84, %s85
      %p89 = pneg %p83
      %p90 = scmp.eq.s32.totalorder %s36, 3
      %p91 = por %p89, %p90
      %p92 = scmp.ne.s32.totalorder %s84, %s87
      %p93 = scmp.eq.s32.totalorder %s36, 0
      %p94 = por %p92, %p93
      %p95 = scmp.ne.s32.totalorder %s84, %s87
      %p96 = scmp.eq.s32.totalorder %s41, 3
      %p97 = por %p95, %p96
      %p98 = scmp.ne.s32.totalorder %s87, %s88
      %p99 = scmp.eq.s32.totalorder %s41, 0
      %p100 = por %p98, %p99
      %p101 = scmp.ne.s32.totalorder %s87, %s88
      %p102 = scmp.eq.s32.totalorder %s42, 3
      %p103 = por %p101, %p102
      %p105 = scmp.ne.s32.totalorder %s88, %s104
      %p106 = scmp.eq.s32.totalorder %s42, 0
      %p107 = por %p105, %p106
      %s108 = ssub.s32 %s44, %s51
      %p109 = scmp.eq.s32.totalorder %s108, 0
      %s111 = sadd.s32 %s110, 1
      %s112 = scalar_select %p109, %s110, %s111
      %p115 = pneg %p109
      %p116 = scmp.eq.s32.totalorder %s36, 3
      %p117 = por %p115, %p116
      %p118 = scmp.ne.s32.totalorder %s110, %s113
      %p119 = scmp.eq.s32.totalorder %s36, 0
      %p120 = por %p118, %p119
      %p121 = scmp.ne.s32.totalorder %s110, %s113
      %p122 = scmp.eq.s32.totalorder %s41, 3
      %p123 = por %p121, %p122
      %p124 = scmp.ne.s32.totalorder %s113, %s114
      %p125 = scmp.eq.s32.totalorder %s41, 0
      %p126 = por %p124, %p125
      %p127 = scmp.ne.s32.totalorder %s113, %s114
      %p128 = scmp.eq.s32.totalorder %s42, 3
      %p129 = por %p127, %p128
      %p131 = scmp.ne.s32.totalorder %s114, %s130
      %p132 = scmp.eq.s32.totalorder %s42, 0
      %p133 = por %p131, %p132
      %s134 = ssub.s32 %s44, %s51
      %p135 = scmp.eq.s32.totalorder %s134, 0
      %s137 = sadd.s32 %s136, 1
      %s138 = scalar_select %p135, %s136, %s137
      %p141 = pneg %p135
      %p142 = scmp.eq.s32.totalorder %s36, 3
      %p143 = por %p141, %p142
      %p144 = scmp.ne.s32.totalorder %s136, %s139
      %p145 = scmp.eq.s32.totalorder %s36, 0
      %p146 = por %p144, %p145
      %p147 = scmp.ne.s32.totalorder %s136, %s139
      %p148 = scmp.eq.s32.totalorder %s41, 3
      %p149 = por %p147, %p148
      %p150 = scmp.ne.s32.totalorder %s139, %s140
      %p151 = scmp.eq.s32.totalorder %s41, 0
      %p152 = por %p150, %p151
      %p153 = scmp.ne.s32.totalorder %s139, %s140
      %p154 = scmp.eq.s32.totalorder %s42, 3
      %p155 = por %p153, %p154
      %p157 = scmp.ne.s32.totalorder %s140, %s156
      %p158 = scmp.eq.s32.totalorder %s42, 0
      %p159 = por %p157, %p158
      %s160 = ssub.s32 %s44, %s51
      %p161 = scmp.eq.s32.totalorder %s160, 0
      %s163 = sadd.s32 %s162, 1
      %s164 = scalar_select %p161, %s162, %s163
      %p167 = pneg %p161
      %p168 = scmp.eq.s32.totalorder %s36, 3
      %p169 = por %p167, %p168
      %p170 = scmp.ne.s32.totalorder %s162, %s165
      %p171 = scmp.eq.s32.totalorder %s36, 0
      %p172 = por %p170, %p171
      %p173 = scmp.ne.s32.totalorder %s162, %s165
      %p174 = scmp.eq.s32.totalorder %s41, 3
      %p175 = por %p173, %p174
      %p176 = scmp.ne.s32.totalorder %s165, %s166
      %p177 = scmp.eq.s32.totalorder %s41, 0
      %p178 = por %p176, %p177
      %p179 = scmp.ne.s32.totalorder %s165, %s166
      %p180 = scmp.eq.s32.totalorder %s42, 3
      %p181 = por %p179, %p180
      %p183 = scmp.ne.s32.totalorder %s166, %s182
      %p184 = scmp.eq.s32.totalorder %s42, 0
      %p185 = por %p183, %p184
      %s186 = ssub.s32 %s44, %s51
      %p187 = scmp.eq.s32.totalorder %s186, 0
      %s189 = sadd.s32 %s188, 1
      %s190 = scalar_select %p187, %s188, %s189
      %p193 = pneg %p187
      %p194 = scmp.eq.s32.totalorder %s36, 3
      %p195 = por %p193, %p194
      %p196 = scmp.ne.s32.totalorder %s188, %s191
      %p197 = scmp.eq.s32.totalorder %s36, 0
      %p198 = por %p196, %p197
      %p199 = scmp.ne.s32.totalorder %s188, %s191
      %p200 = scmp.eq.s32.totalorder %s41, 3
      %p201 = por %p199, %p200
      %p202 = scmp.ne.s32.totalorder %s191, %s192
      %p203 = scmp.eq.s32.totalorder %s41, 0
      %p204 = por %p202, %p203
      %p205 = scmp.ne.s32.totalorder %s191, %s192
      %p206 = scmp.eq.s32.totalorder %s42, 3
      %p207 = por %p205, %p206
      %p209 = scmp.ne.s32.totalorder %s192, %s208
      %p210 = scmp.eq.s32.totalorder %s42, 0
      %p211 = por %p209, %p210
      %s212 = ssub.s32 %s44, %s51
      %p213 = scmp.eq.s32.totalorder %s212, 0
      %s215 = sadd.s32 %s214, 1
      %s216 = scalar_select %p213, %s214, %s215
      %p219 = pneg %p213
      %p220 = scmp.eq.s32.totalorder %s36, 3
      %p221 = por %p219, %p220
      %p222 = scmp.ne.s32.totalorder %s214, %s217
      %p223 = scmp.eq.s32.totalorder %s36, 0
      %p224 = por %p222, %p223
      %p225 = scmp.ne.s32.totalorder %s214, %s217
      %p226 = scmp.eq.s32.totalorder %s41, 3
      %p227 = por %p225, %p226
      %p228 = scmp.ne.s32.totalorder %s217, %s218
      %p229 = scmp.eq.s32.totalorder %s41, 0
      %p230 = por %p228, %p229
      %p231 = scmp.ne.s32.totalorder %s217, %s218
      %p232 = scmp.eq.s32.totalorder %s42, 3
      %p233 = por %p231, %p232
      %p235 = scmp.ne.s32.totalorder %s218, %s234
      %p236 = scmp.eq.s32.totalorder %s42, 0
      %p237 = por %p235, %p236
      %s238 = ssub.s32 %s44, %s51
      %p239 = scmp.eq.s32.totalorder %s238, 0
      %s241 = sadd.s32 %s240, 1
      %s242 = scalar_select %p239, %s240, %s241
      %p245 = pneg %p239
      %p246 = scmp.eq.s32.totalorder %s36, 3
      %p247 = por %p245, %p246
      %p248 = scmp.ne.s32.totalorder %s240, %s243
      %p249 = scmp.eq.s32.totalorder %s36, 0
      %p250 = por %p248, %p249
      %p251 = scmp.ne.s32.totalorder %s240, %s243
      %p252 = scmp.eq.s32.totalorder %s41, 3
      %p253 = por %p251, %p252
      %p254 = scmp.ne.s32.totalorder %s243, %s244
      %p255 = scmp.eq.s32.totalorder %s41, 0
      %p256 = por %p254, %p255
      %p257 = scmp.ne.s32.totalorder %s243, %s244
      %p258 = scmp.eq.s32.totalorder %s42, 3
      %p259 = por %p257, %p258
      %p261 = scmp.ne.s32.totalorder %s244, %s260
      %p262 = scmp.eq.s32.totalorder %s42, 0
      %p263 = por %p261, %p262
      %s264 = ssub.s32 %s44, %s51
      %p265 = scmp.eq.s32.totalorder %s264, 0
      %s267 = sadd.s32 %s266, 1
      %s268 = scalar_select %p265, %s266, %s267
      %p271 = pneg %p265
      %p272 = scmp.eq.s32.totalorder %s36, 3
      %p273 = por %p271, %p272
      %p274 = scmp.ne.s32.totalorder %s266, %s269
      %p275 = scmp.eq.s32.totalorder %s36, 0
      %p276 = por %p274, %p275
      %p277 = scmp.ne.s32.totalorder %s266, %s269
      %p278 = scmp.eq.s32.totalorder %s41, 3
      %p279 = por %p277, %p278
      %p280 = scmp.ne.s32.totalorder %s269, %s270
      %p281 = scmp.eq.s32.totalorder %s41, 0
      %p282 = por %p280, %p281
      %p283 = scmp.ne.s32.totalorder %s269, %s270
      %p284 = scmp.eq.s32.totalorder %s42, 3
      %p285 = por %p283, %p284
      %p287 = scmp.ne.s32.totalorder %s270, %s286
      %p288 = scmp.eq.s32.totalorder %s42, 0
      %p289 = por %p287, %p288
      %s290 = ssub.s32 %s44, %s51
      %p291 = scmp.eq.s32.totalorder %s290, 0
      %s293 = sadd.s32 %s292, 1
      %s294 = scalar_select %p291, %s292, %s293
      %p297 = pneg %p291
      %p298 = scmp.eq.s32.totalorder %s36, 3
      %p299 = por %p297, %p298
      %p300 = scmp.ne.s32.totalorder %s292, %s295
      %p301 = scmp.eq.s32.totalorder %s36, 0
      %p302 = por %p300, %p301
      %p303 = scmp.ne.s32.totalorder %s292, %s295
      %p304 = scmp.eq.s32.totalorder %s41, 3
      %p305 = por %p303, %p304
      %p306 = scmp.ne.s32.totalorder %s295, %s296
      %p307 = scmp.eq.s32.totalorder %s41, 0
      %p308 = por %p306, %p307
      %p309 = scmp.ne.s32.totalorder %s295, %s296
      %p310 = scmp.eq.s32.totalorder %s42, 3
      %p311 = por %p309, %p310
      %p313 = scmp.ne.s32.totalorder %s296, %s312
      %p314 = scmp.eq.s32.totalorder %s42, 0
      %p315 = por %p313, %p314
      %s316 = ssub.s32 %s44, %s51
      %p317 = scmp.eq.s32.totalorder %s316, 0
      %s319 = sadd.s32 %s318, 1
      %s320 = scalar_select %p317, %s318, %s319
      %p323 = pneg %p317
      %p324 = scmp.eq.s32.totalorder %s36, 3
      %p325 = por %p323, %p324
      %p326 = scmp.ne.s32.totalorder %s318, %s321
      %p327 = scmp.eq.s32.totalorder %s36, 0
      %p328 = por %p326, %p327
      %p329 = scmp.ne.s32.totalorder %s318, %s321
      %p330 = scmp.eq.s32.totalorder %s41, 3
      %p331 = por %p329, %p330
      %p332 = scmp.ne.s32.totalorder %s321, %s322
      %p333 = scmp.eq.s32.totalorder %s41, 0
      %p334 = por %p332, %p333
      %p335 = scmp.ne.s32.totalorder %s321, %s322
      %p336 = scmp.eq.s32.totalorder %s42, 3
      %p337 = por %p335, %p336
      %p339 = scmp.ne.s32.totalorder %s322, %s338
      %p340 = scmp.eq.s32.totalorder %s42, 0
      %p341 = por %p339, %p340
      %s342 = ssub.s32 %s44, %s51
      %p343 = scmp.eq.s32.totalorder %s342, 0
      %s345 = sadd.s32 %s344, 1
      %s346 = scalar_select %p343, %s344, %s345
      %p349 = pneg %p343
      %p350 = scmp.eq.s32.totalorder %s36, 3
      %p351 = por %p349, %p350
      %p352 = scmp.ne.s32.totalorder %s344, %s347
      %p353 = scmp.eq.s32.totalorder %s36, 0
      %p354 = por %p352, %p353
      %p355 = scmp.ne.s32.totalorder %s344, %s347
      %p356 = scmp.eq.s32.totalorder %s41, 3
      %p357 = por %p355, %p356
      %p358 = scmp.ne.s32.totalorder %s347, %s348
      %p359 = scmp.eq.s32.totalorder %s41, 0
      %p360 = por %p358, %p359
      %p361 = scmp.ne.s32.totalorder %s347, %s348
      %p362 = scmp.eq.s32.totalorder %s42, 3
      %p363 = por %p361, %p362
      %p365 = scmp.ne.s32.totalorder %s348, %s364
      %p366 = scmp.eq.s32.totalorder %s42, 0
      %p367 = por %p365, %p366
      %s368 = ssub.s32 %s44, %s51
      %p369 = scmp.eq.s32.totalorder %s368, 0
      %s371 = sadd.s32 %s370, 1
      %s372 = scalar_select %p369, %s370, %s371
      %p375 = pneg %p369
      %p376 = scmp.eq.s32.totalorder %s36, 3
      %p377 = por %p375, %p376
      %p378 = scmp.ne.s32.totalorder %s370, %s373
      %p379 = scmp.eq.s32.totalorder %s36, 0
      %p380 = por %p378, %p379
      %p381 = scmp.ne.s32.totalorder %s370, %s373
      %p382 = scmp.eq.s32.totalorder %s41, 3
      %p383 = por %p381, %p382
      %p384 = scmp.ne.s32.totalorder %s373, %s374
      %p385 = scmp.eq.s32.totalorder %s41, 0
      %p386 = por %p384, %p385
      %p387 = scmp.ne.s32.totalorder %s373, %s374
      %p388 = scmp.eq.s32.totalorder %s42, 3
      %p389 = por %p387, %p388
      %p391 = scmp.ne.s32.totalorder %s374, %s390
      %p392 = scmp.eq.s32.totalorder %s42, 0
      %p393 = por %p391, %p392
      %s395 = sadd.s32 %s394, 1
      %p398 = scmp.eq.s32.totalorder %s36, 3
      %p399 = scmp.ne.s32.totalorder %s394, %s396
      %p400 = scmp.eq.s32.totalorder %s36, 0
      %p401 = por %p399, %p400
      %p402 = scmp.ne.s32.totalorder %s394, %s396
      %p403 = scmp.eq.s32.totalorder %s41, 3
      %p404 = por %p402, %p403
      %p405 = scmp.ne.s32.totalorder %s396, %s397
      %p406 = scmp.eq.s32.totalorder %s41, 0
      %p407 = por %p405, %p406
      %p408 = scmp.ne.s32.totalorder %s396, %s397
      %p409 = scmp.eq.s32.totalorder %s42, 3
      %p410 = por %p408, %p409
      %p412 = scmp.ne.s32.totalorder %s397, %s411
      %p413 = scmp.eq.s32.totalorder %s42, 0
      %p414 = por %p412, %p413
      %s416 = sadd.s32 %s415, 1
      %p419 = scmp.eq.s32.totalorder %s36, 3
      %p420 = scmp.ne.s32.totalorder %s415, %s417
      %p421 = scmp.eq.s32.totalorder %s36, 0
      %p422 = por %p420, %p421
      %p423 = scmp.ne.s32.totalorder %s415, %s417
      %p424 = scmp.eq.s32.totalorder %s41, 3
      %p425 = por %p423, %p424
      %p426 = scmp.ne.s32.totalorder %s417, %s418
      %p427 = scmp.eq.s32.totalorder %s41, 0
      %p428 = por %p426, %p427
      %p429 = scmp.ne.s32.totalorder %s417, %s418
      %p430 = scmp.eq.s32.totalorder %s42, 3
      %p431 = por %p429, %p430
      %p433 = scmp.ne.s32.totalorder %s418, %s432
      %p434 = scmp.eq.s32.totalorder %s42, 0
      %p435 = por %p433, %p434
      %s436 = ssub.s32 %s43, %s55
      %p437 = scmp.eq.s32.totalorder %s436, 0
      %s439 = sadd.s32 %s438, 1
      %s440 = scalar_select %p437, %s438, %s439
      %p443 = pneg %p437
      %p444 = scmp.eq.s32.totalorder %s36, 3
      %p445 = por %p443, %p444
      %p446 = scmp.ne.s32.totalorder %s438, %s441
      %p447 = scmp.eq.s32.totalorder %s36, 0
      %p448 = por %p446, %p447
      %p449 = scmp.ne.s32.totalorder %s438, %s441
      %p450 = scmp.eq.s32.totalorder %s41, 3
      %p451 = por %p449, %p450
      %p452 = scmp.ne.s32.totalorder %s441, %s442
      %p453 = scmp.eq.s32.totalorder %s41, 0
      %p454 = por %p452, %p453
      %p455 = scmp.ne.s32.totalorder %s441, %s442
      %p456 = scmp.eq.s32.totalorder %s42, 3
      %p457 = por %p455, %p456
      %p459 = scmp.ne.s32.totalorder %s442, %s458
      %p460 = scmp.eq.s32.totalorder %s42, 0
      %p461 = por %p459, %p460
      %p462 = scmp.le.s32.totalorder 1, %s36
      %p463 = scmp.lt.s32.totalorder %s36, 5
      %p464 = pnand %p462, %p463
      %p465 = pneg %p464
      // Predicated region
      $region9: #{tpu_custom_call.1} parent=5 // pred_check
        _
      $region10: #{tpu_custom_call.1} parent=5 // pred_check_branch
        %467 = sbr.rel (%p464) target = $region12
      $region11: #{tpu_custom_call.1} parent=5 // pred_region
        %s468 = ssub.s32 %s36, 1
        // Predicated region
        $region13: #{tpu_custom_call.1} parent=11 // pred_check
          %p469 = pneg %p407
        $region14: #{tpu_custom_call.1} parent=11 // pred_check_branch
          %471 = sbr.rel (%p469) target = $region16
        $region15: #{tpu_custom_call.1} parent=11 // pred_region
          _
        $region16: #{tpu_custom_call.1} parent=11 // pred_fallthru
          _
        // Predicated region
        $region17: #{tpu_custom_call.1} parent=11 // pred_check
          %p472 = pneg %p428
        $region18: #{tpu_custom_call.1} parent=11 // pred_check_branch
          %474 = sbr.rel (%p472) target = $region20
        $region19: #{tpu_custom_call.1} parent=11 // pred_region
          _
        $region20: #{tpu_custom_call.1} parent=11 // pred_fallthru
          _
      $region12: #{tpu_custom_call.1} parent=5 // pred_fallthru
        _
      %p475 = scmp.lt.s32.totalorder %s36, 4
      // Predicated region
      $region21: #{tpu_custom_call.1} parent=5 // pred_check
        %p476 = pneg %p475
      $region22: #{tpu_custom_call.1} parent=5 // pred_check_branch
        %478 = sbr.rel (%p476) target = $region24
      $region23: #{tpu_custom_call.1} parent=5 // pred_region
        // Predicated region
        $region25: #{tpu_custom_call.1} parent=23 // pred_check
          %p479 = pneg %p68
        $region26: #{tpu_custom_call.1} parent=23 // pred_check_branch
          %481 = sbr.rel (%p479) target = $region28
        $region27: #{tpu_custom_call.1} parent=23 // pred_region
          %s482 = sand.u32 %s58, 1
          %s483 = scalar_lea.sflag [#allocation4], %s482
          %s484 = sand.u32 %s58, 1
          %s485 = smul.addr %s484, 16
          %s486 = scalar_lea.vmem [#allocation3], %s485
          %s488 = ssub.s32 256, 256
          %489 = vsyncadd %s483, %s488
          %s490 = smul.addr %s43, 2
          %s491 = smul.addr %s490, 128
          %s492 = scalar_lea.hbm %s0, %s491
          %s493 = sshll.u32 %s486, 4
          %s494 = int_to_ptr.vmem [resolvable:$true] %s493
          %499 = dma.hbm_to_vmem [thread:$0]  %s492, 256, %s494, %s483, 128, 128, 8
        $region28: #{tpu_custom_call.1} parent=23 // pred_fallthru
          _
        // Predicated region
        $region29: #{tpu_custom_call.1} parent=23 // pred_check
          %p500 = pneg %p94
        $region30: #{tpu_custom_call.1} parent=23 // pred_check_branch
          %502 = sbr.rel (%p500) target = $region32
        $region31: #{tpu_custom_call.1} parent=23 // pred_region
          %p503 = scmp.lt.s32.totalorder %s44, 1
          %s504 = scalar_select %p503, %s44, 1
          %s505 = scalar_lea.vmem %s1, %s504
        $region32: #{tpu_custom_call.1} parent=23 // pred_fallthru
          _
        // Predicated region
        $region33: #{tpu_custom_call.1} parent=23 // pred_check
          %p506 = pneg %p120
        $region34: #{tpu_custom_call.1} parent=23 // pred_check_branch
          %508 = sbr.rel (%p506) target = $region36
        $region35: #{tpu_custom_call.1} parent=23 // pred_region
          %s509 = sand.u32 %s36, 1
          %s510 = scalar_lea.sflag [#allocation7], %s509
          %s511 = sand.u32 %s110, 1
          %s512 = scalar_lea.vmem [#allocation6], %s511
          %s514 = ssub.s32 16, 16
          %515 = vsyncadd %s510, %s514
          %s516 = smul.addr %s44, 16
          %s517 = scalar_lea.hbm %s2, %s516
          %s519 = sshll.u32 %s512, 4
          %s520 = int_to_ptr.vmem [resolvable:$true] %s519
          %522 = dma.hbm_to_vmem [thread:$0]  %s517, 16, %s520, %s510
        $region36: #{tpu_custom_call.1} parent=23 // pred_fallthru
          _
        // Predicated region
        $region37: #{tpu_custom_call.1} parent=23 // pred_check
          %p523 = pneg %p146
        $region38: #{tpu_custom_call.1} parent=23 // pred_check_branch
          %525 = sbr.rel (%p523) target = $region40
        $region39: #{tpu_custom_call.1} parent=23 // pred_region
          %s526 = sand.u32 %s36, 1
          %s527 = scalar_lea.sflag [#allocation7], %s526
          %s528 = sand.u32 %s136, 1
          %s529 = smul.addr %s528, 384
          %s530 = scalar_lea.vmem [#allocation8], %s529
          %s532 = ssub.s32 6144, 6144
          %533 = vsyncadd %s527, %s532
          %s534 = smul.addr %s44, 48
          %s535 = smul.addr %s534, 128
          %s536 = scalar_lea.hbm %s3, %s535
          %s537 = sshll.u32 %s530, 4
          %s538 = int_to_ptr.vmem [resolvable:$true] %s537
          %543 = dma.hbm_to_vmem [thread:$0]  %s536, 6144, %s538, %s527, 384, 384, 24
        $region40: #{tpu_custom_call.1} parent=23 // pred_fallthru
          _
        // Predicated region
        $region41: #{tpu_custom_call.1} parent=23 // pred_check
          %p544 = pneg %p172
        $region42: #{tpu_custom_call.1} parent=23 // pred_check_branch
          %546 = sbr.rel (%p544) target = $region44
        $region43: #{tpu_custom_call.1} parent=23 // pred_region
          %p547 = scmp.lt.s32.totalorder %s44, 1
          %s548 = scalar_select %p547, %s44, 1
          %s549 = smul.addr %s548, 3
          %s550 = scalar_lea.vmem %s4, %s549
        $region44: #{tpu_custom_call.1} parent=23 // pred_fallthru
          _
        // Predicated region
        $region45: #{tpu_custom_call.1} parent=23 // pred_check
          %p551 = pneg %p198
        $region46: #{tpu_custom_call.1} parent=23 // pred_check_branch
          %553 = sbr.rel (%p551) target = $region48
        $region47: #{tpu_custom_call.1} parent=23 // pred_region
          %s554 = sand.u32 %s36, 1
          %s555 = scalar_lea.sflag [#allocation10], %s554
          %s556 = sand.u32 %s188, 1
          %s557 = smul.addr %s556, 96
          %s558 = scalar_lea.vmem [#allocation9], %s557
          %s560 = ssub.s32 1536, 1536
          %561 = vsyncadd %s555, %s560
          %s562 = smul.addr %s44, 12
          %s563 = smul.addr %s562, 128
          %s564 = scalar_lea.hbm %s5, %s563
          %s565 = sshll.u32 %s558, 4
          %s566 = int_to_ptr.vmem [resolvable:$true] %s565
          %571 = dma.hbm_to_vmem [thread:$0]  %s564, 1536, %s566, %s555, 128, 128, 8
        $region48: #{tpu_custom_call.1} parent=23 // pred_fallthru
          _
        // Predicated region
        $region49: #{tpu_custom_call.1} parent=23 // pred_check
          %p572 = pneg %p224
        $region50: #{tpu_custom_call.1} parent=23 // pred_check_branch
          %574 = sbr.rel (%p572) target = $region52
        $region51: #{tpu_custom_call.1} parent=23 // pred_region
          %p575 = scmp.lt.s32.totalorder %s44, 1
          %s576 = scalar_select %p575, %s44, 1
          %s577 = scalar_lea.vmem %s6, %s576
        $region52: #{tpu_custom_call.1} parent=23 // pred_fallthru
          _
        // Predicated region
        $region53: #{tpu_custom_call.1} parent=23 // pred_check
          %p578 = pneg %p250
        $region54: #{tpu_custom_call.1} parent=23 // pred_check_branch
          %580 = sbr.rel (%p578) target = $region56
        $region55: #{tpu_custom_call.1} parent=23 // pred_region
          %p581 = scmp.lt.s32.totalorder %s44, 1
          %s582 = scalar_select %p581, %s44, 1
          %s583 = scalar_lea.vmem %s7, %s582
        $region56: #{tpu_custom_call.1} parent=23 // pred_fallthru
          _
        // Predicated region
        $region57: #{tpu_custom_call.1} parent=23 // pred_check
          %p584 = pneg %p276
        $region58: #{tpu_custom_call.1} parent=23 // pred_check_branch
          %586 = sbr.rel (%p584) target = $region60
        $region59: #{tpu_custom_call.1} parent=23 // pred_region
          %p587 = scmp.lt.s32.totalorder %s44, 1
          %s588 = scalar_select %p587, %s44, 1
          %s589 = scalar_lea.vmem %s8, %s588
        $region60: #{tpu_custom_call.1} parent=23 // pred_fallthru
          _
        // Predicated region
        $region61: #{tpu_custom_call.1} parent=23 // pred_check
          %p590 = pneg %p302
        $region62: #{tpu_custom_call.1} parent=23 // pred_check_branch
          %592 = sbr.rel (%p590) target = $region64
        $region63: #{tpu_custom_call.1} parent=23 // pred_region
          %s593 = sand.u32 %s36, 1
          %s594 = scalar_lea.sflag [#allocation10], %s593
          %s595 = sand.u32 %s292, 1
          %s596 = smul.addr %s595, 384
          %s597 = scalar_lea.vmem [#allocation11], %s596
          %s599 = ssub.s32 6144, 6144
          %600 = vsyncadd %s594, %s599
          %s601 = smul.addr %s44, 48
          %s602 = smul.addr %s601, 128
          %s603 = scalar_lea.hbm %s9, %s602
          %s604 = sshll.u32 %s597, 4
          %s605 = int_to_ptr.vmem [resolvable:$true] %s604
          %610 = dma.hbm_to_vmem [thread:$0]  %s603, 6144, %s605, %s594, 384, 384, 24
        $region64: #{tpu_custom_call.1} parent=23 // pred_fallthru
          _
        // Predicated region
        $region65: #{tpu_custom_call.1} parent=23 // pred_check
          %p611 = pneg %p328
        $region66: #{tpu_custom_call.1} parent=23 // pred_check_branch
          %613 = sbr.rel (%p611) target = $region68
        $region67: #{tpu_custom_call.1} parent=23 // pred_region
          %p614 = scmp.lt.s32.totalorder %s44, 1
          %s615 = scalar_select %p614, %s44, 1
          %s616 = smul.addr %s615, 3
          %s617 = scalar_lea.vmem %s10, %s616
        $region68: #{tpu_custom_call.1} parent=23 // pred_fallthru
          _
        // Predicated region
        $region69: #{tpu_custom_call.1} parent=23 // pred_check
          %p618 = pneg %p354
        $region70: #{tpu_custom_call.1} parent=23 // pred_check_branch
          %620 = sbr.rel (%p618) target = $region72
        $region71: #{tpu_custom_call.1} parent=23 // pred_region
          %s621 = sand.u32 %s344, 1
          %s622 = scalar_lea.sflag [#allocation13], %s621
          %s623 = sand.u32 %s344, 1
          %s624 = smul.addr %s623, 384
          %s625 = scalar_lea.vmem [#allocation12], %s624
          %s627 = ssub.s32 6144, 6144
          %628 = vsyncadd %s622, %s627
          %s629 = smul.addr %s44, 48
          %s630 = smul.addr %s629, 128
          %s631 = scalar_lea.hbm %s11, %s630
          %s632 = sshll.u32 %s625, 4
          %s633 = int_to_ptr.vmem [resolvable:$true] %s632
          %638 = dma.hbm_to_vmem [thread:$0]  %s631, 6144, %s633, %s622, 128, 128, 8
        $region72: #{tpu_custom_call.1} parent=23 // pred_fallthru
          _
        // Predicated region
        $region73: #{tpu_custom_call.1} parent=23 // pred_check
          %p639 = pneg %p380
        $region74: #{tpu_custom_call.1} parent=23 // pred_check_branch
          %641 = sbr.rel (%p639) target = $region76
        $region75: #{tpu_custom_call.1} parent=23 // pred_region
          %p642 = scmp.lt.s32.totalorder %s44, 1
          %s643 = scalar_select %p642, %s44, 1
          %s644 = scalar_lea.vmem %s12, %s643
        $region76: #{tpu_custom_call.1} parent=23 // pred_fallthru
          _
      $region24: #{tpu_custom_call.1} parent=5 // pred_fallthru
        _
      %p645 = scmp.le.s32.totalorder 1, %s36
      %p646 = scmp.lt.s32.totalorder %s36, 5
      %p647 = pnand %p645, %p646
      %p648 = pneg %p647
      // Predicated region
      $region77: #{tpu_custom_call.1} parent=5 // pred_check
        _
      $region78: #{tpu_custom_call.1} parent=5 // pred_check_branch
        %650 = sbr.rel (%p647) target = $region80
      $region79: #{tpu_custom_call.1} parent=5 // pred_region
        %s651 = ssub.s32 %s36, 1
        %s652 = sand.u32 %s61, 1
        %s653 = scalar_lea.sflag [#allocation4], %s652
        %s654 = sand.u32 %s61, 1
        %s655 = smul.addr %s654, 16
        %s656 = scalar_lea.vmem [#allocation3], %s655
        // Predicated region
        $region81: #{tpu_custom_call.1} parent=79 // pred_check
          %p657 = pneg %p74
        $region82: #{tpu_custom_call.1} parent=79 // pred_check_branch
          %659 = sbr.rel (%p657) target = $region84
        $region83: #{tpu_custom_call.1} parent=79 // pred_region
          %660 = dma.done %s653, 256
        $region84: #{tpu_custom_call.1} parent=79 // pred_fallthru
          _
        %s661 = sand.u32 %s41, 1
        %s662 = scalar_lea.sflag [#allocation7], %s661
        %s663 = sand.u32 %s113, 1
        %s664 = scalar_lea.vmem [#allocation6], %s663
        // Predicated region
        $region85: #{tpu_custom_call.1} parent=79 // pred_check
          %p665 = pneg %p126
        $region86: #{tpu_custom_call.1} parent=79 // pred_check_branch
          %667 = sbr.rel (%p665) target = $region88
        $region87: #{tpu_custom_call.1} parent=79 // pred_region
          %668 = dma.done %s662, 16
        $region88: #{tpu_custom_call.1} parent=79 // pred_fallthru
          _
        %s669 = sand.u32 %s41, 1
        %s670 = scalar_lea.sflag [#allocation7], %s669
        %s671 = sand.u32 %s139, 1
        %s672 = smul.addr %s671, 384
        %s673 = scalar_lea.vmem [#allocation8], %s672
        // Predicated region
        $region89: #{tpu_custom_call.1} parent=79 // pred_check
          %p674 = pneg %p152
        $region90: #{tpu_custom_call.1} parent=79 // pred_check_branch
          %676 = sbr.rel (%p674) target = $region92
        $region91: #{tpu_custom_call.1} parent=79 // pred_region
          %677 = dma.done %s670, 6144
        $region92: #{tpu_custom_call.1} parent=79 // pred_fallthru
          _
        %s678 = sand.u32 %s41, 1
        %s679 = scalar_lea.sflag [#allocation10], %s678
        %s680 = sand.u32 %s191, 1
        %s681 = smul.addr %s680, 96
        %s682 = scalar_lea.vmem [#allocation9], %s681
        // Predicated region
        $region93: #{tpu_custom_call.1} parent=79 // pred_check
          %p683 = pneg %p204
        $region94: #{tpu_custom_call.1} parent=79 // pred_check_branch
          %685 = sbr.rel (%p683) target = $region96
        $region95: #{tpu_custom_call.1} parent=79 // pred_region
          %686 = dma.done %s679, 1536
        $region96: #{tpu_custom_call.1} parent=79 // pred_fallthru
          _
        %s687 = sand.u32 %s41, 1
        %s688 = scalar_lea.sflag [#allocation10], %s687
        %s689 = sand.u32 %s295, 1
        %s690 = smul.addr %s689, 384
        %s691 = scalar_lea.vmem [#allocation11], %s690
        // Predicated region
        $region97: #{tpu_custom_call.1} parent=79 // pred_check
          %p692 = pneg %p308
        $region98: #{tpu_custom_call.1} parent=79 // pred_check_branch
          %694 = sbr.rel (%p692) target = $region100
        $region99: #{tpu_custom_call.1} parent=79 // pred_region
          %695 = dma.done %s688, 6144
        $region100: #{tpu_custom_call.1} parent=79 // pred_fallthru
          _
        %s696 = sand.u32 %s347, 1
        %s697 = scalar_lea.sflag [#allocation13], %s696
        %s698 = sand.u32 %s347, 1
        %s699 = smul.addr %s698, 384
        %s700 = scalar_lea.vmem [#allocation12], %s699
        // Predicated region
        $region101: #{tpu_custom_call.1} parent=79 // pred_check
          %p701 = pneg %p360
        $region102: #{tpu_custom_call.1} parent=79 // pred_check_branch
          %703 = sbr.rel (%p701) target = $region104
        $region103: #{tpu_custom_call.1} parent=79 // pred_region
          %704 = dma.done %s697, 6144
        $region104: #{tpu_custom_call.1} parent=79 // pred_fallthru
          _
        %s705 = sand.u32 %s61, 1
        %s706 = scalar_lea.sflag [#allocation4], %s705
        %s707 = sand.u32 %s61, 1
        %s708 = smul.addr %s707, 16
        %s709 = scalar_lea.vmem [#allocation3], %s708
        %p710 = pneg %p74
        %p711 = pneg %p71
        %p712 = scmp.lt.s32.totalorder %s46, 1
        %s713 = scalar_select %p712, %s46, 1
        %s714 = scalar_lea.vmem %s1, %s713
        %p715 = pneg %p100
        %p716 = pneg %p97
        %s717 = sand.u32 %s41, 1
        %s718 = scalar_lea.sflag [#allocation7], %s717
        %s719 = sand.u32 %s113, 1
        %s720 = scalar_lea.vmem [#allocation6], %s719
        %p721 = pneg %p126
        %p722 = pneg %p123
        %s723 = sand.u32 %s41, 1
        %s724 = scalar_lea.sflag [#allocation7], %s723
        %s725 = sand.u32 %s139, 1
        %s726 = smul.addr %s725, 384
        %s727 = scalar_lea.vmem [#allocation8], %s726
        %p728 = pneg %p152
        %p729 = pneg %p149
        %p730 = scmp.lt.s32.totalorder %s46, 1
        %s731 = scalar_select %p730, %s46, 1
        %s732 = smul.addr %s731, 3
        %s733 = scalar_lea.vmem %s4, %s732
        %p734 = pneg %p178
        %p735 = pneg %p175
        %s736 = sand.u32 %s41, 1
        %s737 = scalar_lea.sflag [#allocation10], %s736
        %s738 = sand.u32 %s191, 1
        %s739 = smul.addr %s738, 96
        %s740 = scalar_lea.vmem [#allocation9], %s739
        %p741 = pneg %p204
        %p742 = pneg %p201
        %p743 = scmp.lt.s32.totalorder %s46, 1
        %s744 = scalar_select %p743, %s46, 1
        %s745 = scalar_lea.vmem %s6, %s744
        %p746 = pneg %p230
        %p747 = pneg %p227
        %p748 = scmp.lt.s32.totalorder %s46, 1
        %s749 = scalar_select %p748, %s46, 1
        %s750 = scalar_lea.vmem %s7, %s749
        %p751 = pneg %p256
        %p752 = pneg %p253
        %p753 = scmp.lt.s32.totalorder %s46, 1
        %s754 = scalar_select %p753, %s46, 1
        %s755 = scalar_lea.vmem %s8, %s754
        %p756 = pneg %p282
        %p757 = pneg %p279
        %s758 = sand.u32 %s41, 1
        %s759 = scalar_lea.sflag [#allocation10], %s758
        %s760 = sand.u32 %s295, 1
        %s761 = smul.addr %s760, 384
        %s762 = scalar_lea.vmem [#allocation11], %s761
        %p763 = pneg %p308
        %p764 = pneg %p305
        %p765 = scmp.lt.s32.totalorder %s46, 1
        %s766 = scalar_select %p765, %s46, 1
        %s767 = smul.addr %s766, 3
        %s768 = scalar_lea.vmem %s10, %s767
        %p769 = pneg %p334
        %p770 = pneg %p331
        %s771 = sand.u32 %s347, 1
        %s772 = scalar_lea.sflag [#allocation13], %s771
        %s773 = sand.u32 %s347, 1
        %s774 = smul.addr %s773, 384
        %s775 = scalar_lea.vmem [#allocation12], %s774
        %p776 = pneg %p360
        %p777 = pneg %p357
        %p778 = scmp.lt.s32.totalorder %s46, 1
        %s779 = scalar_select %p778, %s46, 1
        %s780 = scalar_lea.vmem %s12, %s779
        %p781 = pneg %p386
        %p782 = pneg %p383
        %p783 = pneg %p407
        %p784 = pneg %p404
        %p785 = pneg %p428
        %p786 = pneg %p425
        %p787 = pneg %p454
        %p788 = pneg %p451
        %s789 = sand.u32 %s441, 1
        %s790 = scalar_lea.sflag [#allocation5], %s789
        %s791 = sand.u32 %s441, 1
        %s792 = smul.addr %s791, 16
        %s793 = scalar_lea.vmem [#allocation14], %s792
        %p794 = scmp.lt.s32.totalorder %s46, 1
        %s795 = scalar_select %p794, %s46, 1
        %s796 = scalar_lea.vmem %s1, %s795
        %p797 = scmp.lt.s32.totalorder %s46, 1
        %s798 = scalar_select %p797, %s46, 1
        %s799 = smul.addr %s798, 3
        %s800 = scalar_lea.vmem %s4, %s799
        %p801 = scmp.lt.s32.totalorder %s46, 1
        %s802 = scalar_select %p801, %s46, 1
        %s803 = scalar_lea.vmem %s6, %s802
        %p804 = scmp.lt.s32.totalorder %s46, 1
        %s805 = scalar_select %p804, %s46, 1
        %s806 = scalar_lea.vmem %s7, %s805
        %p807 = scmp.lt.s32.totalorder %s46, 1
        %s808 = scalar_select %p807, %s46, 1
        %s809 = scalar_lea.vmem %s8, %s808
        %p810 = scmp.lt.s32.totalorder %s46, 1
        %s811 = scalar_select %p810, %s46, 1
        %s812 = smul.addr %s811, 3
        %s813 = scalar_lea.vmem %s10, %s812
        %p814 = scmp.lt.s32.totalorder %s46, 1
        %s815 = scalar_select %p814, %s46, 1
        %s816 = scalar_lea.vmem %s12, %s815
        %p817 = scmp.eq.s32.totalorder %s46, 0
        // Predicated region
        $region105: #{tpu_custom_call.1} parent=79 // pred_check
          %p818 = pneg %p817
        $region106: #{tpu_custom_call.1} parent=79 // pred_check_branch
          %820 = sbr.rel (%p818) target = $region108
        $region107: #{tpu_custom_call.1} parent=79 // pred_region
          %v821 = vld [vmem:[%s656] sm:$0xff]
          %v822 = vld [vmem:[%s656 + $0x8] sm:$0xff]
          %823 = vst [vmem:[#allocation2] sm:$0xff] %v821
          %824 = vst [vmem:[#allocation2 + $0x8] sm:$0xff] %v822
        $region108: #{tpu_custom_call.1} parent=79 // pred_fallthru
          _
        %v825 = vld [vmem:[#allocation2] sm:$0xff]
        %v826 = vld [vmem:[#allocation2 + $0x8] sm:$0xff]
        %v827 = vlaneseq
        %v828 = vand.u32 %v827, 127
        %vm829 = vcmp.lt.s32.totalorder %v828, 96
        %v830 = vsel %vm829, 1, 0
        %v831 = vcvt.s32.f32 %v830
        %vm832 = vcmp.lt.s32.totalorder %v828, 9
        %v833 = vsel %vm832, 0.0, -1e+30
        %v834 = vld [vmem:[%s796] sm:$0x1]
        %v835 = vld [vmem:[%s664] sm:$0x1]
        %836 = vadd.xlane.f32.xlu0 %v825
        %v837 = vpop.xlane.xlu0 %836
        %838 = vadd.xlane.f32.xlu0 %v826
        %v839 = vpop.xlane.xlu0 %838
        %v840 = vmul.f32 %v837, 0.010416667
        %v841 = vmul.f32 %v839, 0.010416667
        %v842 = vsub.f32 %v825, %v840
        %v843 = vsub.f32 %v826, %v841
        %v844 = vmul.f32 %v842, %v831
        %v845 = vmul.f32 %v843, %v831
        %v846 = vmul.f32 %v844, %v844
        %v847 = vmul.f32 %v845, %v845
        %848 = vadd.xlane.f32.xlu0 %v846
        %v849 = vpop.xlane.xlu0 %848
        %850 = vadd.xlane.f32.xlu0 %v847
        %v851 = vpop.xlane.xlu0 %850
        %v852 = vmul.f32 %v849, 0.010416667
        %v853 = vmul.f32 %v851, 0.010416667
        %v854 = vadd.f32 %v852, 1e-06
        %v855 = vadd.f32 %v853, 1e-06
        %v856 = vrsqrt.pop %v854
        %v857 = vrsqrt.pop %v855
        %v858 = vmul.f32 %v844, %v856
        %v859 = vmul.f32 %v845, %v857
        %v861 = vlaneseq
        %v862 = vshrl.u32 %v861, 7
        %v863 = vsub.s32 0, %v862
        %v864 = vrot.slane %v834, %v863
        %v866 = vmul.f32 %v858, %v864
        %v867 = vmul.f32 %v859, %v864
        %v869 = vlaneseq
        %v870 = vshrl.u32 %v869, 7
        %v871 = vsub.s32 0, %v870
        %v872 = vrot.slane %v835, %v871
        %v874 = vadd.f32 %v866, %v872
        %v875 = vadd.f32 %v867, %v872
        %v876 = vld [vmem:[%s673] sm:$0xff]
        %v877 = vld [vmem:[%s673 + $0x8] sm:$0xff]
        %v878 = vld [vmem:[%s673 + $0x10] sm:$0xff]
        %v879 = vld [vmem:[%s673 + $0x18] sm:$0xff]
        %v880 = vld [vmem:[%s673 + $0x20] sm:$0xff]
        %v881 = vld [vmem:[%s673 + $0x28] sm:$0xff]
        %v882 = vld [vmem:[%s673 + $0x30] sm:$0xff]
        %v883 = vld [vmem:[%s673 + $0x38] sm:$0xff]
        %v884 = vld [vmem:[%s673 + $0x40] sm:$0xff]
        %v885 = vld [vmem:[%s673 + $0x48] sm:$0xff]
        %v886 = vld [vmem:[%s673 + $0x50] sm:$0xff]
        %v887 = vld [vmem:[%s673 + $0x58] sm:$0xff]
        %v888 = vld [vmem:[%s673 + $0x60] sm:$0xff]
        %v889 = vld [vmem:[%s673 + $0x68] sm:$0xff]
        %v890 = vld [vmem:[%s673 + $0x70] sm:$0xff]
        %v891 = vld [vmem:[%s673 + $0x78] sm:$0xff]
        %v892 = vld [vmem:[%s673 + $0x80] sm:$0xff]
        %v893 = vld [vmem:[%s673 + $0x88] sm:$0xff]
        %v894 = vld [vmem:[%s673 + $0x90] sm:$0xff]
        %v895 = vld [vmem:[%s673 + $0x98] sm:$0xff]
        %v896 = vld [vmem:[%s673 + $0xa0] sm:$0xff]
        %v897 = vld [vmem:[%s673 + $0xa8] sm:$0xff]
        %v898 = vld [vmem:[%s673 + $0xb0] sm:$0xff]
        %v899 = vld [vmem:[%s673 + $0xb8] sm:$0xff]
        %v900 = vld [vmem:[%s673 + $0xc0] sm:$0xff]
        %v901 = vld [vmem:[%s673 + $0xc8] sm:$0xff]
        %v902 = vld [vmem:[%s673 + $0xd0] sm:$0xff]
        %v903 = vld [vmem:[%s673 + $0xd8] sm:$0xff]
        %v904 = vld [vmem:[%s673 + $0xe0] sm:$0xff]
        %v905 = vld [vmem:[%s673 + $0xe8] sm:$0xff]
        %v906 = vld [vmem:[%s673 + $0xf0] sm:$0xff]
        %v907 = vld [vmem:[%s673 + $0xf8] sm:$0xff]
        %v908 = vld [vmem:[%s673 + $0x100] sm:$0xff]
        %v909 = vld [vmem:[%s673 + $0x108] sm:$0xff]
        %v910 = vld [vmem:[%s673 + $0x110] sm:$0xff]
        %v911 = vld [vmem:[%s673 + $0x118] sm:$0xff]
        %v912 = vld [vmem:[%s673 + $0x120] sm:$0xff]
        %v913 = vld [vmem:[%s673 + $0x128] sm:$0xff]
        %v914 = vld [vmem:[%s673 + $0x130] sm:$0xff]
        %v915 = vld [vmem:[%s673 + $0x138] sm:$0xff]
        %v916 = vld [vmem:[%s673 + $0x140] sm:$0xff]
        %v917 = vld [vmem:[%s673 + $0x148] sm:$0xff]
        %v918 = vld [vmem:[%s673 + $0x150] sm:$0xff]
        %v919 = vld [vmem:[%s673 + $0x158] sm:$0xff]
        %v920 = vld [vmem:[%s673 + $0x160] sm:$0xff]
        %v921 = vld [vmem:[%s673 + $0x168] sm:$0xff]
        %v922 = vld [vmem:[%s673 + $0x170] sm:$0xff]
        %v923 = vld [vmem:[%s673 + $0x178] sm:$0xff]
        %v924 = vld [vmem:[%s800] sm:$0x7]
        %v926 = vlaneseq
        %v927 = vshrl.u32 %v926, 7
        %v928 = vsub.s32 0, %v927
        %v929 = vrot.slane %v924, %v928
        %v930 = vlaneseq
        %v931 = vshrl.u32 %v930, 7
        %v932 = vsub.s32 1, %v931
        %v933 = vrot.slane %v924, %v932
        %v934 = vlaneseq
        %v935 = vshrl.u32 %v934, 7
        %v936 = vsub.s32 2, %v935
        %v937 = vrot.slane %v924, %v936
        %941 = vmatprep.subr.mxu0 %v877
        %942 = vmatpush1.msra.mxu0 %v876
        %943 = vmatprep.subr.mxu0 %v880
        %944 = vmatpush1.msra.mxu0 %v879
        %945 = vmatprep.subr.mxu0 %v883
        %946 = vmatpush1.msra.mxu0 %v882
        %947 = vmatprep.subr.mxu0 %v886
        %948 = vmatpush1.msra.mxu0 %v885
        %949 = vmatprep.subr.mxu0 %v889
        %950 = vmatpush1.msra.mxu0 %v888
        %951 = vmatprep.subr.mxu0 %v892
        %952 = vmatpush1.msra.mxu0 %v891
        %953 = vmatprep.subr.mxu0 %v895
        %954 = vmatpush1.msra.mxu0 %v894
        %955 = vmatprep.subr.mxu0 %v898
        %956 = vmatpush1.msra.mxu0 %v897
        %957 = vmatprep.subr.mxu0 %v901
        %958 = vmatpush1.msra.mxu0 %v900
        %959 = vmatprep.subr.mxu0 %v904
        %960 = vmatpush1.msra.mxu0 %v903
        %961 = vmatprep.subr.mxu0 %v907
        %962 = vmatpush1.msra.mxu0 %v906
        %963 = vmatprep.subr.mxu0 %v910
        %964 = vmatpush1.msra.mxu0 %v909
        %965 = vmatprep.subr.mxu0 %v913
        %966 = vmatpush1.msra.mxu0 %v912
        %967 = vmatprep.subr.mxu0 %v916
        %968 = vmatpush1.msra.mxu0 %v915
        %969 = vmatprep.subr.mxu0 %v919
        %970 = vmatpush1.msra.mxu0 %v918
        %971 = vmatprep.subr.mxu0 %v922
        %972 = vmatpush1.msra.mxu0 %v921
        %973 = vmatprep.subr.mxu0 0.0
        %974 = vmatpush1.msra.mxu0 0.0
        %975 = vmatprep.subr.mxu0 0.0
        %976 = vmatpush1.msra.mxu0 0.0
        %977 = vmatprep.subr.mxu0 0.0
        %978 = vmatpush1.msra.mxu0 0.0
        %979 = vmatprep.subr.mxu0 0.0
        %980 = vmatpush1.msra.mxu0 0.0
        %981 = vmatprep.subr.mxu0 0.0
        %982 = vmatpush1.msra.mxu0 0.0
        %983 = vmatprep.subr.mxu0 0.0
        %984 = vmatpush1.msra.mxu0 0.0
        %985 = vmatprep.subr.mxu0 0.0
        %986 = vmatpush1.msra.mxu0 0.0
        %987 = vmatprep.subr.mxu0 0.0
        %988 = vmatpush1.msra.mxu0 0.0
        %989 = vmatprep.subr.mxu0 0.0
        %990 = vmatpush1.msra.mxu0 0.0
        %991 = vmatprep.subr.mxu0 0.0
        %992 = vmatpush1.msra.mxu0 0.0
        %993 = vmatprep.subr.mxu0 0.0
        %994 = vmatpush1.msra.mxu0 0.0
        %995 = vmatprep.subr.mxu0 0.0
        %996 = vmatpush1.msra.mxu0 0.0
        %997 = vmatprep.subr.mxu0 0.0
        %998 = vmatpush1.msra.mxu0 0.0
        %999 = vmatprep.subr.mxu0 0.0
        %1000 = vmatpush1.msra.mxu0 0.0
        %1001 = vmatprep.subr.mxu0 0.0
        %1002 = vmatpush1.msra.mxu0 0.0
        %1003 = vmatprep.subr.mxu0 0.0
        %1004 = vmatpush1.msra.mxu0 0.0
        %1005 = vmatprep.mubr.f32.mxu0 0.0
        %1006 = vmatmul.mubr.f32.gmra.mrb[0].mxu0 %v874
        %v1007 = vpop.f32.mrb[0].mxu0
        %v1008 = vadd.f32 %v929, %v1007
        %v1009 = vpop.f32.mrb[0].mxu0
        %v1010 = vadd.f32 %v933, %v1009
        %1011 = vmatprep.mubr.f32.mxu0 0.0
        %1012 = vmatmul.mubr.f32.gmra.mrb[0].mxu0 %v875
        %v1013 = vpop.f32.mrb[0].mxu0
        %v1014 = vadd.f32 %v929, %v1013
        %v1015 = vpop.f32.mrb[0].mxu0
        %v1016 = vadd.f32 %v933, %v1015
        %1017 = vdwg.mxu0
        %1018 = vmatprep.subr.mxu0 0.0
        %1019 = vmatpush1.msra.mxu0 %v878
        %1020 = vmatprep.subr.mxu0 0.0
        %1021 = vmatpush1.msra.mxu0 %v881
        %1022 = vmatprep.subr.mxu0 0.0
        %1023 = vmatpush1.msra.mxu0 %v884
        %1024 = vmatprep.subr.mxu0 0.0
        %1025 = vmatpush1.msra.mxu0 %v887
        %1026 = vmatprep.subr.mxu0 0.0
        %1027 = vmatpush1.msra.mxu0 %v890
        %1028 = vmatprep.subr.mxu0 0.0
        %1029 = vmatpush1.msra.mxu0 %v893
        %1030 = vmatprep.subr.mxu0 0.0
        %1031 = vmatpush1.msra.mxu0 %v896
        %1032 = vmatprep.subr.mxu0 0.0
        %1033 = vmatpush1.msra.mxu0 %v899
        %1034 = vmatprep.subr.mxu0 0.0
        %1035 = vmatpush1.msra.mxu0 %v902
        %1036 = vmatprep.subr.mxu0 0.0
        %1037 = vmatpush1.msra.mxu0 %v905
        %1038 = vmatprep.subr.mxu0 0.0
        %1039 = vmatpush1.msra.mxu0 %v908
        %1040 = vmatprep.subr.mxu0 0.0
        %1041 = vmatpush1.msra.mxu0 %v911
        %1042 = vmatprep.subr.mxu0 0.0
        %1043 = vmatpush1.msra.mxu0 %v914
        %1044 = vmatprep.subr.mxu0 0.0
        %1045 = vmatpush1.msra.mxu0 %v917
        %1046 = vmatprep.subr.mxu0 0.0
        %1047 = vmatpush1.msra.mxu0 %v920
        %1048 = vmatprep.subr.mxu0 0.0
        %1049 = vmatpush1.msra.mxu0 %v923
        %1050 = vmatprep.subr.mxu0 0.0
        %1051 = vmatpush1.msra.mxu0 0.0
        %1052 = vmatprep.subr.mxu0 0.0
        %1053 = vmatpush1.msra.mxu0 0.0
        %1054 = vmatprep.subr.mxu0 0.0
        %1055 = vmatpush1.msra.mxu0 0.0
        %1056 = vmatprep.subr.mxu0 0.0
        %1057 = vmatpush1.msra.mxu0 0.0
        %1058 = vmatprep.subr.mxu0 0.0
        %1059 = vmatpush1.msra.mxu0 0.0
        %1060 = vmatprep.subr.mxu0 0.0
        %1061 = vmatpush1.msra.mxu0 0.0
        %1062 = vmatprep.subr.mxu0 0.0
        %1063 = vmatpush1.msra.mxu0 0.0
        %1064 = vmatprep.subr.mxu0 0.0
        %1065 = vmatpush1.msra.mxu0 0.0
        %1066 = vmatprep.subr.mxu0 0.0
        %1067 = vmatpush1.msra.mxu0 0.0
        %1068 = vmatprep.subr.mxu0 0.0
        %1069 = vmatpush1.msra.mxu0 0.0
        %1070 = vmatprep.subr.mxu0 0.0
        %1071 = vmatpush1.msra.mxu0 0.0
        %1072 = vmatprep.subr.mxu0 0.0
        %1073 = vmatpush1.msra.mxu0 0.0
        %1074 = vmatprep.subr.mxu0 0.0
        %1075 = vmatpush1.msra.mxu0 0.0
        %1076 = vmatprep.subr.mxu0 0.0
        %1077 = vmatpush1.msra.mxu0 0.0
        %1078 = vmatprep.subr.mxu0 0.0
        %1079 = vmatpush1.msra.mxu0 0.0
        %1080 = vmatprep.subr.mxu0 0.0
        %1081 = vmatpush1.msra.mxu0 0.0
        %1082 = vmatprep.mubr.f32.mxu0 0.0
        %1083 = vmatmul.mubr.f32.gmra.mrb[0].mxu0 %v874
        %v1084 = vpop.f32.mrb[0].mxu0
        %v1085 = vadd.f32 %v937, %v1084
        %v1086 = vpop.f32.mrb[0].mxu0
        %1087 = vmatprep.mubr.f32.mxu0 0.0
        %1088 = vmatmul.mubr.f32.gmra.mrb[0].mxu0 %v875
        %v1089 = vpop.f32.mrb[0].mxu0
        %v1090 = vadd.f32 %v937, %v1089
        %v1091 = vpop.f32.mrb[0].mxu0
        %1092 = vdwg.mxu0
        %vm1093 = vcmask 130048
        %v1095 = vsel %vm1093, %v1008, 0
        %v1098 = vsel %vm1093, %v1014, 0
        %v1101 = vsel %vm1093, %v1010, 0
        %v1104 = vsel %vm1093, %v1016, 0
        %1106 = vmatprep.subr.mxu0 0.0
        %1107 = vmatpush1.xpose.msra.mxu0 %v1101
        %1108 = vmatprep.subr.mxu0 0.0
        %1109 = vmatpush1.xpose.msra.mxu0 %v1104
        %1110 = vmatprep.subr.mxu0 0.0
        %1111 = vmatpush1.xpose.msra.mxu0 0.0
        %1112 = vmatprep.subr.mxu0 0.0
        %1113 = vmatpush1.xpose.msra.mxu0 0.0
        %1114 = vmatprep.subr.mxu0 0.0
        %1115 = vmatpush1.xpose.msra.mxu0 0.0
        %1116 = vmatprep.subr.mxu0 0.0
        %1117 = vmatpush1.xpose.msra.mxu0 0.0
        %1118 = vmatprep.subr.mxu0 0.0
        %1119 = vmatpush1.xpose.msra.mxu0 0.0
        %1120 = vmatprep.subr.mxu0 0.0
        %1121 = vmatpush1.xpose.msra.mxu0 0.0
        %1122 = vmatprep.subr.mxu0 0.0
        %1123 = vmatpush1.xpose.msra.mxu0 0.0
        %1124 = vmatprep.subr.mxu0 0.0
        %1125 = vmatpush1.xpose.msra.mxu0 0.0
        %1126 = vmatprep.subr.mxu0 0.0
        %1127 = vmatpush1.xpose.msra.mxu0 0.0
        %1128 = vmatprep.subr.mxu0 0.0
        %1129 = vmatpush1.xpose.msra.mxu0 0.0
        %1130 = vmatprep.subr.mxu0 0.0
        %1131 = vmatpush1.xpose.msra.mxu0 0.0
        %1132 = vmatprep.subr.mxu0 0.0
        %1133 = vmatpush1.xpose.msra.mxu0 0.0
        %1134 = vmatprep.subr.mxu0 0.0
        %1135 = vmatpush1.xpose.msra.mxu0 0.0
        %1136 = vmatprep.subr.mxu0 0.0
        %1137 = vmatpush1.xpose.msra.mxu0 0.0
        %1138 = vmatprep.subr.mxu0 0.0
        %1139 = vmatpush1.xpose.msra.mxu0 0.0
        %1140 = vmatprep.subr.mxu0 0.0
        %1141 = vmatpush1.xpose.msra.mxu0 0.0
        %1142 = vmatprep.subr.mxu0 0.0
        %1143 = vmatpush1.xpose.msra.mxu0 0.0
        %1144 = vmatprep.subr.mxu0 0.0
        %1145 = vmatpush1.xpose.msra.mxu0 0.0
        %1146 = vmatprep.subr.mxu0 0.0
        %1147 = vmatpush1.xpose.msra.mxu0 0.0
        %1148 = vmatprep.subr.mxu0 0.0
        %1149 = vmatpush1.xpose.msra.mxu0 0.0
        %1150 = vmatprep.subr.mxu0 0.0
        %1151 = vmatpush1.xpose.msra.mxu0 0.0
        %1152 = vmatprep.subr.mxu0 0.0
        %1153 = vmatpush1.xpose.msra.mxu0 0.0
        %1154 = vmatprep.subr.mxu0 0.0
        %1155 = vmatpush1.xpose.msra.mxu0 0.0
        %1156 = vmatprep.subr.mxu0 0.0
        %1157 = vmatpush1.xpose.msra.mxu0 0.0
        %1158 = vmatprep.subr.mxu0 0.0
        %1159 = vmatpush1.xpose.msra.mxu0 0.0
        %1160 = vmatprep.subr.mxu0 0.0
        %1161 = vmatpush1.xpose.msra.mxu0 0.0
        %1162 = vmatprep.subr.mxu0 0.0
        %1163 = vmatpush1.xpose.msra.mxu0 0.0
        %1164 = vmatprep.subr.mxu0 0.0
        %1165 = vmatpush1.xpose.msra.mxu0 0.0
        %1166 = vmatprep.subr.mxu0 0.0
        %1167 = vmatpush1.xpose.msra.mxu0 0.0
        %1168 = vmatprep.subr.mxu0 0.0
        %1169 = vmatpush1.xpose.msra.mxu0 0.0
        %1170 = vmatprep.mubr.f32.mxu0 0.0
        %1171 = vmatmul.mubr.f32.gmra.mrb[0].mxu0 %v1095
        %v1172 = vpop.f32.mrb[0].mxu0
        %v1173 = vadd.f32 %v833, %v1172
        %v1174 = vpop.f32.mrb[0].mxu0
        %1175 = vmatprep.mubr.f32.mxu0 0.0
        %1176 = vmatmul.mubr.f32.gmra.mrb[0].mxu0 %v1098
        %v1177 = vpop.f32.mrb[0].mxu0
        %v1178 = vadd.f32 %v833, %v1177
        %v1179 = vpop.f32.mrb[0].mxu0
        %1180 = vdwg.mxu0
        %v1181 = vsel %vm1093, %v1173, -inf
        %1182 = vmax.xlane.f32.xlu0 %v1181
        %v1183 = vpop.xlane.xlu0 %1182
        %v1184 = vsel %vm1093, %v1178, -inf
        %1185 = vmax.xlane.f32.xlu0 %v1184
        %v1186 = vpop.xlane.xlu0 %1185
        %v1187 = vsub.f32 %v1173, %v1183
        %v1188 = vsub.f32 %v1178, %v1186
        %v1189 = vmul.f32 %v1187, 1.442695
        %v1190 = vpow.pop %v1189
        %v1191 = vmul.f32 %v1188, 1.442695
        %v1192 = vpow.pop %v1191
        %v1193 = vsel %vm1093, %v1190, 0.0
        %1194 = vadd.xlane.f32.xlu0 %v1193
        %v1195 = vpop.xlane.xlu0 %1194
        %v1196 = vsel %vm1093, %v1192, 0.0
        %1197 = vadd.xlane.f32.xlu0 %v1196
        %v1198 = vpop.xlane.xlu0 %1197
        %v1199 = vrcp.pop %v1195
        %v1200 = vrcp.pop %v1198
        %v1201 = vmul.f32 %v1195, %v1199
        %v1202 = vmul.f32 %v1198, %v1200
        %v1203 = vsub.f32 2.0, %v1201
        %v1204 = vsub.f32 2.0, %v1202
        %v1205 = vmul.f32 %v1199, %v1203
        %v1206 = vmul.f32 %v1200, %v1204
        %v1207 = vmul.f32 %v1190, %v1205
        %v1208 = vmul.f32 %v1192, %v1206
        %v1210 = vsel %vm1093, %v1207, 0
        %v1213 = vsel %vm1093, %v1208, 0
        %1215 = vmatprep.subr.mxu0 0.0
        %1216 = vmatpush1.msra.mxu0 %v1085
        %1217 = vmatprep.subr.mxu0 0.0
        %1218 = vmatpush1.msra.mxu0 %v1090
        %1219 = vmatprep.subr.mxu0 0.0
        %1220 = vmatpush1.msra.mxu0 0.0
        %1221 = vmatprep.subr.mxu0 0.0
        %1222 = vmatpush1.msra.mxu0 0.0
        %1223 = vmatprep.subr.mxu0 0.0
        %1224 = vmatpush1.msra.mxu0 0.0
        %1225 = vmatprep.subr.mxu0 0.0
        %1226 = vmatpush1.msra.mxu0 0.0
        %1227 = vmatprep.subr.mxu0 0.0
        %1228 = vmatpush1.msra.mxu0 0.0
        %1229 = vmatprep.subr.mxu0 0.0
        %1230 = vmatpush1.msra.mxu0 0.0
        %1231 = vmatprep.subr.mxu0 0.0
        %1232 = vmatpush1.msra.mxu0 0.0
        %1233 = vmatprep.subr.mxu0 0.0
        %1234 = vmatpush1.msra.mxu0 0.0
        %1235 = vmatprep.subr.mxu0 0.0
        %1236 = vmatpush1.msra.mxu0 0.0
        %1237 = vmatprep.subr.mxu0 0.0
        %1238 = vmatpush1.msra.mxu0 0.0
        %1239 = vmatprep.subr.mxu0 0.0
        %1240 = vmatpush1.msra.mxu0 0.0
        %1241 = vmatprep.subr.mxu0 0.0
        %1242 = vmatpush1.msra.mxu0 0.0
        %1243 = vmatprep.subr.mxu0 0.0
        %1244 = vmatpush1.msra.mxu0 0.0
        %1245 = vmatprep.subr.mxu0 0.0
        %1246 = vmatpush1.msra.mxu0 0.0
        %1247 = vmatprep.subr.mxu0 0.0
        %1248 = vmatpush1.msra.mxu0 0.0
        %1249 = vmatprep.subr.mxu0 0.0
        %1250 = vmatpush1.msra.mxu0 0.0
        %1251 = vmatprep.subr.mxu0 0.0
        %1252 = vmatpush1.msra.mxu0 0.0
        %1253 = vmatprep.subr.mxu0 0.0
        %1254 = vmatpush1.msra.mxu0 0.0
        %1255 = vmatprep.subr.mxu0 0.0
        %1256 = vmatpush1.msra.mxu0 0.0
        %1257 = vmatprep.subr.mxu0 0.0
        %1258 = vmatpush1.msra.mxu0 0.0
        %1259 = vmatprep.subr.mxu0 0.0
        %1260 = vmatpush1.msra.mxu0 0.0
        %1261 = vmatprep.subr.mxu0 0.0
        %1262 = vmatpush1.msra.mxu0 0.0
        %1263 = vmatprep.subr.mxu0 0.0
        %1264 = vmatpush1.msra.mxu0 0.0
        %1265 = vmatprep.subr.mxu0 0.0
        %1266 = vmatpush1.msra.mxu0 0.0
        %1267 = vmatprep.subr.mxu0 0.0
        %1268 = vmatpush1.msra.mxu0 0.0
        %1269 = vmatprep.subr.mxu0 0.0
        %1270 = vmatpush1.msra.mxu0 0.0
        %1271 = vmatprep.subr.mxu0 0.0
        %1272 = vmatpush1.msra.mxu0 0.0
        %1273 = vmatprep.subr.mxu0 0.0
        %1274 = vmatpush1.msra.mxu0 0.0
        %1275 = vmatprep.subr.mxu0 0.0
        %1276 = vmatpush1.msra.mxu0 0.0
        %1277 = vmatprep.subr.mxu0 0.0
        %1278 = vmatpush1.msra.mxu0 0.0
        %1279 = vmatprep.mubr.f32.mxu0 0.0
        %1280 = vmatmul.mubr.f32.gmra.mrb[0].mxu0 %v1210
        %v1281 = vpop.f32.mrb[0].mxu0
        %v1282 = vadd.f32 0.0, %v1281
        %v1283 = vpop.f32.mrb[0].mxu0
        %1284 = vmatprep.mubr.f32.mxu0 0.0
        %1285 = vmatmul.mubr.f32.gmra.mrb[0].mxu0 %v1213
        %v1286 = vpop.f32.mrb[0].mxu0
        %v1287 = vadd.f32 0.0, %v1286
        %v1288 = vpop.f32.mrb[0].mxu0
        %1289 = vdwg.mxu0
        %1290 = vrot.lane.b32.xlu0 %v1008, 112
        %v1291 = vpop.permute.xlu0 %1290
        %1292 = vrot.lane.b32.xlu0 %v1014, 112
        %v1293 = vpop.permute.xlu0 %1292
        %1294 = vrot.lane.b32.xlu0 %v1010, 112
        %v1295 = vpop.permute.xlu0 %1294
        %1296 = vrot.lane.b32.xlu0 %v1016, 112
        %v1297 = vpop.permute.xlu0 %1296
        %v1298 = vsel %vm1093, %v1291, 0
        %v1300 = vsel %vm1093, %v1293, 0
        %v1302 = vsel %vm1093, %v1295, 0
        %v1304 = vsel %vm1093, %v1297, 0
        %1306 = vmatprep.subr.mxu0 0.0
        %1307 = vmatpush1.xpose.msra.mxu0 %v1302
        %1308 = vmatprep.subr.mxu0 0.0
        %1309 = vmatpush1.xpose.msra.mxu0 %v1304
        %1310 = vmatprep.subr.mxu0 0.0
        %1311 = vmatpush1.xpose.msra.mxu0 0.0
        %1312 = vmatprep.subr.mxu0 0.0
        %1313 = vmatpush1.xpose.msra.mxu0 0.0
        %1314 = vmatprep.subr.mxu0 0.0
        %1315 = vmatpush1.xpose.msra.mxu0 0.0
        %1316 = vmatprep.subr.mxu0 0.0
        %1317 = vmatpush1.xpose.msra.mxu0 0.0
        %1318 = vmatprep.subr.mxu0 0.0
        %1319 = vmatpush1.xpose.msra.mxu0 0.0
        %1320 = vmatprep.subr.mxu0 0.0
        %1321 = vmatpush1.xpose.msra.mxu0 0.0
        %1322 = vmatprep.subr.mxu0 0.0
        %1323 = vmatpush1.xpose.msra.mxu0 0.0
        %1324 = vmatprep.subr.mxu0 0.0
        %1325 = vmatpush1.xpose.msra.mxu0 0.0
        %1326 = vmatprep.subr.mxu0 0.0
        %1327 = vmatpush1.xpose.msra.mxu0 0.0
        %1328 = vmatprep.subr.mxu0 0.0
        %1329 = vmatpush1.xpose.msra.mxu0 0.0
        %1330 = vmatprep.subr.mxu0 0.0
        %1331 = vmatpush1.xpose.msra.mxu0 0.0
        %1332 = vmatprep.subr.mxu0 0.0
        %1333 = vmatpush1.xpose.msra.mxu0 0.0
        %1334 = vmatprep.subr.mxu0 0.0
        %1335 = vmatpush1.xpose.msra.mxu0 0.0
        %1336 = vmatprep.subr.mxu0 0.0
        %1337 = vmatpush1.xpose.msra.mxu0 0.0
        %1338 = vmatprep.subr.mxu0 0.0
        %1339 = vmatpush1.xpose.msra.mxu0 0.0
        %1340 = vmatprep.subr.mxu0 0.0
        %1341 = vmatpush1.xpose.msra.mxu0 0.0
        %1342 = vmatprep.subr.mxu0 0.0
        %1343 = vmatpush1.xpose.msra.mxu0 0.0
        %1344 = vmatprep.subr.mxu0 0.0
        %1345 = vmatpush1.xpose.msra.mxu0 0.0
        %1346 = vmatprep.subr.mxu0 0.0
        %1347 = vmatpush1.xpose.msra.mxu0 0.0
        %1348 = vmatprep.subr.mxu0 0.0
        %1349 = vmatpush1.xpose.msra.mxu0 0.0
        %1350 = vmatprep.subr.mxu0 0.0
        %1351 = vmatpush1.xpose.msra.mxu0 0.0
        %1352 = vmatprep.subr.mxu0 0.0
        %1353 = vmatpush1.xpose.msra.mxu0 0.0
        %1354 = vmatprep.subr.mxu0 0.0
        %1355 = vmatpush1.xpose.msra.mxu0 0.0
        %1356 = vmatprep.subr.mxu0 0.0
        %1357 = vmatpush1.xpose.msra.mxu0 0.0
        %1358 = vmatprep.subr.mxu0 0.0
        %1359 = vmatpush1.xpose.msra.mxu0 0.0
        %1360 = vmatprep.subr.mxu0 0.0
        %1361 = vmatpush1.xpose.msra.mxu0 0.0
        %1362 = vmatprep.subr.mxu0 0.0
        %1363 = vmatpush1.xpose.msra.mxu0 0.0
        %1364 = vmatprep.subr.mxu0 0.0
        %1365 = vmatpush1.xpose.msra.mxu0 0.0
        %1366 = vmatprep.subr.mxu0 0.0
        %1367 = vmatpush1.xpose.msra.mxu0 0.0
        %1368 = vmatprep.subr.mxu0 0.0
        %1369 = vmatpush1.xpose.msra.mxu0 0.0
        %1370 = vmatprep.mubr.f32.mxu0 0.0
        %1371 = vmatmul.mubr.f32.gmra.mrb[0].mxu0 %v1298
        %v1372 = vpop.f32.mrb[0].mxu0
        %v1373 = vadd.f32 %v833, %v1372
        %v1374 = vpop.f32.mrb[0].mxu0
        %1375 = vmatprep.mubr.f32.mxu0 0.0
        %1376 = vmatmul.mubr.f32.gmra.mrb[0].mxu0 %v1300
        %v1377 = vpop.f32.mrb[0].mxu0
        %v1378 = vadd.f32 %v833, %v1377
        %v1379 = vpop.f32.mrb[0].mxu0
        %1380 = vdwg.mxu0
        %v1381 = vsel %vm1093, %v1373, -inf
        %1382 = vmax.xlane.f32.xlu0 %v1381
        %v1383 = vpop.xlane.xlu0 %1382
        %v1384 = vsel %vm1093, %v1378, -inf
        %1385 = vmax.xlane.f32.xlu0 %v1384
        %v1386 = vpop.xlane.xlu0 %1385
        %v1387 = vsub.f32 %v1373, %v1383
        %v1388 = vsub.f32 %v1378, %v1386
        %v1389 = vmul.f32 %v1387, 1.442695
        %v1390 = vpow.pop %v1389
        %v1391 = vmul.f32 %v1388, 1.442695
        %v1392 = vpow.pop %v1391
        %v1393 = vsel %vm1093, %v1390, 0.0
        %1394 = vadd.xlane.f32.xlu0 %v1393
        %v1395 = vpop.xlane.xlu0 %1394
        %v1396 = vsel %vm1093, %v1392, 0.0
        %1397 = vadd.xlane.f32.xlu0 %v1396
        %v1398 = vpop.xlane.xlu0 %1397
        %v1399 = vrcp.pop %v1395
        %v1400 = vrcp.pop %v1398
        %v1401 = vmul.f32 %v1395, %v1399
        %v1402 = vmul.f32 %v1398, %v1400
        %v1403 = vsub.f32 2.0, %v1401
        %v1404 = vsub.f32 2.0, %v1402
        %v1405 = vmul.f32 %v1399, %v1403
        %v1406 = vmul.f32 %v1400, %v1404
        %v1407 = vmul.f32 %v1390, %v1405
        %v1408 = vmul.f32 %v1392, %v1406
        %1411 = vrot.lane.b32.xlu0 %v1085, 112
        %v1412 = vpop.permute.xlu0 %1411
        %1413 = vrot.lane.b32.xlu0 %v1090, 112
        %v1414 = vpop.permute.xlu0 %1413
        %v1418 = vsel %vm1093, %v1407, 0
        %v1421 = vsel %vm1093, %v1408, 0
        %1423 = vmatprep.subr.mxu0 0.0
        %1424 = vmatpush1.msra.mxu0 %v1412
        %1425 = vmatprep.subr.mxu0 0.0
        %1426 = vmatpush1.msra.mxu0 %v1414
        %1427 = vmatprep.subr.mxu0 0.0
        %1428 = vmatpush1.msra.mxu0 0.0
        %1429 = vmatprep.subr.mxu0 0.0
        %1430 = vmatpush1.msra.mxu0 0.0
        %1431 = vmatprep.subr.mxu0 0.0
        %1432 = vmatpush1.msra.mxu0 0.0
        %1433 = vmatprep.subr.mxu0 0.0
        %1434 = vmatpush1.msra.mxu0 0.0
        %1435 = vmatprep.subr.mxu0 0.0
        %1436 = vmatpush1.msra.mxu0 0.0
        %1437 = vmatprep.subr.mxu0 0.0
        %1438 = vmatpush1.msra.mxu0 0.0
        %1439 = vmatprep.subr.mxu0 0.0
        %1440 = vmatpush1.msra.mxu0 0.0
        %1441 = vmatprep.subr.mxu0 0.0
        %1442 = vmatpush1.msra.mxu0 0.0
        %1443 = vmatprep.subr.mxu0 0.0
        %1444 = vmatpush1.msra.mxu0 0.0
        %1445 = vmatprep.subr.mxu0 0.0
        %1446 = vmatpush1.msra.mxu0 0.0
        %1447 = vmatprep.subr.mxu0 0.0
        %1448 = vmatpush1.msra.mxu0 0.0
        %1449 = vmatprep.subr.mxu0 0.0
        %1450 = vmatpush1.msra.mxu0 0.0
        %1451 = vmatprep.subr.mxu0 0.0
        %1452 = vmatpush1.msra.mxu0 0.0
        %1453 = vmatprep.subr.mxu0 0.0
        %1454 = vmatpush1.msra.mxu0 0.0
        %1455 = vmatprep.subr.mxu0 0.0
        %1456 = vmatpush1.msra.mxu0 0.0
        %1457 = vmatprep.subr.mxu0 0.0
        %1458 = vmatpush1.msra.mxu0 0.0
        %1459 = vmatprep.subr.mxu0 0.0
        %1460 = vmatpush1.msra.mxu0 0.0
        %1461 = vmatprep.subr.mxu0 0.0
        %1462 = vmatpush1.msra.mxu0 0.0
        %1463 = vmatprep.subr.mxu0 0.0
        %1464 = vmatpush1.msra.mxu0 0.0
        %1465 = vmatprep.subr.mxu0 0.0
        %1466 = vmatpush1.msra.mxu0 0.0
        %1467 = vmatprep.subr.mxu0 0.0
        %1468 = vmatpush1.msra.mxu0 0.0
        %1469 = vmatprep.subr.mxu0 0.0
        %1470 = vmatpush1.msra.mxu0 0.0
        %1471 = vmatprep.subr.mxu0 0.0
        %1472 = vmatpush1.msra.mxu0 0.0
        %1473 = vmatprep.subr.mxu0 0.0
        %1474 = vmatpush1.msra.mxu0 0.0
        %1475 = vmatprep.subr.mxu0 0.0
        %1476 = vmatpush1.msra.mxu0 0.0
        %1477 = vmatprep.subr.mxu0 0.0
        %1478 = vmatpush1.msra.mxu0 0.0
        %1479 = vmatprep.subr.mxu0 0.0
        %1480 = vmatpush1.msra.mxu0 0.0
        %1481 = vmatprep.subr.mxu0 0.0
        %1482 = vmatpush1.msra.mxu0 0.0
        %1483 = vmatprep.subr.mxu0 0.0
        %1484 = vmatpush1.msra.mxu0 0.0
        %1485 = vmatprep.subr.mxu0 0.0
        %1486 = vmatpush1.msra.mxu0 0.0
        %1487 = vmatprep.mubr.f32.mxu0 0.0
        %1488 = vmatmul.mubr.f32.gmra.mrb[0].mxu0 %v1418
        %v1489 = vpop.f32.mrb[0].mxu0
        %v1490 = vadd.f32 0.0, %v1489
        %v1491 = vpop.f32.mrb[0].mxu0
        %1492 = vmatprep.mubr.f32.mxu0 0.0
        %1493 = vmatmul.mubr.f32.gmra.mrb[0].mxu0 %v1421
        %v1494 = vpop.f32.mrb[0].mxu0
        %v1495 = vadd.f32 0.0, %v1494
        %v1496 = vpop.f32.mrb[0].mxu0
        %1497 = vdwg.mxu0
        %1498 = vrot.lane.b32.xlu0 %v1008, 96
        %v1499 = vpop.permute.xlu0 %1498
        %1500 = vrot.lane.b32.xlu0 %v1014, 96
        %v1501 = vpop.permute.xlu0 %1500
        %1502 = vrot.lane.b32.xlu0 %v1010, 96
        %v1503 = vpop.permute.xlu0 %1502
        %1504 = vrot.lane.b32.xlu0 %v1016, 96
        %v1505 = vpop.permute.xlu0 %1504
        %v1506 = vsel %vm1093, %v1499, 0
        %v1508 = vsel %vm1093, %v1501, 0
        %v1510 = vsel %vm1093, %v1503, 0
        %v1512 = vsel %vm1093, %v1505, 0
        %1514 = vmatprep.subr.mxu0 0.0
        %1515 = vmatpush1.xpose.msra.mxu0 %v1510
        %1516 = vmatprep.subr.mxu0 0.0
        %1517 = vmatpush1.xpose.msra.mxu0 %v1512
        %1518 = vmatprep.subr.mxu0 0.0
        %1519 = vmatpush1.xpose.msra.mxu0 0.0
        %1520 = vmatprep.subr.mxu0 0.0
        %1521 = vmatpush1.xpose.msra.mxu0 0.0
        %1522 = vmatprep.subr.mxu0 0.0
        %1523 = vmatpush1.xpose.msra.mxu0 0.0
        %1524 = vmatprep.subr.mxu0 0.0
        %1525 = vmatpush1.xpose.msra.mxu0 0.0
        %1526 = vmatprep.subr.mxu0 0.0
        %1527 = vmatpush1.xpose.msra.mxu0 0.0
        %1528 = vmatprep.subr.mxu0 0.0
        %1529 = vmatpush1.xpose.msra.mxu0 0.0
        %1530 = vmatprep.subr.mxu0 0.0
        %1531 = vmatpush1.xpose.msra.mxu0 0.0
        %1532 = vmatprep.subr.mxu0 0.0
        %1533 = vmatpush1.xpose.msra.mxu0 0.0
        %1534 = vmatprep.subr.mxu0 0.0
        %1535 = vmatpush1.xpose.msra.mxu0 0.0
        %1536 = vmatprep.subr.mxu0 0.0
        %1537 = vmatpush1.xpose.msra.mxu0 0.0
        %1538 = vmatprep.subr.mxu0 0.0
        %1539 = vmatpush1.xpose.msra.mxu0 0.0
        %1540 = vmatprep.subr.mxu0 0.0
        %1541 = vmatpush1.xpose.msra.mxu0 0.0
        %1542 = vmatprep.subr.mxu0 0.0
        %1543 = vmatpush1.xpose.msra.mxu0 0.0
        %1544 = vmatprep.subr.mxu0 0.0
        %1545 = vmatpush1.xpose.msra.mxu0 0.0
        %1546 = vmatprep.subr.mxu0 0.0
        %1547 = vmatpush1.xpose.msra.mxu0 0.0
        %1548 = vmatprep.subr.mxu0 0.0
        %1549 = vmatpush1.xpose.msra.mxu0 0.0
        %1550 = vmatprep.subr.mxu0 0.0
        %1551 = vmatpush1.xpose.msra.mxu0 0.0
        %1552 = vmatprep.subr.mxu0 0.0
        %1553 = vmatpush1.xpose.msra.mxu0 0.0
        %1554 = vmatprep.subr.mxu0 0.0
        %1555 = vmatpush1.xpose.msra.mxu0 0.0
        %1556 = vmatprep.subr.mxu0 0.0
        %1557 = vmatpush1.xpose.msra.mxu0 0.0
        %1558 = vmatprep.subr.mxu0 0.0
        %1559 = vmatpush1.xpose.msra.mxu0 0.0
        %1560 = vmatprep.subr.mxu0 0.0
        %1561 = vmatpush1.xpose.msra.mxu0 0.0
        %1562 = vmatprep.subr.mxu0 0.0
        %1563 = vmatpush1.xpose.msra.mxu0 0.0
        %1564 = vmatprep.subr.mxu0 0.0
        %1565 = vmatpush1.xpose.msra.mxu0 0.0
        %1566 = vmatprep.subr.mxu0 0.0
        %1567 = vmatpush1.xpose.msra.mxu0 0.0
        %1568 = vmatprep.subr.mxu0 0.0
        %1569 = vmatpush1.xpose.msra.mxu0 0.0
        %1570 = vmatprep.subr.mxu0 0.0
        %1571 = vmatpush1.xpose.msra.mxu0 0.0
        %1572 = vmatprep.subr.mxu0 0.0
        %1573 = vmatpush1.xpose.msra.mxu0 0.0
        %1574 = vmatprep.subr.mxu0 0.0
        %1575 = vmatpush1.xpose.msra.mxu0 0.0
        %1576 = vmatprep.subr.mxu0 0.0
        %1577 = vmatpush1.xpose.msra.mxu0 0.0
        %1578 = vmatprep.mubr.f32.mxu0 0.0
        %1579 = vmatmul.mubr.f32.gmra.mrb[0].mxu0 %v1506
        %v1580 = vpop.f32.mrb[0].mxu0
        %v1581 = vadd.f32 %v833, %v1580
        %v1582 = vpop.f32.mrb[0].mxu0
        %1583 = vmatprep.mubr.f32.mxu0 0.0
        %1584 = vmatmul.mubr.f32.gmra.mrb[0].mxu0 %v1508
        %v1585 = vpop.f32.mrb[0].mxu0
        %v1586 = vadd.f32 %v833, %v1585
        %v1587 = vpop.f32.mrb[0].mxu0
        %1588 = vdwg.mxu0
        %v1589 = vsel %vm1093, %v1581, -inf
        %1590 = vmax.xlane.f32.xlu0 %v1589
        %v1591 = vpop.xlane.xlu0 %1590
        %v1592 = vsel %vm1093, %v1586, -inf
        %1593 = vmax.xlane.f32.xlu0 %v1592
        %v1594 = vpop.xlane.xlu0 %1593
        %v1595 = vsub.f32 %v1581, %v1591
        %v1596 = vsub.f32 %v1586, %v1594
        %v1597 = vmul.f32 %v1595, 1.442695
        %v1598 = vpow.pop %v1597
        %v1599 = vmul.f32 %v1596, 1.442695
        %v1600 = vpow.pop %v1599
        %v1601 = vsel %vm1093, %v1598, 0.0
        %1602 = vadd.xlane.f32.xlu0 %v1601
        %v1603 = vpop.xlane.xlu0 %1602
        %v1604 = vsel %vm1093, %v1600, 0.0
        %1605 = vadd.xlane.f32.xlu0 %v1604
        %v1606 = vpop.xlane.xlu0 %1605
        %v1607 = vrcp.pop %v1603
        %v1608 = vrcp.pop %v1606
        %v1609 = vmul.f32 %v1603, %v1607
        %v1610 = vmul.f32 %v1606, %v1608
        %v1611 = vsub.f32 2.0, %v1609
        %v1612 = vsub.f32 2.0, %v1610
        %v1613 = vmul.f32 %v1607, %v1611
        %v1614 = vmul.f32 %v1608, %v1612
        %v1615 = vmul.f32 %v1598, %v1613
        %v1616 = vmul.f32 %v1600, %v1614
        %1617 = vrot.lane.b32.xlu0 %v1085, 96
        %v1618 = vpop.permute.xlu0 %1617
        %1619 = vrot.lane.b32.xlu0 %v1090, 96
        %v1620 = vpop.permute.xlu0 %1619
        %v1624 = vsel %vm1093, %v1615, 0
        %v1627 = vsel %vm1093, %v1616, 0
        %1629 = vmatprep.subr.mxu0 0.0
        %1630 = vmatpush1.msra.mxu0 %v1618
        %1631 = vmatprep.subr.mxu0 0.0
        %1632 = vmatpush1.msra.mxu0 %v1620
        %1633 = vmatprep.subr.mxu0 0.0
        %1634 = vmatpush1.msra.mxu0 0.0
        %1635 = vmatprep.subr.mxu0 0.0
        %1636 = vmatpush1.msra.mxu0 0.0
        %1637 = vmatprep.subr.mxu0 0.0
        %1638 = vmatpush1.msra.mxu0 0.0
        %1639 = vmatprep.subr.mxu0 0.0
        %1640 = vmatpush1.msra.mxu0 0.0
        %1641 = vmatprep.subr.mxu0 0.0
        %1642 = vmatpush1.msra.mxu0 0.0
        %1643 = vmatprep.subr.mxu0 0.0
        %1644 = vmatpush1.msra.mxu0 0.0
        %1645 = vmatprep.subr.mxu0 0.0
        %1646 = vmatpush1.msra.mxu0 0.0
        %1647 = vmatprep.subr.mxu0 0.0
        %1648 = vmatpush1.msra.mxu0 0.0
        %1649 = vmatprep.subr.mxu0 0.0
        %1650 = vmatpush1.msra.mxu0 0.0
        %1651 = vmatprep.subr.mxu0 0.0
        %1652 = vmatpush1.msra.mxu0 0.0
        %1653 = vmatprep.subr.mxu0 0.0
        %1654 = vmatpush1.msra.mxu0 0.0
        %1655 = vmatprep.subr.mxu0 0.0
        %1656 = vmatpush1.msra.mxu0 0.0
        %1657 = vmatprep.subr.mxu0 0.0
        %1658 = vmatpush1.msra.mxu0 0.0
        %1659 = vmatprep.subr.mxu0 0.0
        %1660 = vmatpush1.msra.mxu0 0.0
        %1661 = vmatprep.subr.mxu0 0.0
        %1662 = vmatpush1.msra.mxu0 0.0
        %1663 = vmatprep.subr.mxu0 0.0
        %1664 = vmatpush1.msra.mxu0 0.0
        %1665 = vmatprep.subr.mxu0 0.0
        %1666 = vmatpush1.msra.mxu0 0.0
        %1667 = vmatprep.subr.mxu0 0.0
        %1668 = vmatpush1.msra.mxu0 0.0
        %1669 = vmatprep.subr.mxu0 0.0
        %1670 = vmatpush1.msra.mxu0 0.0
        %1671 = vmatprep.subr.mxu0 0.0
        %1672 = vmatpush1.msra.mxu0 0.0
        %1673 = vmatprep.subr.mxu0 0.0
        %1674 = vmatpush1.msra.mxu0 0.0
        %1675 = vmatprep.subr.mxu0 0.0
        %1676 = vmatpush1.msra.mxu0 0.0
        %1677 = vmatprep.subr.mxu0 0.0
        %1678 = vmatpush1.msra.mxu0 0.0
        %1679 = vmatprep.subr.mxu0 0.0
        %1680 = vmatpush1.msra.mxu0 0.0
        %1681 = vmatprep.subr.mxu0 0.0
        %1682 = vmatpush1.msra.mxu0 0.0
        %1683 = vmatprep.subr.mxu0 0.0
        %1684 = vmatpush1.msra.mxu0 0.0
        %1685 = vmatprep.subr.mxu0 0.0
        %1686 = vmatpush1.msra.mxu0 0.0
        %1687 = vmatprep.subr.mxu0 0.0
        %1688 = vmatpush1.msra.mxu0 0.0
        %1689 = vmatprep.subr.mxu0 0.0
        %1690 = vmatpush1.msra.mxu0 0.0
        %1691 = vmatprep.subr.mxu0 0.0
        %1692 = vmatpush1.msra.mxu0 0.0
        %1693 = vmatprep.mubr.f32.mxu0 0.0
        %1694 = vmatmul.mubr.f32.gmra.mrb[0].mxu0 %v1624
        %v1695 = vpop.f32.mrb[0].mxu0
        %v1696 = vadd.f32 0.0, %v1695
        %v1697 = vpop.f32.mrb[0].mxu0
        %1698 = vmatprep.mubr.f32.mxu0 0.0
        %1699 = vmatmul.mubr.f32.gmra.mrb[0].mxu0 %v1627
        %v1700 = vpop.f32.mrb[0].mxu0
        %v1701 = vadd.f32 0.0, %v1700
        %v1702 = vpop.f32.mrb[0].mxu0
        %1703 = vdwg.mxu0
        %1704 = vrot.lane.b32.xlu0 %v1008, 80
        %v1705 = vpop.permute.xlu0 %1704
        %1706 = vrot.lane.b32.xlu0 %v1014, 80
        %v1707 = vpop.permute.xlu0 %1706
        %1708 = vrot.lane.b32.xlu0 %v1010, 80
        %v1709 = vpop.permute.xlu0 %1708
        %1710 = vrot.lane.b32.xlu0 %v1016, 80
        %v1711 = vpop.permute.xlu0 %1710
        %v1712 = vsel %vm1093, %v1705, 0
        %v1714 = vsel %vm1093, %v1707, 0
        %v1716 = vsel %vm1093, %v1709, 0
        %v1718 = vsel %vm1093, %v1711, 0
        %1720 = vmatprep.subr.mxu0 0.0
        %1721 = vmatpush1.xpose.msra.mxu0 %v1716
        %1722 = vmatprep.subr.mxu0 0.0
        %1723 = vmatpush1.xpose.msra.mxu0 %v1718
        %1724 = vmatprep.subr.mxu0 0.0
        %1725 = vmatpush1.xpose.msra.mxu0 0.0
        %1726 = vmatprep.subr.mxu0 0.0
        %1727 = vmatpush1.xpose.msra.mxu0 0.0
        %1728 = vmatprep.subr.mxu0 0.0
        %1729 = vmatpush1.xpose.msra.mxu0 0.0
        %1730 = vmatprep.subr.mxu0 0.0
        %1731 = vmatpush1.xpose.msra.mxu0 0.0
        %1732 = vmatprep.subr.mxu0 0.0
        %1733 = vmatpush1.xpose.msra.mxu0 0.0
        %1734 = vmatprep.subr.mxu0 0.0
        %1735 = vmatpush1.xpose.msra.mxu0 0.0
        %1736 = vmatprep.subr.mxu0 0.0
        %1737 = vmatpush1.xpose.msra.mxu0 0.0
        %1738 = vmatprep.subr.mxu0 0.0
        %1739 = vmatpush1.xpose.msra.mxu0 0.0
        %1740 = vmatprep.subr.mxu0 0.0
        %1741 = vmatpush1.xpose.msra.mxu0 0.0
        %1742 = vmatprep.subr.mxu0 0.0
        %1743 = vmatpush1.xpose.msra.mxu0 0.0
        %1744 = vmatprep.subr.mxu0 0.0
        %1745 = vmatpush1.xpose.msra.mxu0 0.0
        %1746 = vmatprep.subr.mxu0 0.0
        %1747 = vmatpush1.xpose.msra.mxu0 0.0
        %1748 = vmatprep.subr.mxu0 0.0
        %1749 = vmatpush1.xpose.msra.mxu0 0.0
        %1750 = vmatprep.subr.mxu0 0.0
        %1751 = vmatpush1.xpose.msra.mxu0 0.0
        %1752 = vmatprep.subr.mxu0 0.0
        %1753 = vmatpush1.xpose.msra.mxu0 0.0
        %1754 = vmatprep.subr.mxu0 0.0
        %1755 = vmatpush1.xpose.msra.mxu0 0.0
        %1756 = vmatprep.subr.mxu0 0.0
        %1757 = vmatpush1.xpose.msra.mxu0 0.0
        %1758 = vmatprep.subr.mxu0 0.0
        %1759 = vmatpush1.xpose.msra.mxu0 0.0
        %1760 = vmatprep.subr.mxu0 0.0
        %1761 = vmatpush1.xpose.msra.mxu0 0.0
        %1762 = vmatprep.subr.mxu0 0.0
        %1763 = vmatpush1.xpose.msra.mxu0 0.0
        %1764 = vmatprep.subr.mxu0 0.0
        %1765 = vmatpush1.xpose.msra.mxu0 0.0
        %1766 = vmatprep.subr.mxu0 0.0
        %1767 = vmatpush1.xpose.msra.mxu0 0.0
        %1768 = vmatprep.subr.mxu0 0.0
        %1769 = vmatpush1.xpose.msra.mxu0 0.0
        %1770 = vmatprep.subr.mxu0 0.0
        %1771 = vmatpush1.xpose.msra.mxu0 0.0
        %1772 = vmatprep.subr.mxu0 0.0
        %1773 = vmatpush1.xpose.msra.mxu0 0.0
        %1774 = vmatprep.subr.mxu0 0.0
        %1775 = vmatpush1.xpose.msra.mxu0 0.0
        %1776 = vmatprep.subr.mxu0 0.0
        %1777 = vmatpush1.xpose.msra.mxu0 0.0
        %1778 = vmatprep.subr.mxu0 0.0
        %1779 = vmatpush1.xpose.msra.mxu0 0.0
        %1780 = vmatprep.subr.mxu0 0.0
        %1781 = vmatpush1.xpose.msra.mxu0 0.0
        %1782 = vmatprep.subr.mxu0 0.0
        %1783 = vmatpush1.xpose.msra.mxu0 0.0
        %1784 = vmatprep.mubr.f32.mxu0 0.0
        %1785 = vmatmul.mubr.f32.gmra.mrb[0].mxu0 %v1712
        %v1786 = vpop.f32.mrb[0].mxu0
        %v1787 = vadd.f32 %v833, %v1786
        %v1788 = vpop.f32.mrb[0].mxu0
        %1789 = vmatprep.mubr.f32.mxu0 0.0
        %1790 = vmatmul.mubr.f32.gmra.mrb[0].mxu0 %v1714
        %v1791 = vpop.f32.mrb[0].mxu0
        %v1792 = vadd.f32 %v833, %v1791
        %v1793 = vpop.f32.mrb[0].mxu0
        %1794 = vdwg.mxu0
        %v1795 = vsel %vm1093, %v1787, -inf
        %1796 = vmax.xlane.f32.xlu0 %v1795
        %v1797 = vpop.xlane.xlu0 %1796
        %v1798 = vsel %vm1093, %v1792, -inf
        %1799 = vmax.xlane.f32.xlu0 %v1798
        %v1800 = vpop.xlane.xlu0 %1799
        %v1801 = vsub.f32 %v1787, %v1797
        %v1802 = vsub.f32 %v1792, %v1800
        %v1803 = vmul.f32 %v1801, 1.442695
        %v1804 = vpow.pop %v1803
        %v1805 = vmul.f32 %v1802, 1.442695
        %v1806 = vpow.pop %v1805
        %v1807 = vsel %vm1093, %v1804, 0.0
        %1808 = vadd.xlane.f32.xlu0 %v1807
        %v1809 = vpop.xlane.xlu0 %1808
        %v1810 = vsel %vm1093, %v1806, 0.0
        %1811 = vadd.xlane.f32.xlu0 %v1810
        %v1812 = vpop.xlane.xlu0 %1811
        %v1813 = vrcp.pop %v1809
        %v1814 = vrcp.pop %v1812
        %v1815 = vmul.f32 %v1809, %v1813
        %v1816 = vmul.f32 %v1812, %v1814
        %v1817 = vsub.f32 2.0, %v1815
        %v1818 = vsub.f32 2.0, %v1816
        %v1819 = vmul.f32 %v1813, %v1817
        %v1820 = vmul.f32 %v1814, %v1818
        %v1821 = vmul.f32 %v1804, %v1819
        %v1822 = vmul.f32 %v1806, %v1820
        %1823 = vrot.lane.b32.xlu0 %v1085, 80
        %v1824 = vpop.permute.xlu0 %1823
        %1825 = vrot.lane.b32.xlu0 %v1090, 80
        %v1826 = vpop.permute.xlu0 %1825
        %v1830 = vsel %vm1093, %v1821, 0
        %v1833 = vsel %vm1093, %v1822, 0
        %1835 = vmatprep.subr.mxu0 0.0
        %1836 = vmatpush1.msra.mxu0 %v1824
        %1837 = vmatprep.subr.mxu0 0.0
        %1838 = vmatpush1.msra.mxu0 %v1826
        %1839 = vmatprep.subr.mxu0 0.0
        %1840 = vmatpush1.msra.mxu0 0.0
        %1841 = vmatprep.subr.mxu0 0.0
        %1842 = vmatpush1.msra.mxu0 0.0
        %1843 = vmatprep.subr.mxu0 0.0
        %1844 = vmatpush1.msra.mxu0 0.0
        %1845 = vmatprep.subr.mxu0 0.0
        %1846 = vmatpush1.msra.mxu0 0.0
        %1847 = vmatprep.subr.mxu0 0.0
        %1848 = vmatpush1.msra.mxu0 0.0
        %1849 = vmatprep.subr.mxu0 0.0
        %1850 = vmatpush1.msra.mxu0 0.0
        %1851 = vmatprep.subr.mxu0 0.0
        %1852 = vmatpush1.msra.mxu0 0.0
        %1853 = vmatprep.subr.mxu0 0.0
        %1854 = vmatpush1.msra.mxu0 0.0
        %1855 = vmatprep.subr.mxu0 0.0
        %1856 = vmatpush1.msra.mxu0 0.0
        %1857 = vmatprep.subr.mxu0 0.0
        %1858 = vmatpush1.msra.mxu0 0.0
        %1859 = vmatprep.subr.mxu0 0.0
        %1860 = vmatpush1.msra.mxu0 0.0
        %1861 = vmatprep.subr.mxu0 0.0
        %1862 = vmatpush1.msra.mxu0 0.0
        %1863 = vmatprep.subr.mxu0 0.0
        %1864 = vmatpush1.msra.mxu0 0.0
        %1865 = vmatprep.subr.mxu0 0.0
        %1866 = vmatpush1.msra.mxu0 0.0
        %1867 = vmatprep.subr.mxu0 0.0
        %1868 = vmatpush1.msra.mxu0 0.0
        %1869 = vmatprep.subr.mxu0 0.0
        %1870 = vmatpush1.msra.mxu0 0.0
        %1871 = vmatprep.subr.mxu0 0.0
        %1872 = vmatpush1.msra.mxu0 0.0
        %1873 = vmatprep.subr.mxu0 0.0
        %1874 = vmatpush1.msra.mxu0 0.0
        %1875 = vmatprep.subr.mxu0 0.0
        %1876 = vmatpush1.msra.mxu0 0.0
        %1877 = vmatprep.subr.mxu0 0.0
        %1878 = vmatpush1.msra.mxu0 0.0
        %1879 = vmatprep.subr.mxu0 0.0
        %1880 = vmatpush1.msra.mxu0 0.0
        %1881 = vmatprep.subr.mxu0 0.0
        %1882 = vmatpush1.msra.mxu0 0.0
        %1883 = vmatprep.subr.mxu0 0.0
        %1884 = vmatpush1.msra.mxu0 0.0
        %1885 = vmatprep.subr.mxu0 0.0
        %1886 = vmatpush1.msra.mxu0 0.0
        %1887 = vmatprep.subr.mxu0 0.0
        %1888 = vmatpush1.msra.mxu0 0.0
        %1889 = vmatprep.subr.mxu0 0.0
        %1890 = vmatpush1.msra.mxu0 0.0
        %1891 = vmatprep.subr.mxu0 0.0
        %1892 = vmatpush1.msra.mxu0 0.0
        %1893 = vmatprep.subr.mxu0 0.0
        %1894 = vmatpush1.msra.mxu0 0.0
        %1895 = vmatprep.subr.mxu0 0.0
        %1896 = vmatpush1.msra.mxu0 0.0
        %1897 = vmatprep.subr.mxu0 0.0
        %1898 = vmatpush1.msra.mxu0 0.0
        %1899 = vmatprep.mubr.f32.mxu0 0.0
        %1900 = vmatmul.mubr.f32.gmra.mrb[0].mxu0 %v1830
        %v1901 = vpop.f32.mrb[0].mxu0
        %v1902 = vadd.f32 0.0, %v1901
        %v1903 = vpop.f32.mrb[0].mxu0
        %1904 = vmatprep.mubr.f32.mxu0 0.0
        %1905 = vmatmul.mubr.f32.gmra.mrb[0].mxu0 %v1833
        %v1906 = vpop.f32.mrb[0].mxu0
        %v1907 = vadd.f32 0.0, %v1906
        %v1908 = vpop.f32.mrb[0].mxu0
        %1909 = vdwg.mxu0
        %1910 = vrot.lane.b32.xlu0 %v1008, 64
        %v1911 = vpop.permute.xlu0 %1910
        %1912 = vrot.lane.b32.xlu0 %v1014, 64
        %v1913 = vpop.permute.xlu0 %1912
        %1914 = vrot.lane.b32.xlu0 %v1010, 64
        %v1915 = vpop.permute.xlu0 %1914
        %1916 = vrot.lane.b32.xlu0 %v1016, 64
        %v1917 = vpop.permute.xlu0 %1916
        %v1918 = vsel %vm1093, %v1911, 0
        %v1920 = vsel %vm1093, %v1913, 0
        %v1922 = vsel %vm1093, %v1915, 0
        %v1924 = vsel %vm1093, %v1917, 0
        %1926 = vmatprep.subr.mxu0 0.0
        %1927 = vmatpush1.xpose.msra.mxu0 %v1922
        %1928 = vmatprep.subr.mxu0 0.0
        %1929 = vmatpush1.xpose.msra.mxu0 %v1924
        %1930 = vmatprep.subr.mxu0 0.0
        %1931 = vmatpush1.xpose.msra.mxu0 0.0
        %1932 = vmatprep.subr.mxu0 0.0
        %1933 = vmatpush1.xpose.msra.mxu0 0.0
        %1934 = vmatprep.subr.mxu0 0.0
        %1935 = vmatpush1.xpose.msra.mxu0 0.0
        %1936 = vmatprep.subr.mxu0 0.0
        %1937 = vmatpush1.xpose.msra.mxu0 0.0
        %1938 = vmatprep.subr.mxu0 0.0
        %1939 = vmatpush1.xpose.msra.mxu0 0.0
        %1940 = vmatprep.subr.mxu0 0.0
        %1941 = vmatpush1.xpose.msra.mxu0 0.0
        %1942 = vmatprep.subr.mxu0 0.0
        %1943 = vmatpush1.xpose.msra.mxu0 0.0
        %1944 = vmatprep.subr.mxu0 0.0
        %1945 = vmatpush1.xpose.msra.mxu0 0.0
        %1946 = vmatprep.subr.mxu0 0.0
        %1947 = vmatpush1.xpose.msra.mxu0 0.0
        %1948 = vmatprep.subr.mxu0 0.0
        %1949 = vmatpush1.xpose.msra.mxu0 0.0
        %1950 = vmatprep.subr.mxu0 0.0
        %1951 = vmatpush1.xpose.msra.mxu0 0.0
        %1952 = vmatprep.subr.mxu0 0.0
        %1953 = vmatpush1.xpose.msra.mxu0 0.0
        %1954 = vmatprep.subr.mxu0 0.0
        %1955 = vmatpush1.xpose.msra.mxu0 0.0
        %1956 = vmatprep.subr.mxu0 0.0
        %1957 = vmatpush1.xpose.msra.mxu0 0.0
        %1958 = vmatprep.subr.mxu0 0.0
        %1959 = vmatpush1.xpose.msra.mxu0 0.0
        %1960 = vmatprep.subr.mxu0 0.0
        %1961 = vmatpush1.xpose.msra.mxu0 0.0
        %1962 = vmatprep.subr.mxu0 0.0
        %1963 = vmatpush1.xpose.msra.mxu0 0.0
        %1964 = vmatprep.subr.mxu0 0.0
        %1965 = vmatpush1.xpose.msra.mxu0 0.0
        %1966 = vmatprep.subr.mxu0 0.0
        %1967 = vmatpush1.xpose.msra.mxu0 0.0
        %1968 = vmatprep.subr.mxu0 0.0
        %1969 = vmatpush1.xpose.msra.mxu0 0.0
        %1970 = vmatprep.subr.mxu0 0.0
        %1971 = vmatpush1.xpose.msra.mxu0 0.0
        %1972 = vmatprep.subr.mxu0 0.0
        %1973 = vmatpush1.xpose.msra.mxu0 0.0
        %1974 = vmatprep.subr.mxu0 0.0
        %1975 = vmatpush1.xpose.msra.mxu0 0.0
        %1976 = vmatprep.subr.mxu0 0.0
        %1977 = vmatpush1.xpose.msra.mxu0 0.0
        %1978 = vmatprep.subr.mxu0 0.0
        %1979 = vmatpush1.xpose.msra.mxu0 0.0
        %1980 = vmatprep.subr.mxu0 0.0
        %1981 = vmatpush1.xpose.msra.mxu0 0.0
        %1982 = vmatprep.subr.mxu0 0.0
        %1983 = vmatpush1.xpose.msra.mxu0 0.0
        %1984 = vmatprep.subr.mxu0 0.0
        %1985 = vmatpush1.xpose.msra.mxu0 0.0
        %1986 = vmatprep.subr.mxu0 0.0
        %1987 = vmatpush1.xpose.msra.mxu0 0.0
        %1988 = vmatprep.subr.mxu0 0.0
        %1989 = vmatpush1.xpose.msra.mxu0 0.0
        %1990 = vmatprep.mubr.f32.mxu0 0.0
        %1991 = vmatmul.mubr.f32.gmra.mrb[0].mxu0 %v1918
        %v1992 = vpop.f32.mrb[0].mxu0
        %v1993 = vadd.f32 %v833, %v1992
        %v1994 = vpop.f32.mrb[0].mxu0
        %1995 = vmatprep.mubr.f32.mxu0 0.0
        %1996 = vmatmul.mubr.f32.gmra.mrb[0].mxu0 %v1920
        %v1997 = vpop.f32.mrb[0].mxu0
        %v1998 = vadd.f32 %v833, %v1997
        %v1999 = vpop.f32.mrb[0].mxu0
        %2000 = vdwg.mxu0
        %v2001 = vsel %vm1093, %v1993, -inf
        %2002 = vmax.xlane.f32.xlu0 %v2001
        %v2003 = vpop.xlane.xlu0 %2002
        %v2004 = vsel %vm1093, %v1998, -inf
        %2005 = vmax.xlane.f32.xlu0 %v2004
        %v2006 = vpop.xlane.xlu0 %2005
        %v2007 = vsub.f32 %v1993, %v2003
        %v2008 = vsub.f32 %v1998, %v2006
        %v2009 = vmul.f32 %v2007, 1.442695
        %v2010 = vpow.pop %v2009
        %v2011 = vmul.f32 %v2008, 1.442695
        %v2012 = vpow.pop %v2011
        %v2013 = vsel %vm1093, %v2010, 0.0
        %2014 = vadd.xlane.f32.xlu0 %v2013
        %v2015 = vpop.xlane.xlu0 %2014
        %v2016 = vsel %vm1093, %v2012, 0.0
        %2017 = vadd.xlane.f32.xlu0 %v2016
        %v2018 = vpop.xlane.xlu0 %2017
        %v2019 = vrcp.pop %v2015
        %v2020 = vrcp.pop %v2018
        %v2021 = vmul.f32 %v2015, %v2019
        %v2022 = vmul.f32 %v2018, %v2020
        %v2023 = vsub.f32 2.0, %v2021
        %v2024 = vsub.f32 2.0, %v2022
        %v2025 = vmul.f32 %v2019, %v2023
        %v2026 = vmul.f32 %v2020, %v2024
        %v2027 = vmul.f32 %v2010, %v2025
        %v2028 = vmul.f32 %v2012, %v2026
        %2029 = vrot.lane.b32.xlu0 %v1085, 64
        %v2030 = vpop.permute.xlu0 %2029
        %2031 = vrot.lane.b32.xlu0 %v1090, 64
        %v2032 = vpop.permute.xlu0 %2031
        %v2036 = vsel %vm1093, %v2027, 0
        %v2039 = vsel %vm1093, %v2028, 0
        %2041 = vmatprep.subr.mxu0 0.0
        %2042 = vmatpush1.msra.mxu0 %v2030
        %2043 = vmatprep.subr.mxu0 0.0
        %2044 = vmatpush1.msra.mxu0 %v2032
        %2045 = vmatprep.subr.mxu0 0.0
        %2046 = vmatpush1.msra.mxu0 0.0
        %2047 = vmatprep.subr.mxu0 0.0
        %2048 = vmatpush1.msra.mxu0 0.0
        %2049 = vmatprep.subr.mxu0 0.0
        %2050 = vmatpush1.msra.mxu0 0.0
        %2051 = vmatprep.subr.mxu0 0.0
        %2052 = vmatpush1.msra.mxu0 0.0
        %2053 = vmatprep.subr.mxu0 0.0
        %2054 = vmatpush1.msra.mxu0 0.0
        %2055 = vmatprep.subr.mxu0 0.0
        %2056 = vmatpush1.msra.mxu0 0.0
        %2057 = vmatprep.subr.mxu0 0.0
        %2058 = vmatpush1.msra.mxu0 0.0
        %2059 = vmatprep.subr.mxu0 0.0
        %2060 = vmatpush1.msra.mxu0 0.0
        %2061 = vmatprep.subr.mxu0 0.0
        %2062 = vmatpush1.msra.mxu0 0.0
        %2063 = vmatprep.subr.mxu0 0.0
        %2064 = vmatpush1.msra.mxu0 0.0
        %2065 = vmatprep.subr.mxu0 0.0
        %2066 = vmatpush1.msra.mxu0 0.0
        %2067 = vmatprep.subr.mxu0 0.0
        %2068 = vmatpush1.msra.mxu0 0.0
        %2069 = vmatprep.subr.mxu0 0.0
        %2070 = vmatpush1.msra.mxu0 0.0
        %2071 = vmatprep.subr.mxu0 0.0
        %2072 = vmatpush1.msra.mxu0 0.0
        %2073 = vmatprep.subr.mxu0 0.0
        %2074 = vmatpush1.msra.mxu0 0.0
        %2075 = vmatprep.subr.mxu0 0.0
        %2076 = vmatpush1.msra.mxu0 0.0
        %2077 = vmatprep.subr.mxu0 0.0
        %2078 = vmatpush1.msra.mxu0 0.0
        %2079 = vmatprep.subr.mxu0 0.0
        %2080 = vmatpush1.msra.mxu0 0.0
        %2081 = vmatprep.subr.mxu0 0.0
        %2082 = vmatpush1.msra.mxu0 0.0
        %2083 = vmatprep.subr.mxu0 0.0
        %2084 = vmatpush1.msra.mxu0 0.0
        %2085 = vmatprep.subr.mxu0 0.0
        %2086 = vmatpush1.msra.mxu0 0.0
        %2087 = vmatprep.subr.mxu0 0.0
        %2088 = vmatpush1.msra.mxu0 0.0
        %2089 = vmatprep.subr.mxu0 0.0
        %2090 = vmatpush1.msra.mxu0 0.0
        %2091 = vmatprep.subr.mxu0 0.0
        %2092 = vmatpush1.msra.mxu0 0.0
        %2093 = vmatprep.subr.mxu0 0.0
        %2094 = vmatpush1.msra.mxu0 0.0
        %2095 = vmatprep.subr.mxu0 0.0
        %2096 = vmatpush1.msra.mxu0 0.0
        %2097 = vmatprep.subr.mxu0 0.0
        %2098 = vmatpush1.msra.mxu0 0.0
        %2099 = vmatprep.subr.mxu0 0.0
        %2100 = vmatpush1.msra.mxu0 0.0
        %2101 = vmatprep.subr.mxu0 0.0
        %2102 = vmatpush1.msra.mxu0 0.0
        %2103 = vmatprep.subr.mxu0 0.0
        %2104 = vmatpush1.msra.mxu0 0.0
        %2105 = vmatprep.mubr.f32.mxu0 0.0
        %2106 = vmatmul.mubr.f32.gmra.mrb[0].mxu0 %v2036
        %v2107 = vpop.f32.mrb[0].mxu0
        %v2108 = vadd.f32 0.0, %v2107
        %v2109 = vpop.f32.mrb[0].mxu0
        %2110 = vmatprep.mubr.f32.mxu0 0.0
        %2111 = vmatmul.mubr.f32.gmra.mrb[0].mxu0 %v2039
        %v2112 = vpop.f32.mrb[0].mxu0
        %v2113 = vadd.f32 0.0, %v2112
        %v2114 = vpop.f32.mrb[0].mxu0
        %2115 = vdwg.mxu0
        %2116 = vrot.lane.b32.xlu0 %v1008, 48
        %v2117 = vpop.permute.xlu0 %2116
        %2118 = vrot.lane.b32.xlu0 %v1014, 48
        %v2119 = vpop.permute.xlu0 %2118
        %2120 = vrot.lane.b32.xlu0 %v1010, 48
        %v2121 = vpop.permute.xlu0 %2120
        %2122 = vrot.lane.b32.xlu0 %v1016, 48
        %v2123 = vpop.permute.xlu0 %2122
        %v2124 = vsel %vm1093, %v2117, 0
        %v2126 = vsel %vm1093, %v2119, 0
        %v2128 = vsel %vm1093, %v2121, 0
        %v2130 = vsel %vm1093, %v2123, 0
        %2132 = vmatprep.subr.mxu0 0.0
        %2133 = vmatpush1.xpose.msra.mxu0 %v2128
        %2134 = vmatprep.subr.mxu0 0.0
        %2135 = vmatpush1.xpose.msra.mxu0 %v2130
        %2136 = vmatprep.subr.mxu0 0.0
        %2137 = vmatpush1.xpose.msra.mxu0 0.0
        %2138 = vmatprep.subr.mxu0 0.0
        %2139 = vmatpush1.xpose.msra.mxu0 0.0
        %2140 = vmatprep.subr.mxu0 0.0
        %2141 = vmatpush1.xpose.msra.mxu0 0.0
        %2142 = vmatprep.subr.mxu0 0.0
        %2143 = vmatpush1.xpose.msra.mxu0 0.0
        %2144 = vmatprep.subr.mxu0 0.0
        %2145 = vmatpush1.xpose.msra.mxu0 0.0
        %2146 = vmatprep.subr.mxu0 0.0
        %2147 = vmatpush1.xpose.msra.mxu0 0.0
        %2148 = vmatprep.subr.mxu0 0.0
        %2149 = vmatpush1.xpose.msra.mxu0 0.0
        %2150 = vmatprep.subr.mxu0 0.0
        %2151 = vmatpush1.xpose.msra.mxu0 0.0
        %2152 = vmatprep.subr.mxu0 0.0
        %2153 = vmatpush1.xpose.msra.mxu0 0.0
        %2154 = vmatprep.subr.mxu0 0.0
        %2155 = vmatpush1.xpose.msra.mxu0 0.0
        %2156 = vmatprep.subr.mxu0 0.0
        %2157 = vmatpush1.xpose.msra.mxu0 0.0
        %2158 = vmatprep.subr.mxu0 0.0
        %2159 = vmatpush1.xpose.msra.mxu0 0.0
        %2160 = vmatprep.subr.mxu0 0.0
        %2161 = vmatpush1.xpose.msra.mxu0 0.0
        %2162 = vmatprep.subr.mxu0 0.0
        %2163 = vmatpush1.xpose.msra.mxu0 0.0
        %2164 = vmatprep.subr.mxu0 0.0
        %2165 = vmatpush1.xpose.msra.mxu0 0.0
        %2166 = vmatprep.subr.mxu0 0.0
        %2167 = vmatpush1.xpose.msra.mxu0 0.0
        %2168 = vmatprep.subr.mxu0 0.0
        %2169 = vmatpush1.xpose.msra.mxu0 0.0
        %2170 = vmatprep.subr.mxu0 0.0
        %2171 = vmatpush1.xpose.msra.mxu0 0.0
        %2172 = vmatprep.subr.mxu0 0.0
        %2173 = vmatpush1.xpose.msra.mxu0 0.0
        %2174 = vmatprep.subr.mxu0 0.0
        %2175 = vmatpush1.xpose.msra.mxu0 0.0
        %2176 = vmatprep.subr.mxu0 0.0
        %2177 = vmatpush1.xpose.msra.mxu0 0.0
        %2178 = vmatprep.subr.mxu0 0.0
        %2179 = vmatpush1.xpose.msra.mxu0 0.0
        %2180 = vmatprep.subr.mxu0 0.0
        %2181 = vmatpush1.xpose.msra.mxu0 0.0
        %2182 = vmatprep.subr.mxu0 0.0
        %2183 = vmatpush1.xpose.msra.mxu0 0.0
        %2184 = vmatprep.subr.mxu0 0.0
        %2185 = vmatpush1.xpose.msra.mxu0 0.0
        %2186 = vmatprep.subr.mxu0 0.0
        %2187 = vmatpush1.xpose.msra.mxu0 0.0
        %2188 = vmatprep.subr.mxu0 0.0
        %2189 = vmatpush1.xpose.msra.mxu0 0.0
        %2190 = vmatprep.subr.mxu0 0.0
        %2191 = vmatpush1.xpose.msra.mxu0 0.0
        %2192 = vmatprep.subr.mxu0 0.0
        %2193 = vmatpush1.xpose.msra.mxu0 0.0
        %2194 = vmatprep.subr.mxu0 0.0
        %2195 = vmatpush1.xpose.msra.mxu0 0.0
        %2196 = vmatprep.mubr.f32.mxu0 0.0
        %2197 = vmatmul.mubr.f32.gmra.mrb[0].mxu0 %v2124
        %v2198 = vpop.f32.mrb[0].mxu0
        %v2199 = vadd.f32 %v833, %v2198
        %v2200 = vpop.f32.mrb[0].mxu0
        %2201 = vmatprep.mubr.f32.mxu0 0.0
        %2202 = vmatmul.mubr.f32.gmra.mrb[0].mxu0 %v2126
        %v2203 = vpop.f32.mrb[0].mxu0
        %v2204 = vadd.f32 %v833, %v2203
        %v2205 = vpop.f32.mrb[0].mxu0
        %2206 = vdwg.mxu0
        %v2207 = vsel %vm1093, %v2199, -inf
        %2208 = vmax.xlane.f32.xlu0 %v2207
        %v2209 = vpop.xlane.xlu0 %2208
        %v2210 = vsel %vm1093, %v2204, -inf
        %2211 = vmax.xlane.f32.xlu0 %v2210
        %v2212 = vpop.xlane.xlu0 %2211
        %v2213 = vsub.f32 %v2199, %v2209
        %v2214 = vsub.f32 %v2204, %v2212
        %v2215 = vmul.f32 %v2213, 1.442695
        %v2216 = vpow.pop %v2215
        %v2217 = vmul.f32 %v2214, 1.442695
        %v2218 = vpow.pop %v2217
        %v2219 = vsel %vm1093, %v2216, 0.0
        %2220 = vadd.xlane.f32.xlu0 %v2219
        %v2221 = vpop.xlane.xlu0 %2220
        %v2222 = vsel %vm1093, %v2218, 0.0
        %2223 = vadd.xlane.f32.xlu0 %v2222
        %v2224 = vpop.xlane.xlu0 %2223
        %v2225 = vrcp.pop %v2221
        %v2226 = vrcp.pop %v2224
        %v2227 = vmul.f32 %v2221, %v2225
        %v2228 = vmul.f32 %v2224, %v2226
        %v2229 = vsub.f32 2.0, %v2227
        %v2230 = vsub.f32 2.0, %v2228
        %v2231 = vmul.f32 %v2225, %v2229
        %v2232 = vmul.f32 %v2226, %v2230
        %v2233 = vmul.f32 %v2216, %v2231
        %v2234 = vmul.f32 %v2218, %v2232
        %2235 = vrot.lane.b32.xlu0 %v1085, 48
        %v2236 = vpop.permute.xlu0 %2235
        %2237 = vrot.lane.b32.xlu0 %v1090, 48
        %v2238 = vpop.permute.xlu0 %2237
        %v2242 = vsel %vm1093, %v2233, 0
        %v2245 = vsel %vm1093, %v2234, 0
        %2247 = vmatprep.subr.mxu0 0.0
        %2248 = vmatpush1.msra.mxu0 %v2236
        %2249 = vmatprep.subr.mxu0 0.0
        %2250 = vmatpush1.msra.mxu0 %v2238
        %2251 = vmatprep.subr.mxu0 0.0
        %2252 = vmatpush1.msra.mxu0 0.0
        %2253 = vmatprep.subr.mxu0 0.0
        %2254 = vmatpush1.msra.mxu0 0.0
        %2255 = vmatprep.subr.mxu0 0.0
        %2256 = vmatpush1.msra.mxu0 0.0
        %2257 = vmatprep.subr.mxu0 0.0
        %2258 = vmatpush1.msra.mxu0 0.0
        %2259 = vmatprep.subr.mxu0 0.0
        %2260 = vmatpush1.msra.mxu0 0.0
        %2261 = vmatprep.subr.mxu0 0.0
        %2262 = vmatpush1.msra.mxu0 0.0
        %2263 = vmatprep.subr.mxu0 0.0
        %2264 = vmatpush1.msra.mxu0 0.0
        %2265 = vmatprep.subr.mxu0 0.0
        %2266 = vmatpush1.msra.mxu0 0.0
        %2267 = vmatprep.subr.mxu0 0.0
        %2268 = vmatpush1.msra.mxu0 0.0
        %2269 = vmatprep.subr.mxu0 0.0
        %2270 = vmatpush1.msra.mxu0 0.0
        %2271 = vmatprep.subr.mxu0 0.0
        %2272 = vmatpush1.msra.mxu0 0.0
        %2273 = vmatprep.subr.mxu0 0.0
        %2274 = vmatpush1.msra.mxu0 0.0
        %2275 = vmatprep.subr.mxu0 0.0
        %2276 = vmatpush1.msra.mxu0 0.0
        %2277 = vmatprep.subr.mxu0 0.0
        %2278 = vmatpush1.msra.mxu0 0.0
        %2279 = vmatprep.subr.mxu0 0.0
        %2280 = vmatpush1.msra.mxu0 0.0
        %2281 = vmatprep.subr.mxu0 0.0
        %2282 = vmatpush1.msra.mxu0 0.0
        %2283 = vmatprep.subr.mxu0 0.0
        %2284 = vmatpush1.msra.mxu0 0.0
        %2285 = vmatprep.subr.mxu0 0.0
        %2286 = vmatpush1.msra.mxu0 0.0
        %2287 = vmatprep.subr.mxu0 0.0
        %2288 = vmatpush1.msra.mxu0 0.0
        %2289 = vmatprep.subr.mxu0 0.0
        %2290 = vmatpush1.msra.mxu0 0.0
        %2291 = vmatprep.subr.mxu0 0.0
        %2292 = vmatpush1.msra.mxu0 0.0
        %2293 = vmatprep.subr.mxu0 0.0
        %2294 = vmatpush1.msra.mxu0 0.0
        %2295 = vmatprep.subr.mxu0 0.0
        %2296 = vmatpush1.msra.mxu0 0.0
        %2297 = vmatprep.subr.mxu0 0.0
        %2298 = vmatpush1.msra.mxu0 0.0
        %2299 = vmatprep.subr.mxu0 0.0
        %2300 = vmatpush1.msra.mxu0 0.0
        %2301 = vmatprep.subr.mxu0 0.0
        %2302 = vmatpush1.msra.mxu0 0.0
        %2303 = vmatprep.subr.mxu0 0.0
        %2304 = vmatpush1.msra.mxu0 0.0
        %2305 = vmatprep.subr.mxu0 0.0
        %2306 = vmatpush1.msra.mxu0 0.0
        %2307 = vmatprep.subr.mxu0 0.0
        %2308 = vmatpush1.msra.mxu0 0.0
        %2309 = vmatprep.subr.mxu0 0.0
        %2310 = vmatpush1.msra.mxu0 0.0
        %2311 = vmatprep.mubr.f32.mxu0 0.0
        %2312 = vmatmul.mubr.f32.gmra.mrb[0].mxu0 %v2242
        %v2313 = vpop.f32.mrb[0].mxu0
        %v2314 = vadd.f32 0.0, %v2313
        %v2315 = vpop.f32.mrb[0].mxu0
        %2316 = vmatprep.mubr.f32.mxu0 0.0
        %2317 = vmatmul.mubr.f32.gmra.mrb[0].mxu0 %v2245
        %v2318 = vpop.f32.mrb[0].mxu0
        %v2319 = vadd.f32 0.0, %v2318
        %v2320 = vpop.f32.mrb[0].mxu0
        %2321 = vdwg.mxu0
        %2324 = vrot.lane.b32.xlu0 %v1490, 16
        %v2325 = vpop.permute.xlu0 %2324
        %2326 = vrot.lane.b32.xlu0 %v1495, 16
        %v2327 = vpop.permute.xlu0 %2326
        %2332 = vrot.lane.b32.xlu0 %v1696, 32
        %v2333 = vpop.permute.xlu0 %2332
        %2334 = vrot.lane.b32.xlu0 %v1701, 32
        %v2335 = vpop.permute.xlu0 %2334
        %2340 = vrot.lane.b32.xlu0 %v1902, 48
        %v2341 = vpop.permute.xlu0 %2340
        %2342 = vrot.lane.b32.xlu0 %v1907, 48
        %v2343 = vpop.permute.xlu0 %2342
        %2348 = vrot.lane.b32.xlu0 %v2108, 64
        %v2349 = vpop.permute.xlu0 %2348
        %2350 = vrot.lane.b32.xlu0 %v2113, 64
        %v2351 = vpop.permute.xlu0 %2350
        %2356 = vrot.lane.b32.xlu0 %v2314, 80
        %v2357 = vpop.permute.xlu0 %2356
        %2358 = vrot.lane.b32.xlu0 %v2319, 80
        %v2359 = vpop.permute.xlu0 %2358
        %v2362 = vsel %vm1093, %v1282, %v2325
        %v2363 = vsel %vm1093, %v1287, %v2327
        %vm2364 = vcmask 261120
        %v2365 = vsel %vm2364, %v2362, %v2333
        %v2366 = vsel %vm2364, %v2363, %v2335
        %vm2367 = vcmask 392192
        %v2368 = vsel %vm2367, %v2365, %v2341
        %v2369 = vsel %vm2367, %v2366, %v2343
        %vm2370 = vcmask 523264
        %v2371 = vsel %vm2370, %v2368, %v2349
        %v2372 = vsel %vm2370, %v2369, %v2351
        %vm2373 = vcmask 654336
        %v2374 = vsel %vm2373, %v2371, %v2357
        %v2375 = vsel %vm2373, %v2372, %v2359
        %v2376 = vld [vmem:[%s682] sm:$0xff]
        %v2377 = vld [vmem:[%s682 + $0x8] sm:$0xff]
        %v2378 = vld [vmem:[%s682 + $0x10] sm:$0xff]
        %v2379 = vld [vmem:[%s682 + $0x18] sm:$0xff]
        %v2380 = vld [vmem:[%s682 + $0x20] sm:$0xff]
        %v2381 = vld [vmem:[%s682 + $0x28] sm:$0xff]
        %v2382 = vld [vmem:[%s682 + $0x30] sm:$0xff]
        %v2383 = vld [vmem:[%s682 + $0x38] sm:$0xff]
        %v2384 = vld [vmem:[%s682 + $0x40] sm:$0xff]
        %v2385 = vld [vmem:[%s682 + $0x48] sm:$0xff]
        %v2386 = vld [vmem:[%s682 + $0x50] sm:$0xff]
        %v2387 = vld [vmem:[%s682 + $0x58] sm:$0xff]
        %vm2388 = vcmask 785408
        %v2390 = vsel %vm2388, %v2374, 0
        %v2393 = vsel %vm2388, %v2375, 0
        %2395 = vmatprep.subr.mxu0 0.0
        %2396 = vmatpush1.msra.mxu0 %v2376
        %2397 = vmatprep.subr.mxu0 0.0
        %2398 = vmatpush1.msra.mxu0 %v2377
        %2399 = vmatprep.subr.mxu0 0.0
        %2400 = vmatpush1.msra.mxu0 %v2378
        %2401 = vmatprep.subr.mxu0 0.0
        %2402 = vmatpush1.msra.mxu0 %v2379
        %2403 = vmatprep.subr.mxu0 0.0
        %2404 = vmatpush1.msra.mxu0 %v2380
        %2405 = vmatprep.subr.mxu0 0.0
        %2406 = vmatpush1.msra.mxu0 %v2381
        %2407 = vmatprep.subr.mxu0 0.0
        %2408 = vmatpush1.msra.mxu0 %v2382
        %2409 = vmatprep.subr.mxu0 0.0
        %2410 = vmatpush1.msra.mxu0 %v2383
        %2411 = vmatprep.subr.mxu0 0.0
        %2412 = vmatpush1.msra.mxu0 %v2384
        %2413 = vmatprep.subr.mxu0 0.0
        %2414 = vmatpush1.msra.mxu0 %v2385
        %2415 = vmatprep.subr.mxu0 0.0
        %2416 = vmatpush1.msra.mxu0 %v2386
        %2417 = vmatprep.subr.mxu0 0.0
        %2418 = vmatpush1.msra.mxu0 %v2387
        %2419 = vmatprep.subr.mxu0 0.0
        %2420 = vmatpush1.msra.mxu0 0.0
        %2421 = vmatprep.subr.mxu0 0.0
        %2422 = vmatpush1.msra.mxu0 0.0
        %2423 = vmatprep.subr.mxu0 0.0
        %2424 = vmatpush1.msra.mxu0 0.0
        %2425 = vmatprep.subr.mxu0 0.0
        %2426 = vmatpush1.msra.mxu0 0.0
        %2427 = vmatprep.subr.mxu0 0.0
        %2428 = vmatpush1.msra.mxu0 0.0
        %2429 = vmatprep.subr.mxu0 0.0
        %2430 = vmatpush1.msra.mxu0 0.0
        %2431 = vmatprep.subr.mxu0 0.0
        %2432 = vmatpush1.msra.mxu0 0.0
        %2433 = vmatprep.subr.mxu0 0.0
        %2434 = vmatpush1.msra.mxu0 0.0
        %2435 = vmatprep.subr.mxu0 0.0
        %2436 = vmatpush1.msra.mxu0 0.0
        %2437 = vmatprep.subr.mxu0 0.0
        %2438 = vmatpush1.msra.mxu0 0.0
        %2439 = vmatprep.subr.mxu0 0.0
        %2440 = vmatpush1.msra.mxu0 0.0
        %2441 = vmatprep.subr.mxu0 0.0
        %2442 = vmatpush1.msra.mxu0 0.0
        %2443 = vmatprep.subr.mxu0 0.0
        %2444 = vmatpush1.msra.mxu0 0.0
        %2445 = vmatprep.subr.mxu0 0.0
        %2446 = vmatpush1.msra.mxu0 0.0
        %2447 = vmatprep.subr.mxu0 0.0
        %2448 = vmatpush1.msra.mxu0 0.0
        %2449 = vmatprep.subr.mxu0 0.0
        %2450 = vmatpush1.msra.mxu0 0.0
        %2451 = vmatprep.subr.mxu0 0.0
        %2452 = vmatpush1.msra.mxu0 0.0
        %2453 = vmatprep.subr.mxu0 0.0
        %2454 = vmatpush1.msra.mxu0 0.0
        %2455 = vmatprep.subr.mxu0 0.0
        %2456 = vmatpush1.msra.mxu0 0.0
        %2457 = vmatprep.subr.mxu0 0.0
        %2458 = vmatpush1.msra.mxu0 0.0
        %2459 = vmatprep.mubr.f32.mxu0 0.0
        %2460 = vmatmul.mubr.f32.gmra.mrb[0].mxu0 %v2390
        %v2461 = vpop.f32.mrb[0].mxu0
        %v2462 = vadd.f32 0.0, %v2461
        %v2463 = vpop.f32.mrb[0].mxu0
        %2464 = vmatprep.mubr.f32.mxu0 0.0
        %2465 = vmatmul.mubr.f32.gmra.mrb[0].mxu0 %v2393
        %v2466 = vpop.f32.mrb[0].mxu0
        %v2467 = vadd.f32 0.0, %v2466
        %v2468 = vpop.f32.mrb[0].mxu0
        %2469 = vdwg.mxu0
        %v2470 = vadd.f32 %v825, %v2462
        %v2471 = vadd.f32 %v826, %v2467
        %v2472 = vld [vmem:[%s803] sm:$0x1]
        %v2474 = vlaneseq
        %v2475 = vshrl.u32 %v2474, 7
        %v2476 = vsub.s32 0, %v2475
        %v2477 = vrot.slane %v2472, %v2476
        %v2479 = vadd.f32 %v2470, %v2477
        %v2480 = vadd.f32 %v2471, %v2477
        %v2481 = vld [vmem:[%s806] sm:$0x1]
        %v2482 = vld [vmem:[%s809] sm:$0x1]
        %2483 = vadd.xlane.f32.xlu0 %v2479
        %v2484 = vpop.xlane.xlu0 %2483
        %2485 = vadd.xlane.f32.xlu0 %v2480
        %v2486 = vpop.xlane.xlu0 %2485
        %v2487 = vmul.f32 %v2484, 0.010416667
        %v2488 = vmul.f32 %v2486, 0.010416667
        %v2489 = vsub.f32 %v2479, %v2487
        %v2490 = vsub.f32 %v2480, %v2488
        %v2491 = vmul.f32 %v2489, %v831
        %v2492 = vmul.f32 %v2490, %v831
        %v2493 = vmul.f32 %v2491, %v2491
        %v2494 = vmul.f32 %v2492, %v2492
        %2495 = vadd.xlane.f32.xlu0 %v2493
        %v2496 = vpop.xlane.xlu0 %2495
        %2497 = vadd.xlane.f32.xlu0 %v2494
        %v2498 = vpop.xlane.xlu0 %2497
        %v2499 = vmul.f32 %v2496, 0.010416667
        %v2500 = vmul.f32 %v2498, 0.010416667
        %v2501 = vadd.f32 %v2499, 1e-06
        %v2502 = vadd.f32 %v2500, 1e-06
        %v2503 = vrsqrt.pop %v2501
        %v2504 = vrsqrt.pop %v2502
        %v2505 = vmul.f32 %v2491, %v2503
        %v2506 = vmul.f32 %v2492, %v2504
        %v2508 = vlaneseq
        %v2509 = vshrl.u32 %v2508, 7
        %v2510 = vsub.s32 0, %v2509
        %v2511 = vrot.slane %v2481, %v2510
        %v2513 = vmul.f32 %v2505, %v2511
        %v2514 = vmul.f32 %v2506, %v2511
        %v2516 = vlaneseq
        %v2517 = vshrl.u32 %v2516, 7
        %v2518 = vsub.s32 0, %v2517
        %v2519 = vrot.slane %v2482, %v2518
        %v2521 = vadd.f32 %v2513, %v2519
        %v2522 = vadd.f32 %v2514, %v2519
        %v2523 = vld [vmem:[%s691] sm:$0xff]
        %v2524 = vld [vmem:[%s691 + $0x8] sm:$0xff]
        %v2525 = vld [vmem:[%s691 + $0x10] sm:$0xff]
        %v2526 = vld [vmem:[%s691 + $0x18] sm:$0xff]
        %v2527 = vld [vmem:[%s691 + $0x20] sm:$0xff]
        %v2528 = vld [vmem:[%s691 + $0x28] sm:$0xff]
        %v2529 = vld [vmem:[%s691 + $0x30] sm:$0xff]
        %v2530 = vld [vmem:[%s691 + $0x38] sm:$0xff]
        %v2531 = vld [vmem:[%s691 + $0x40] sm:$0xff]
        %v2532 = vld [vmem:[%s691 + $0x48] sm:$0xff]
        %v2533 = vld [vmem:[%s691 + $0x50] sm:$0xff]
        %v2534 = vld [vmem:[%s691 + $0x58] sm:$0xff]
        %v2535 = vld [vmem:[%s691 + $0x60] sm:$0xff]
        %v2536 = vld [vmem:[%s691 + $0x68] sm:$0xff]
        %v2537 = vld [vmem:[%s691 + $0x70] sm:$0xff]
        %v2538 = vld [vmem:[%s691 + $0x78] sm:$0xff]
        %v2539 = vld [vmem:[%s691 + $0x80] sm:$0xff]
        %v2540 = vld [vmem:[%s691 + $0x88] sm:$0xff]
        %v2541 = vld [vmem:[%s691 + $0x90] sm:$0xff]
        %v2542 = vld [vmem:[%s691 + $0x98] sm:$0xff]
        %v2543 = vld [vmem:[%s691 + $0xa0] sm:$0xff]
        %v2544 = vld [vmem:[%s691 + $0xa8] sm:$0xff]
        %v2545 = vld [vmem:[%s691 + $0xb0] sm:$0xff]
        %v2546 = vld [vmem:[%s691 + $0xb8] sm:$0xff]
        %v2547 = vld [vmem:[%s691 + $0xc0] sm:$0xff]
        %v2548 = vld [vmem:[%s691 + $0xc8] sm:$0xff]
        %v2549 = vld [vmem:[%s691 + $0xd0] sm:$0xff]
        %v2550 = vld [vmem:[%s691 + $0xd8] sm:$0xff]
        %v2551 = vld [vmem:[%s691 + $0xe0] sm:$0xff]
        %v2552 = vld [vmem:[%s691 + $0xe8] sm:$0xff]
        %v2553 = vld [vmem:[%s691 + $0xf0] sm:$0xff]
        %v2554 = vld [vmem:[%s691 + $0xf8] sm:$0xff]
        %v2555 = vld [vmem:[%s691 + $0x100] sm:$0xff]
        %v2556 = vld [vmem:[%s691 + $0x108] sm:$0xff]
        %v2557 = vld [vmem:[%s691 + $0x110] sm:$0xff]
        %v2558 = vld [vmem:[%s691 + $0x118] sm:$0xff]
        %v2559 = vld [vmem:[%s691 + $0x120] sm:$0xff]
        %v2560 = vld [vmem:[%s691 + $0x128] sm:$0xff]
        %v2561 = vld [vmem:[%s691 + $0x130] sm:$0xff]
        %v2562 = vld [vmem:[%s691 + $0x138] sm:$0xff]
        %v2563 = vld [vmem:[%s691 + $0x140] sm:$0xff]
        %v2564 = vld [vmem:[%s691 + $0x148] sm:$0xff]
        %v2565 = vld [vmem:[%s691 + $0x150] sm:$0xff]
        %v2566 = vld [vmem:[%s691 + $0x158] sm:$0xff]
        %v2567 = vld [vmem:[%s691 + $0x160] sm:$0xff]
        %v2568 = vld [vmem:[%s691 + $0x168] sm:$0xff]
        %v2569 = vld [vmem:[%s691 + $0x170] sm:$0xff]
        %v2570 = vld [vmem:[%s691 + $0x178] sm:$0xff]
        %v2571 = vld [vmem:[%s813] sm:$0x7]
        %v2573 = vlaneseq
        %v2574 = vshrl.u32 %v2573, 7
        %v2575 = vsub.s32 0, %v2574
        %v2576 = vrot.slane %v2571, %v2575
        %v2577 = vlaneseq
        %v2578 = vshrl.u32 %v2577, 7
        %v2579 = vsub.s32 1, %v2578
        %v2580 = vrot.slane %v2571, %v2579
        %v2581 = vlaneseq
        %v2582 = vshrl.u32 %v2581, 7
        %v2583 = vsub.s32 2, %v2582
        %v2584 = vrot.slane %v2571, %v2583
        %2588 = vmatprep.subr.mxu0 %v2524
        %2589 = vmatpush1.msra.mxu0 %v2523
        %2590 = vmatprep.subr.mxu0 %v2527
        %2591 = vmatpush1.msra.mxu0 %v2526
        %2592 = vmatprep.subr.mxu0 %v2530
        %2593 = vmatpush1.msra.mxu0 %v2529
        %2594 = vmatprep.subr.mxu0 %v2533
        %2595 = vmatpush1.msra.mxu0 %v2532
        %2596 = vmatprep.subr.mxu0 %v2536
        %2597 = vmatpush1.msra.mxu0 %v2535
        %2598 = vmatprep.subr.mxu0 %v2539
        %2599 = vmatpush1.msra.mxu0 %v2538
        %2600 = vmatprep.subr.mxu0 %v2542
        %2601 = vmatpush1.msra.mxu0 %v2541
        %2602 = vmatprep.subr.mxu0 %v2545
        %2603 = vmatpush1.msra.mxu0 %v2544
        %2604 = vmatprep.subr.mxu0 %v2548
        %2605 = vmatpush1.msra.mxu0 %v2547
        %2606 = vmatprep.subr.mxu0 %v2551
        %2607 = vmatpush1.msra.mxu0 %v2550
        %2608 = vmatprep.subr.mxu0 %v2554
        %2609 = vmatpush1.msra.mxu0 %v2553
        %2610 = vmatprep.subr.mxu0 %v2557
        %2611 = vmatpush1.msra.mxu0 %v2556
        %2612 = vmatprep.subr.mxu0 %v2560
        %2613 = vmatpush1.msra.mxu0 %v2559
        %2614 = vmatprep.subr.mxu0 %v2563
        %2615 = vmatpush1.msra.mxu0 %v2562
        %2616 = vmatprep.subr.mxu0 %v2566
        %2617 = vmatpush1.msra.mxu0 %v2565
        %2618 = vmatprep.subr.mxu0 %v2569
        %2619 = vmatpush1.msra.mxu0 %v2568
        %2620 = vmatprep.subr.mxu0 0.0
        %2621 = vmatpush1.msra.mxu0 0.0
        %2622 = vmatprep.subr.mxu0 0.0
        %2623 = vmatpush1.msra.mxu0 0.0
        %2624 = vmatprep.subr.mxu0 0.0
        %2625 = vmatpush1.msra.mxu0 0.0
        %2626 = vmatprep.subr.mxu0 0.0
        %2627 = vmatpush1.msra.mxu0 0.0
        %2628 = vmatprep.subr.mxu0 0.0
        %2629 = vmatpush1.msra.mxu0 0.0
        %2630 = vmatprep.subr.mxu0 0.0
        %2631 = vmatpush1.msra.mxu0 0.0
        %2632 = vmatprep.subr.mxu0 0.0
        %2633 = vmatpush1.msra.mxu0 0.0
        %2634 = vmatprep.subr.mxu0 0.0
        %2635 = vmatpush1.msra.mxu0 0.0
        %2636 = vmatprep.subr.mxu0 0.0
        %2637 = vmatpush1.msra.mxu0 0.0
        %2638 = vmatprep.subr.mxu0 0.0
        %2639 = vmatpush1.msra.mxu0 0.0
        %2640 = vmatprep.subr.mxu0 0.0
        %2641 = vmatpush1.msra.mxu0 0.0
        %2642 = vmatprep.subr.mxu0 0.0
        %2643 = vmatpush1.msra.mxu0 0.0
        %2644 = vmatprep.subr.mxu0 0.0
        %2645 = vmatpush1.msra.mxu0 0.0
        %2646 = vmatprep.subr.mxu0 0.0
        %2647 = vmatpush1.msra.mxu0 0.0
        %2648 = vmatprep.subr.mxu0 0.0
        %2649 = vmatpush1.msra.mxu0 0.0
        %2650 = vmatprep.subr.mxu0 0.0
        %2651 = vmatpush1.msra.mxu0 0.0
        %2652 = vmatprep.mubr.f32.mxu0 0.0
        %2653 = vmatmul.mubr.f32.gmra.mrb[0].mxu0 %v2521
        %v2654 = vpop.f32.mrb[0].mxu0
        %v2655 = vadd.f32 %v2576, %v2654
        %v2656 = vpop.f32.mrb[0].mxu0
        %v2657 = vadd.f32 %v2580, %v2656
        %2658 = vmatprep.mubr.f32.mxu0 0.0
        %2659 = vmatmul.mubr.f32.gmra.mrb[0].mxu0 %v2522
        %v2660 = vpop.f32.mrb[0].mxu0
        %v2661 = vadd.f32 %v2576, %v2660
        %v2662 = vpop.f32.mrb[0].mxu0
        %v2663 = vadd.f32 %v2580, %v2662
        %2664 = vdwg.mxu0
        %2665 = vmatprep.subr.mxu0 0.0
        %2666 = vmatpush1.msra.mxu0 %v2525
        %2667 = vmatprep.subr.mxu0 0.0
        %2668 = vmatpush1.msra.mxu0 %v2528
        %2669 = vmatprep.subr.mxu0 0.0
        %2670 = vmatpush1.msra.mxu0 %v2531
        %2671 = vmatprep.subr.mxu0 0.0
        %2672 = vmatpush1.msra.mxu0 %v2534
        %2673 = vmatprep.subr.mxu0 0.0
        %2674 = vmatpush1.msra.mxu0 %v2537
        %2675 = vmatprep.subr.mxu0 0.0
        %2676 = vmatpush1.msra.mxu0 %v2540
        %2677 = vmatprep.subr.mxu0 0.0
        %2678 = vmatpush1.msra.mxu0 %v2543
        %2679 = vmatprep.subr.mxu0 0.0
        %2680 = vmatpush1.msra.mxu0 %v2546
        %2681 = vmatprep.subr.mxu0 0.0
        %2682 = vmatpush1.msra.mxu0 %v2549
        %2683 = vmatprep.subr.mxu0 0.0
        %2684 = vmatpush1.msra.mxu0 %v2552
        %2685 = vmatprep.subr.mxu0 0.0
        %2686 = vmatpush1.msra.mxu0 %v2555
        %2687 = vmatprep.subr.mxu0 0.0
        %2688 = vmatpush1.msra.mxu0 %v2558
        %2689 = vmatprep.subr.mxu0 0.0
        %2690 = vmatpush1.msra.mxu0 %v2561
        %2691 = vmatprep.subr.mxu0 0.0
        %2692 = vmatpush1.msra.mxu0 %v2564
        %2693 = vmatprep.subr.mxu0 0.0
        %2694 = vmatpush1.msra.mxu0 %v2567
        %2695 = vmatprep.subr.mxu0 0.0
        %2696 = vmatpush1.msra.mxu0 %v2570
        %2697 = vmatprep.subr.mxu0 0.0
        %2698 = vmatpush1.msra.mxu0 0.0
        %2699 = vmatprep.subr.mxu0 0.0
        %2700 = vmatpush1.msra.mxu0 0.0
        %2701 = vmatprep.subr.mxu0 0.0
        %2702 = vmatpush1.msra.mxu0 0.0
        %2703 = vmatprep.subr.mxu0 0.0
        %2704 = vmatpush1.msra.mxu0 0.0
        %2705 = vmatprep.subr.mxu0 0.0
        %2706 = vmatpush1.msra.mxu0 0.0
        %2707 = vmatprep.subr.mxu0 0.0
        %2708 = vmatpush1.msra.mxu0 0.0
        %2709 = vmatprep.subr.mxu0 0.0
        %2710 = vmatpush1.msra.mxu0 0.0
        %2711 = vmatprep.subr.mxu0 0.0
        %2712 = vmatpush1.msra.mxu0 0.0
        %2713 = vmatprep.subr.mxu0 0.0
        %2714 = vmatpush1.msra.mxu0 0.0
        %2715 = vmatprep.subr.mxu0 0.0
        %2716 = vmatpush1.msra.mxu0 0.0
        %2717 = vmatprep.subr.mxu0 0.0
        %2718 = vmatpush1.msra.mxu0 0.0
        %2719 = vmatprep.subr.mxu0 0.0
        %2720 = vmatpush1.msra.mxu0 0.0
        %2721 = vmatprep.subr.mxu0 0.0
        %2722 = vmatpush1.msra.mxu0 0.0
        %2723 = vmatprep.subr.mxu0 0.0
        %2724 = vmatpush1.msra.mxu0 0.0
        %2725 = vmatprep.subr.mxu0 0.0
        %2726 = vmatpush1.msra.mxu0 0.0
        %2727 = vmatprep.subr.mxu0 0.0
        %2728 = vmatpush1.msra.mxu0 0.0
        %2729 = vmatprep.mubr.f32.mxu0 0.0
        %2730 = vmatmul.mubr.f32.gmra.mrb[0].mxu0 %v2521
        %v2731 = vpop.f32.mrb[0].mxu0
        %v2732 = vadd.f32 %v2584, %v2731
        %v2733 = vpop.f32.mrb[0].mxu0
        %2734 = vmatprep.mubr.f32.mxu0 0.0
        %2735 = vmatmul.mubr.f32.gmra.mrb[0].mxu0 %v2522
        %v2736 = vpop.f32.mrb[0].mxu0
        %v2737 = vadd.f32 %v2584, %v2736
        %v2738 = vpop.f32.mrb[0].mxu0
        %2739 = vdwg.mxu0
        %v2740 = vmul.f32 %v2655, 0.5
        %v2741 = vmul.f32 %v2657, 0.5
        %v2742 = vmul.f32 %v2732, 0.5
        %v2743 = vmul.f32 %v2661, 0.5
        %v2744 = vmul.f32 %v2663, 0.5
        %v2745 = vmul.f32 %v2737, 0.5
        %v2746 = vmul.f32 %v2655, 0.70710677
        %v2747 = vmul.f32 %v2657, 0.70710677
        %v2748 = vmul.f32 %v2732, 0.70710677
        %v2749 = vmul.f32 %v2661, 0.70710677
        %v2750 = vmul.f32 %v2663, 0.70710677
        %v2751 = vmul.f32 %v2737, 0.70710677
        %vm2752 = vcmp.ge.f32.partialorder %v2746, 0.0
        %vm2753 = vcmp.ge.f32.partialorder %v2747, 0.0
        %vm2754 = vcmp.ge.f32.partialorder %v2748, 0.0
        %vm2755 = vcmp.ge.f32.partialorder %v2749, 0.0
        %vm2756 = vcmp.ge.f32.partialorder %v2750, 0.0
        %vm2757 = vcmp.ge.f32.partialorder %v2751, 0.0
        %v2758 = vsel %vm2752, 1.0, -1.0
        %v2759 = vsel %vm2753, 1.0, -1.0
        %v2760 = vsel %vm2754, 1.0, -1.0
        %v2761 = vsel %vm2755, 1.0, -1.0
        %v2762 = vsel %vm2756, 1.0, -1.0
        %v2763 = vsel %vm2757, 1.0, -1.0
        %v2764 = vand.u32 2147483647, %v2746
        %v2765 = vand.u32 2147483647, %v2747
        %v2766 = vand.u32 2147483647, %v2748
        %v2767 = vand.u32 2147483647, %v2749
        %v2768 = vand.u32 2147483647, %v2750
        %v2769 = vand.u32 2147483647, %v2751
        %v2770 = vmul.f32 %v2764, 0.3275911
        %v2771 = vmul.f32 %v2765, 0.3275911
        %v2772 = vmul.f32 %v2766, 0.3275911
        %v2773 = vmul.f32 %v2767, 0.3275911
        %v2774 = vmul.f32 %v2768, 0.3275911
        %v2775 = vmul.f32 %v2769, 0.3275911
        %v2776 = vadd.f32 %v2770, 1.0
        %v2777 = vadd.f32 %v2771, 1.0
        %v2778 = vadd.f32 %v2772, 1.0
        %v2779 = vadd.f32 %v2773, 1.0
        %v2780 = vadd.f32 %v2774, 1.0
        %v2781 = vadd.f32 %v2775, 1.0
        %v2782 = vrcp.pop %v2776
        %v2783 = vrcp.pop %v2777
        %v2784 = vrcp.pop %v2778
        %v2785 = vrcp.pop %v2779
        %v2786 = vrcp.pop %v2780
        %v2787 = vrcp.pop %v2781
        %v2788 = vmul.f32 %v2776, %v2782
        %v2789 = vmul.f32 %v2777, %v2783
        %v2790 = vmul.f32 %v2778, %v2784
        %v2791 = vmul.f32 %v2779, %v2785
        %v2792 = vmul.f32 %v2780, %v2786
        %v2793 = vmul.f32 %v2781, %v2787
        %v2794 = vsub.f32 2.0, %v2788
        %v2795 = vsub.f32 2.0, %v2789
        %v2796 = vsub.f32 2.0, %v2790
        %v2797 = vsub.f32 2.0, %v2791
        %v2798 = vsub.f32 2.0, %v2792
        %v2799 = vsub.f32 2.0, %v2793
        %v2800 = vmul.f32 %v2782, %v2794
        %v2801 = vmul.f32 %v2783, %v2795
        %v2802 = vmul.f32 %v2784, %v2796
        %v2803 = vmul.f32 %v2785, %v2797
        %v2804 = vmul.f32 %v2786, %v2798
        %v2805 = vmul.f32 %v2787, %v2799
        %v2806 = vmul.f32 %v2800, 1.0614054
        %v2807 = vmul.f32 %v2801, 1.0614054
        %v2808 = vmul.f32 %v2802, 1.0614054
        %v2809 = vmul.f32 %v2803, 1.0614054
        %v2810 = vmul.f32 %v2804, 1.0614054
        %v2811 = vmul.f32 %v2805, 1.0614054
        %v2812 = vadd.f32 %v2806, -1.4531521
        %v2813 = vadd.f32 %v2807, -1.4531521
        %v2814 = vadd.f32 %v2808, -1.4531521
        %v2815 = vadd.f32 %v2809, -1.4531521
        %v2816 = vadd.f32 %v2810, -1.4531521
        %v2817 = vadd.f32 %v2811, -1.4531521
        %v2818 = vmul.f32 %v2812, %v2800
        %v2819 = vmul.f32 %v2813, %v2801
        %v2820 = vmul.f32 %v2814, %v2802
        %v2821 = vmul.f32 %v2815, %v2803
        %v2822 = vmul.f32 %v2816, %v2804
        %v2823 = vmul.f32 %v2817, %v2805
        %v2824 = vadd.f32 %v2818, 1.4214138
        %v2825 = vadd.f32 %v2819, 1.4214138
        %v2826 = vadd.f32 %v2820, 1.4214138
        %v2827 = vadd.f32 %v2821, 1.4214138
        %v2828 = vadd.f32 %v2822, 1.4214138
        %v2829 = vadd.f32 %v2823, 1.4214138
        %v2830 = vmul.f32 %v2824, %v2800
        %v2831 = vmul.f32 %v2825, %v2801
        %v2832 = vmul.f32 %v2826, %v2802
        %v2833 = vmul.f32 %v2827, %v2803
        %v2834 = vmul.f32 %v2828, %v2804
        %v2835 = vmul.f32 %v2829, %v2805
        %v2836 = vadd.f32 %v2830, -0.28449672
        %v2837 = vadd.f32 %v2831, -0.28449672
        %v2838 = vadd.f32 %v2832, -0.28449672
        %v2839 = vadd.f32 %v2833, -0.28449672
        %v2840 = vadd.f32 %v2834, -0.28449672
        %v2841 = vadd.f32 %v2835, -0.28449672
        %v2842 = vmul.f32 %v2836, %v2800
        %v2843 = vmul.f32 %v2837, %v2801
        %v2844 = vmul.f32 %v2838, %v2802
        %v2845 = vmul.f32 %v2839, %v2803
        %v2846 = vmul.f32 %v2840, %v2804
        %v2847 = vmul.f32 %v2841, %v2805
        %v2848 = vadd.f32 %v2842, 0.2548296
        %v2849 = vadd.f32 %v2843, 0.2548296
        %v2850 = vadd.f32 %v2844, 0.2548296
        %v2851 = vadd.f32 %v2845, 0.2548296
        %v2852 = vadd.f32 %v2846, 0.2548296
        %v2853 = vadd.f32 %v2847, 0.2548296
        %v2854 = vmul.f32 %v2848, %v2800
        %v2855 = vmul.f32 %v2849, %v2801
        %v2856 = vmul.f32 %v2850, %v2802
        %v2857 = vmul.f32 %v2851, %v2803
        %v2858 = vmul.f32 %v2852, %v2804
        %v2859 = vmul.f32 %v2853, %v2805
        %v2860 = vsub.f32 0.0, %v2764
        %v2861 = vsub.f32 0.0, %v2765
        %v2862 = vsub.f32 0.0, %v2766
        %v2863 = vsub.f32 0.0, %v2767
        %v2864 = vsub.f32 0.0, %v2768
        %v2865 = vsub.f32 0.0, %v2769
        %v2866 = vmul.f32 %v2860, %v2764
        %v2867 = vmul.f32 %v2861, %v2765
        %v2868 = vmul.f32 %v2862, %v2766
        %v2869 = vmul.f32 %v2863, %v2767
        %v2870 = vmul.f32 %v2864, %v2768
        %v2871 = vmul.f32 %v2865, %v2769
        %v2872 = vmul.f32 %v2866, 1.442695
        %v2873 = vpow.pop %v2872
        %v2874 = vmul.f32 %v2867, 1.442695
        %v2875 = vpow.pop %v2874
        %v2876 = vmul.f32 %v2868, 1.442695
        %v2877 = vpow.pop %v2876
        %v2878 = vmul.f32 %v2869, 1.442695
        %v2879 = vpow.pop %v2878
        %v2880 = vmul.f32 %v2870, 1.442695
        %v2881 = vpow.pop %v2880
        %v2882 = vmul.f32 %v2871, 1.442695
        %v2883 = vpow.pop %v2882
        %v2884 = vmul.f32 %v2854, %v2873
        %v2885 = vmul.f32 %v2855, %v2875
        %v2886 = vmul.f32 %v2856, %v2877
        %v2887 = vmul.f32 %v2857, %v2879
        %v2888 = vmul.f32 %v2858, %v2881
        %v2889 = vmul.f32 %v2859, %v2883
        %v2890 = vsub.f32 1.0, %v2884
        %v2891 = vsub.f32 1.0, %v2885
        %v2892 = vsub.f32 1.0, %v2886
        %v2893 = vsub.f32 1.0, %v2887
        %v2894 = vsub.f32 1.0, %v2888
        %v2895 = vsub.f32 1.0, %v2889
        %v2896 = vmul.f32 %v2758, %v2890
        %v2897 = vmul.f32 %v2759, %v2891
        %v2898 = vmul.f32 %v2760, %v2892
        %v2899 = vmul.f32 %v2761, %v2893
        %v2900 = vmul.f32 %v2762, %v2894
        %v2901 = vmul.f32 %v2763, %v2895
        %v2902 = vadd.f32 %v2896, 1.0
        %v2903 = vadd.f32 %v2897, 1.0
        %v2904 = vadd.f32 %v2898, 1.0
        %v2905 = vadd.f32 %v2899, 1.0
        %v2906 = vadd.f32 %v2900, 1.0
        %v2907 = vadd.f32 %v2901, 1.0
        %v2908 = vmul.f32 %v2740, %v2902
        %v2909 = vmul.f32 %v2741, %v2903
        %v2910 = vmul.f32 %v2742, %v2904
        %v2911 = vmul.f32 %v2743, %v2905
        %v2912 = vmul.f32 %v2744, %v2906
        %v2913 = vmul.f32 %v2745, %v2907
        %v2914 = vld [vmem:[%s700] sm:$0xff]
        %v2915 = vld [vmem:[%s700 + $0x8] sm:$0xff]
        %v2916 = vld [vmem:[%s700 + $0x10] sm:$0xff]
        %v2917 = vld [vmem:[%s700 + $0x18] sm:$0xff]
        %v2918 = vld [vmem:[%s700 + $0x20] sm:$0xff]
        %v2919 = vld [vmem:[%s700 + $0x28] sm:$0xff]
        %v2920 = vld [vmem:[%s700 + $0x30] sm:$0xff]
        %v2921 = vld [vmem:[%s700 + $0x38] sm:$0xff]
        %v2922 = vld [vmem:[%s700 + $0x40] sm:$0xff]
        %v2923 = vld [vmem:[%s700 + $0x48] sm:$0xff]
        %v2924 = vld [vmem:[%s700 + $0x50] sm:$0xff]
        %v2925 = vld [vmem:[%s700 + $0x58] sm:$0xff]
        %v2926 = vld [vmem:[%s700 + $0x60] sm:$0xff]
        %v2927 = vld [vmem:[%s700 + $0x68] sm:$0xff]
        %v2928 = vld [vmem:[%s700 + $0x70] sm:$0xff]
        %v2929 = vld [vmem:[%s700 + $0x78] sm:$0xff]
        %v2930 = vld [vmem:[%s700 + $0x80] sm:$0xff]
        %v2931 = vld [vmem:[%s700 + $0x88] sm:$0xff]
        %v2932 = vld [vmem:[%s700 + $0x90] sm:$0xff]
        %v2933 = vld [vmem:[%s700 + $0x98] sm:$0xff]
        %v2934 = vld [vmem:[%s700 + $0xa0] sm:$0xff]
        %v2935 = vld [vmem:[%s700 + $0xa8] sm:$0xff]
        %v2936 = vld [vmem:[%s700 + $0xb0] sm:$0xff]
        %v2937 = vld [vmem:[%s700 + $0xb8] sm:$0xff]
        %v2938 = vld [vmem:[%s700 + $0xc0] sm:$0xff]
        %v2939 = vld [vmem:[%s700 + $0xc8] sm:$0xff]
        %v2940 = vld [vmem:[%s700 + $0xd0] sm:$0xff]
        %v2941 = vld [vmem:[%s700 + $0xd8] sm:$0xff]
        %v2942 = vld [vmem:[%s700 + $0xe0] sm:$0xff]
        %v2943 = vld [vmem:[%s700 + $0xe8] sm:$0xff]
        %v2944 = vld [vmem:[%s700 + $0xf0] sm:$0xff]
        %v2945 = vld [vmem:[%s700 + $0xf8] sm:$0xff]
        %v2946 = vld [vmem:[%s700 + $0x100] sm:$0xff]
        %v2947 = vld [vmem:[%s700 + $0x108] sm:$0xff]
        %v2948 = vld [vmem:[%s700 + $0x110] sm:$0xff]
        %v2949 = vld [vmem:[%s700 + $0x118] sm:$0xff]
        %v2950 = vld [vmem:[%s700 + $0x120] sm:$0xff]
        %v2951 = vld [vmem:[%s700 + $0x128] sm:$0xff]
        %v2952 = vld [vmem:[%s700 + $0x130] sm:$0xff]
        %v2953 = vld [vmem:[%s700 + $0x138] sm:$0xff]
        %v2954 = vld [vmem:[%s700 + $0x140] sm:$0xff]
        %v2955 = vld [vmem:[%s700 + $0x148] sm:$0xff]
        %v2956 = vld [vmem:[%s700 + $0x150] sm:$0xff]
        %v2957 = vld [vmem:[%s700 + $0x158] sm:$0xff]
        %v2958 = vld [vmem:[%s700 + $0x160] sm:$0xff]
        %v2959 = vld [vmem:[%s700 + $0x168] sm:$0xff]
        %v2960 = vld [vmem:[%s700 + $0x170] sm:$0xff]
        %v2961 = vld [vmem:[%s700 + $0x178] sm:$0xff]
        %2962 = vmatprep.subr.mxu0 0.0
        %2963 = vmatpush1.msra.mxu0 %v2914
        %2964 = vmatprep.subr.mxu0 0.0
        %2965 = vmatpush1.msra.mxu0 %v2915
        %2966 = vmatprep.subr.mxu0 0.0
        %2967 = vmatpush1.msra.mxu0 %v2916
        %2968 = vmatprep.subr.mxu0 0.0
        %2969 = vmatpush1.msra.mxu0 %v2917
        %2970 = vmatprep.subr.mxu0 0.0
        %2971 = vmatpush1.msra.mxu0 %v2918
        %2972 = vmatprep.subr.mxu0 0.0
        %2973 = vmatpush1.msra.mxu0 %v2919
        %2974 = vmatprep.subr.mxu0 0.0
        %2975 = vmatpush1.msra.mxu0 %v2920
        %2976 = vmatprep.subr.mxu0 0.0
        %2977 = vmatpush1.msra.mxu0 %v2921
        %2978 = vmatprep.subr.mxu0 0.0
        %2979 = vmatpush1.msra.mxu0 %v2922
        %2980 = vmatprep.subr.mxu0 0.0
        %2981 = vmatpush1.msra.mxu0 %v2923
        %2982 = vmatprep.subr.mxu0 0.0
        %2983 = vmatpush1.msra.mxu0 %v2924
        %2984 = vmatprep.subr.mxu0 0.0
        %2985 = vmatpush1.msra.mxu0 %v2925
        %2986 = vmatprep.subr.mxu0 0.0
        %2987 = vmatpush1.msra.mxu0 %v2926
        %2988 = vmatprep.subr.mxu0 0.0
        %2989 = vmatpush1.msra.mxu0 %v2927
        %2990 = vmatprep.subr.mxu0 0.0
        %2991 = vmatpush1.msra.mxu0 %v2928
        %2992 = vmatprep.subr.mxu0 0.0
        %2993 = vmatpush1.msra.mxu0 %v2929
        %2994 = vmatprep.subr.mxu0 0.0
        %2995 = vmatpush1.msra.mxu0 %v2930
        %2996 = vmatprep.subr.mxu0 0.0
        %2997 = vmatpush1.msra.mxu0 %v2931
        %2998 = vmatprep.subr.mxu0 0.0
        %2999 = vmatpush1.msra.mxu0 %v2932
        %3000 = vmatprep.subr.mxu0 0.0
        %3001 = vmatpush1.msra.mxu0 %v2933
        %3002 = vmatprep.subr.mxu0 0.0
        %3003 = vmatpush1.msra.mxu0 %v2934
        %3004 = vmatprep.subr.mxu0 0.0
        %3005 = vmatpush1.msra.mxu0 %v2935
        %3006 = vmatprep.subr.mxu0 0.0
        %3007 = vmatpush1.msra.mxu0 %v2936
        %3008 = vmatprep.subr.mxu0 0.0
        %3009 = vmatpush1.msra.mxu0 %v2937
        %3010 = vmatprep.subr.mxu0 0.0
        %3011 = vmatpush1.msra.mxu0 %v2938
        %3012 = vmatprep.subr.mxu0 0.0
        %3013 = vmatpush1.msra.mxu0 %v2939
        %3014 = vmatprep.subr.mxu0 0.0
        %3015 = vmatpush1.msra.mxu0 %v2940
        %3016 = vmatprep.subr.mxu0 0.0
        %3017 = vmatpush1.msra.mxu0 %v2941
        %3018 = vmatprep.subr.mxu0 0.0
        %3019 = vmatpush1.msra.mxu0 %v2942
        %3020 = vmatprep.subr.mxu0 0.0
        %3021 = vmatpush1.msra.mxu0 %v2943
        %3022 = vmatprep.subr.mxu0 0.0
        %3023 = vmatpush1.msra.mxu0 %v2944
        %3024 = vmatprep.subr.mxu0 0.0
        %3025 = vmatpush1.msra.mxu0 %v2945
        %3026 = vmatprep.mubr.f32.mxu0 %v2909
        %3027 = vmatmul.mubr.f32.gmra.mrb[0].mxu0 %v2908
        %v3028 = vpop.f32.mrb[0].mxu0
        %v3029 = vadd.f32 0.0, %v3028
        %v3030 = vpop.f32.mrb[0].mxu0
        %3031 = vmatprep.mubr.f32.mxu0 %v2912
        %3032 = vmatmul.mubr.f32.gmra.mrb[0].mxu0 %v2911
        %v3033 = vpop.f32.mrb[0].mxu0
        %v3034 = vadd.f32 0.0, %v3033
        %v3035 = vpop.f32.mrb[0].mxu0
        %3036 = vdwg.mxu0
        %3037 = vmatprep.subr.mxu0 0.0
        %3038 = vmatpush1.msra.mxu0 %v2946
        %3039 = vmatprep.subr.mxu0 0.0
        %3040 = vmatpush1.msra.mxu0 %v2947
        %3041 = vmatprep.subr.mxu0 0.0
        %3042 = vmatpush1.msra.mxu0 %v2948
        %3043 = vmatprep.subr.mxu0 0.0
        %3044 = vmatpush1.msra.mxu0 %v2949
        %3045 = vmatprep.subr.mxu0 0.0
        %3046 = vmatpush1.msra.mxu0 %v2950
        %3047 = vmatprep.subr.mxu0 0.0
        %3048 = vmatpush1.msra.mxu0 %v2951
        %3049 = vmatprep.subr.mxu0 0.0
        %3050 = vmatpush1.msra.mxu0 %v2952
        %3051 = vmatprep.subr.mxu0 0.0
        %3052 = vmatpush1.msra.mxu0 %v2953
        %3053 = vmatprep.subr.mxu0 0.0
        %3054 = vmatpush1.msra.mxu0 %v2954
        %3055 = vmatprep.subr.mxu0 0.0
        %3056 = vmatpush1.msra.mxu0 %v2955
        %3057 = vmatprep.subr.mxu0 0.0
        %3058 = vmatpush1.msra.mxu0 %v2956
        %3059 = vmatprep.subr.mxu0 0.0
        %3060 = vmatpush1.msra.mxu0 %v2957
        %3061 = vmatprep.subr.mxu0 0.0
        %3062 = vmatpush1.msra.mxu0 %v2958
        %3063 = vmatprep.subr.mxu0 0.0
        %3064 = vmatpush1.msra.mxu0 %v2959
        %3065 = vmatprep.subr.mxu0 0.0
        %3066 = vmatpush1.msra.mxu0 %v2960
        %3067 = vmatprep.subr.mxu0 0.0
        %3068 = vmatpush1.msra.mxu0 %v2961
        %3069 = vmatprep.subr.mxu0 0.0
        %3070 = vmatpush1.msra.mxu0 0.0
        %3071 = vmatprep.subr.mxu0 0.0
        %3072 = vmatpush1.msra.mxu0 0.0
        %3073 = vmatprep.subr.mxu0 0.0
        %3074 = vmatpush1.msra.mxu0 0.0
        %3075 = vmatprep.subr.mxu0 0.0
        %3076 = vmatpush1.msra.mxu0 0.0
        %3077 = vmatprep.subr.mxu0 0.0
        %3078 = vmatpush1.msra.mxu0 0.0
        %3079 = vmatprep.subr.mxu0 0.0
        %3080 = vmatpush1.msra.mxu0 0.0
        %3081 = vmatprep.subr.mxu0 0.0
        %3082 = vmatpush1.msra.mxu0 0.0
        %3083 = vmatprep.subr.mxu0 0.0
        %3084 = vmatpush1.msra.mxu0 0.0
        %3085 = vmatprep.subr.mxu0 0.0
        %3086 = vmatpush1.msra.mxu0 0.0
        %3087 = vmatprep.subr.mxu0 0.0
        %3088 = vmatpush1.msra.mxu0 0.0
        %3089 = vmatprep.subr.mxu0 0.0
        %3090 = vmatpush1.msra.mxu0 0.0
        %3091 = vmatprep.subr.mxu0 0.0
        %3092 = vmatpush1.msra.mxu0 0.0
        %3093 = vmatprep.subr.mxu0 0.0
        %3094 = vmatpush1.msra.mxu0 0.0
        %3095 = vmatprep.subr.mxu0 0.0
        %3096 = vmatpush1.msra.mxu0 0.0
        %3097 = vmatprep.subr.mxu0 0.0
        %3098 = vmatpush1.msra.mxu0 0.0
        %3099 = vmatprep.subr.mxu0 0.0
        %3100 = vmatpush1.msra.mxu0 0.0
        %3101 = vmatprep.mubr.f32.mxu0 0.0
        %3102 = vmatmul.mubr.f32.gmra.mrb[0].mxu0 %v2910
        %v3103 = vpop.f32.mrb[0].mxu0
        %v3104 = vadd.f32 %v3029, %v3103
        %v3105 = vpop.f32.mrb[0].mxu0
        %3106 = vmatprep.mubr.f32.mxu0 0.0
        %3107 = vmatmul.mubr.f32.gmra.mrb[0].mxu0 %v2913
        %v3108 = vpop.f32.mrb[0].mxu0
        %v3109 = vadd.f32 %v3034, %v3108
        %v3110 = vpop.f32.mrb[0].mxu0
        %3111 = vdwg.mxu0
        %v3112 = vadd.f32 %v2479, %v3104
        %v3113 = vadd.f32 %v2480, %v3109
        %v3114 = vld [vmem:[%s816] sm:$0x1]
        %v3116 = vlaneseq
        %v3117 = vshrl.u32 %v3116, 7
        %v3118 = vsub.s32 0, %v3117
        %v3119 = vrot.slane %v3114, %v3118
        %v3121 = vadd.f32 %v3112, %v3119
        %v3122 = vadd.f32 %v3113, %v3119
        %3123 = vst [vmem:[#allocation2] sm:$0xff] %v3121
        %3124 = vst [vmem:[#allocation2 + $0x8] sm:$0xff] %v3122
        %p3125 = scmp.eq.s32.totalorder %s46, 1
        // Predicated region
        $region109: #{tpu_custom_call.1} parent=79 // pred_check
          %p3126 = pneg %p3125
        $region110: #{tpu_custom_call.1} parent=79 // pred_check_branch
          %3128 = sbr.rel (%p3126) target = $region112
        $region111: #{tpu_custom_call.1} parent=79 // pred_region
          %v3129 = vld [vmem:[%s13] sm:$0x1]
          %v3130 = vld [vmem:[%s14] sm:$0x1]
          %3131 = vadd.xlane.f32.xlu0 %v3121
          %v3132 = vpop.xlane.xlu0 %3131
          %3133 = vadd.xlane.f32.xlu0 %v3122
          %v3134 = vpop.xlane.xlu0 %3133
          %v3135 = vmul.f32 %v3132, 0.010416667
          %v3136 = vmul.f32 %v3134, 0.010416667
          %v3137 = vsub.f32 %v3121, %v3135
          %v3138 = vsub.f32 %v3122, %v3136
          %v3139 = vmul.f32 %v3137, %v831
          %v3140 = vmul.f32 %v3138, %v831
          %v3141 = vmul.f32 %v3139, %v3139
          %v3142 = vmul.f32 %v3140, %v3140
          %3143 = vadd.xlane.f32.xlu0 %v3141
          %v3144 = vpop.xlane.xlu0 %3143
          %3145 = vadd.xlane.f32.xlu0 %v3142
          %v3146 = vpop.xlane.xlu0 %3145
          %v3147 = vmul.f32 %v3144, 0.010416667
          %v3148 = vmul.f32 %v3146, 0.010416667
          %v3149 = vadd.f32 %v3147, 1e-06
          %v3150 = vadd.f32 %v3148, 1e-06
          %v3151 = vrsqrt.pop %v3149
          %v3152 = vrsqrt.pop %v3150
          %v3153 = vmul.f32 %v3139, %v3151
          %v3154 = vmul.f32 %v3140, %v3152
          %v3156 = vlaneseq
          %v3157 = vshrl.u32 %v3156, 7
          %v3158 = vsub.s32 0, %v3157
          %v3159 = vrot.slane %v3129, %v3158
          %v3161 = vmul.f32 %v3153, %v3159
          %v3162 = vmul.f32 %v3154, %v3159
          %v3164 = vlaneseq
          %v3165 = vshrl.u32 %v3164, 7
          %v3166 = vsub.s32 0, %v3165
          %v3167 = vrot.slane %v3130, %v3166
          %v3169 = vadd.f32 %v3161, %v3167
          %v3170 = vadd.f32 %v3162, %v3167
          %3171 = vst [vmem:[%s793] sm:$0xff] %v3169
          %3172 = vst [vmem:[%s793 + $0x8] sm:$0xff] %v3170
        $region112: #{tpu_custom_call.1} parent=79 // pred_fallthru
          _
        %s3173 = sand.u32 %s441, 1
        %s3174 = scalar_lea.sflag [#allocation5], %s3173
        %s3175 = sand.u32 %s441, 1
        %s3176 = smul.addr %s3175, 16
        %s3177 = scalar_lea.vmem [#allocation14], %s3176
        // Predicated region
        $region113: #{tpu_custom_call.1} parent=79 // pred_check
          %p3178 = pneg %p451
        $region114: #{tpu_custom_call.1} parent=79 // pred_check_branch
          %3180 = sbr.rel (%p3178) target = $region116
        $region115: #{tpu_custom_call.1} parent=79 // pred_region
          %s3182 = ssub.s32 256, 256
          %3183 = vsyncadd %s3174, %s3182
          %s3184 = smul.addr %s45, 2
          %s3185 = smul.addr %s3184, 128
          %s3186 = scalar_lea.hbm %s15, %s3185
          %s3187 = sshll.u32 %s3177, 4
          %s3188 = int_to_ptr.vmem [resolvable:$true] %s3187
          %3193 = dma.vmem_to_hbm [thread:$0]  %s3188, 256, %s3186, %s3174, 128, 128, 8
        $region116: #{tpu_custom_call.1} parent=79 // pred_fallthru
          _
      $region80: #{tpu_custom_call.1} parent=5 // pred_fallthru
        _
      %p3194 = scmp.le.s32.totalorder 2, %s36
      // Predicated region
      $region117: #{tpu_custom_call.1} parent=5 // pred_check
        %p3195 = pneg %p3194
      $region118: #{tpu_custom_call.1} parent=5 // pred_check_branch
        %3197 = sbr.rel (%p3195) target = $region120
      $region119: #{tpu_custom_call.1} parent=5 // pred_region
        %s3198 = ssub.s32 %s36, 2
        // Predicated region
        $region121: #{tpu_custom_call.1} parent=119 // pred_check
          %p3199 = pneg %p457
        $region122: #{tpu_custom_call.1} parent=119 // pred_check_branch
          %3201 = sbr.rel (%p3199) target = $region124
        $region123: #{tpu_custom_call.1} parent=119 // pred_region
          %s3202 = sand.u32 %s442, 1
          %s3203 = scalar_lea.sflag [#allocation5], %s3202
          %s3204 = sand.u32 %s442, 1
          %s3205 = smul.addr %s3204, 16
          %s3206 = scalar_lea.vmem [#allocation14], %s3205
          %3207 = dma.done %s3203, 256
        $region124: #{tpu_custom_call.1} parent=119 // pred_fallthru
          _
      $region120: #{tpu_custom_call.1} parent=5 // pred_fallthru
        _
    $region6: #{tpu_custom_call.1} parent=1 // loop_footer
      %s40 = sadd.s32 1, %s36
    $region7: #{tpu_custom_call.1} parent=1 // loop_footer_branch
      %35 = sbr.rel target = $region3
    $region8: #{tpu_custom_call.1} parent=1 // loop_exit
      _
    %3208 = vsyncpa [#allocation4], 1
    %s3209 = scalar_lea.sflag [#allocation4], 1
    %3210 = vsyncpa %s3209, 1
    %3211 = vsyncpa [#allocation7], 1
    %s3212 = scalar_lea.sflag [#allocation7], 1
    %3213 = vsyncpa %s3212, 1
    %3214 = vsyncpa [#allocation10], 1
    %s3215 = scalar_lea.sflag [#allocation10], 1
    %3216 = vsyncpa %s3215, 1
    %3217 = vsyncpa [#allocation13], 1
    %s3218 = scalar_lea.sflag [#allocation13], 1
    %3219 = vsyncpa %s3218, 1
    %3220 = vsyncpa [#allocation5], 1
    %s3221 = scalar_lea.sflag [#allocation5], 1
    %3222 = vsyncpa %s3221, 1

</llo_original>
